<compile_context>
chip_gen: v7x
topology: tpu7x:2x2x1
jax: 0.10.0
libtpu: 0.0.40
codegen_flags: <defaults>
</compile_context>

<pallas_src>
import functools

import jax
import jax.numpy as jnp
import numpy as np
from jax import lax
from jax.experimental import pallas as pl
from jax.experimental.pallas import tpu as pltpu


def autopad(k, p=None):
    if p is None:
        p = k // 2 if isinstance(k, int) else [x // 2 for x in k]
    return p


def _conv_bn_silu_kernel(x_ref, w_ref, b_ref, o_ref, xpad_ref, patch_ref,
                         *, K, PAD, H, W, C1):
    # x_ref:     (1, H, W, C1)     bf16  unpadded NHWC input tile (one image)
    # w_ref:     (C2, K*K*C1)      bf16  BN-scale-folded weight, cols = (kh,kw,c1)
    # b_ref:     (C2, 1)           f32   folded BN bias
    # o_ref:     (1, C2, H*W)      f32   output (lane-dense, already NCHW-flat)
    # xpad_ref:  (H+2P, W+2P, C1)  bf16  VMEM scratch: zero-padded input
    # patch_ref: (H*W, K*K*C1)     bf16  VMEM scratch: im2col patches
    HW = H * W

    # In-kernel zero padding (no padded copy of the input in HBM).
    xpad_ref[...] = jnp.zeros_like(xpad_ref)
    xpad_ref[PAD:PAD + H, PAD:PAD + W, :] = x_ref[0]

    # im2col: one shifted slice per tap, spatially flattened (major-dim
    # reshape), written into the patch scratch.
    for kh in range(K):
        for kw in range(K):
            t = kh * K + kw
            patch_ref[:, t * C1:(t + 1) * C1] = (
                xpad_ref[kh:kh + H, kw:kw + W, :].reshape(HW, C1))

    # Single MXU matmul: (C2, KKC1) contracted with (HW, KKC1) on the last dim
    # -> (C2, HW), accumulated in f32.
    acc = lax.dot_general(
        w_ref[...], patch_ref[...],
        dimension_numbers=(((1,), (1,)), ((), ())),
        preferred_element_type=jnp.float32,
    )
    y = acc + b_ref[...]            # BN bias (scale already folded into w)
    y = y * jax.nn.sigmoid(y)       # SiLU, f32 epilogue
    o_ref[0] = y.astype(o_ref.dtype)


def conv_bn_silu(x_nchw, w_oihw, bn_gamma, bn_beta, bn_mean, bn_var,
                 *, k, s=1, p=None, g=1, eps=1e-5):
    """Fused Conv2d(bias=False) + BatchNorm2d(eval) + SiLU.

    x_nchw: (N, C1, H, W) f32 (PyTorch layout).  Returns (N, C2, H, W) f32.
    """
    # TODO(synk): generalize to stride > 1 / groups > 1 (other ultralytics Conv
    # configs); this module instance uses s=1, g=1.
    assert s == 1 and g == 1, "kernel implements stride=1, groups=1 Conv"
    p = autopad(k, p)
    N, C1, H, W = x_nchw.shape
    C2 = w_oihw.shape[0]
    Hp, Wp = H + 2 * p, W + 2 * p
    HW, KKC1 = H * W, k * k * C1

    # Fold BatchNorm (inference / running-stats semantics) into weight + bias.
    scale = bn_gamma / jnp.sqrt(bn_var + eps)                       # (C2,)
    bias = (bn_beta - bn_mean * scale).astype(jnp.float32).reshape(C2, 1)
    w_folded = w_oihw * scale.reshape(C2, 1, 1, 1)                  # (C2,C1,K,K)
    # (C2, C1, K, K) -> (C2, K, K, C1) -> (C2, K*K*C1), bf16 for the MXU.
    w2 = jnp.transpose(w_folded, (0, 2, 3, 1)).reshape(C2, KKC1).astype(jnp.bfloat16)

    # NCHW -> NHWC for the kernel's input tile; bf16 halves HBM/VMEM traffic.
    x_nhwc = jnp.transpose(x_nchw, (0, 2, 3, 1)).astype(jnp.bfloat16)

    kernel = functools.partial(_conv_bn_silu_kernel,
                               K=k, PAD=p, H=H, W=W, C1=C1)

    # TODO(synk): for real ultralytics shapes (e.g. 640x640, 64+ channels) add
    # an H-row grid axis with halo rows so the double-buffered per-step tile
    # fits v7x's 64 MiB VMEM and both TensorCores get work even at N=1.
    out_flat = pl.pallas_call(
        kernel,
        out_shape=jax.ShapeDtypeStruct((N, C2, HW), jnp.float32),
        grid=(N,),
        in_specs=[
            pl.BlockSpec((1, H, W, C1), lambda n: (n, 0, 0, 0)),
            pl.BlockSpec((C2, KKC1), lambda n: (0, 0)),
            pl.BlockSpec((C2, 1), lambda n: (0, 0)),
        ],
        out_specs=pl.BlockSpec((1, C2, HW), lambda n: (n, 0, 0)),
        scratch_shapes=[
            pltpu.VMEM((Hp, Wp, C1), jnp.bfloat16),   # zero-padded input
            pltpu.VMEM((HW, KKC1), jnp.bfloat16),     # im2col patches
        ],
        compiler_params=pltpu.CompilerParams(
            dimension_semantics=("parallel",)),
    )(x_nhwc, w2, bias)

    # (N, C2, H*W) -> (N, C2, H, W): free row-major reshape, already NCHW.
    return out_flat.reshape(N, C2, H, W)


def reference(x_nchw, w_oihw, bn_gamma, bn_beta, bn_mean, bn_var,
              *, k, p=None, eps=1e-5):
    """Same math, same precision choices (folded bf16 weight, f32 accumulate)."""
    p = autopad(k, p)
    scale = bn_gamma / jnp.sqrt(bn_var + eps)
    bias = bn_beta - bn_mean * scale
    w_folded = (w_oihw * scale.reshape(-1, 1, 1, 1)).astype(jnp.bfloat16)
    y = lax.conv_general_dilated(
        x_nchw.astype(jnp.bfloat16), w_folded,
        window_strides=(1, 1),
        padding=[(p, p), (p, p)],
        dimension_numbers=("NCHW", "OIHW", "NCHW"),
        preferred_element_type=jnp.float32,
    )
    y = y + bias.reshape(1, -1, 1, 1)
    return y * jax.nn.sigmoid(y)


if __name__ == "__main__":
    # Module config: Conv(c1=4, c2=8, k=3, s=1) -> autopad -> p=1
    c1, c2, k, s = 4, 8, 3, 1
    N, H, W = 2, 16, 16

    key = jax.random.PRNGKey(0)
    kx, kw_, kg, kb, km, kv = jax.random.split(key, 6)

    # Input in PyTorch NCHW; conv weight in PyTorch OIHW (c2, c1, k, k).
    x_nchw = jax.random.normal(kx, (N, c1, H, W), dtype=jnp.float32)
    w_oihw = jax.random.normal(kw_, (c2, c1, k, k), dtype=jnp.float32) * 0.1

    # BatchNorm parameters (deterministic synthetic init, inference semantics).
    bn_gamma = 1.0 + 0.1 * jax.random.normal(kg, (c2,), dtype=jnp.float32)
    bn_beta = 0.1 * jax.random.normal(kb, (c2,), dtype=jnp.float32)
    bn_mean = 0.1 * jax.random.normal(km, (c2,), dtype=jnp.float32)
    bn_var = jnp.abs(jax.random.normal(kv, (c2,), dtype=jnp.float32)) + 0.5

    out = conv_bn_silu(x_nchw, w_oihw, bn_gamma, bn_beta, bn_mean, bn_var, k=k, s=s)
    out = jax.block_until_ready(out)

    ref = reference(x_nchw, w_oihw, bn_gamma, bn_beta, bn_mean, bn_var, k=k)
    ref = jax.block_until_ready(ref)

    np.testing.assert_allclose(np.asarray(out), np.asarray(ref),
                               rtol=1e-3, atol=1e-3)
    print("KERNEL_OK")
</pallas_src>

<mosaic_0001>
module attributes {stable_mosaic.version = 11 : i64} {
  func.func @_conv_bn_silu_kernel(%arg0: i32, %arg1: memref<1x16x16x4xbf16, #tpu.memory_space<vmem>>, %arg2: memref<8x36xbf16, #tpu.memory_space<vmem>>, %arg3: memref<8x1xf32, #tpu.memory_space<vmem>>, %arg4: memref<1x8x256xf32, #tpu.memory_space<vmem>>, %arg5: memref<18x18x4xbf16, #tpu.memory_space<vmem>>, %arg6: memref<256x36xbf16, #tpu.memory_space<vmem>>) attributes {dimension_semantics = [#tpu.dimension_semantics<parallel>], iteration_bounds = array<i64: 2>, scalar_prefetch = 0 : i64, scratch_operands = 2 : i64, tpu.core_type = #tpu.core_type<tc>, window_params = [{transform_indices = @transform_0, window_bounds = array<i64: 1, 16, 16, 4>}, {pipeline_mode = #tpu.pipeline_mode<synchronous>, transform_indices = @transform_1, window_bounds = array<i64: 8, 36>}, {pipeline_mode = #tpu.pipeline_mode<synchronous>, transform_indices = @transform_2, window_bounds = array<i64: 8, 1>}, {transform_indices = @transform_3, window_bounds = array<i64: 1, 8, 256>}]} {
    %cst = arith.constant 0.000000e+00 : bf16
    %0 = vector.broadcast %cst : bf16 to vector<18x18x4xbf16>
    %c0 = arith.constant 0 : index
    %c0_0 = arith.constant 0 : index
    %c0_1 = arith.constant 0 : index
    %1 = vector.load %arg5[%c0, %c0_0, %c0_1] : memref<18x18x4xbf16, #tpu.memory_space<vmem>>, vector<18x18x4xbf16>
    tpu.vector_store %arg5[%c0, %c0_0, %c0_1], %0 {strides = array<i32>} : memref<18x18x4xbf16, #tpu.memory_space<vmem>>, vector<18x18x4xbf16>,
    %c0_2 = arith.constant 0 : index
    %c0_3 = arith.constant 0 : index
    %c0_4 = arith.constant 0 : index
    %c0_5 = arith.constant 0 : index
    %2 = vector.load %arg1[%c0_2, %c0_3, %c0_4, %c0_5] : memref<1x16x16x4xbf16, #tpu.memory_space<vmem>>, vector<1x16x16x4xbf16>
    %3 = vector.shape_cast %2 : vector<1x16x16x4xbf16> to vector<16x16x4xbf16>
    %c1 = arith.constant 1 : index
    %c1_6 = arith.constant 1 : index
    %c0_7 = arith.constant 0 : index
    %4 = vector.load %arg5[%c1, %c1_6, %c0_7] : memref<18x18x4xbf16, #tpu.memory_space<vmem>>, vector<16x16x4xbf16>
    tpu.vector_store %arg5[%c1, %c1_6, %c0_7], %3 {strides = array<i32>} : memref<18x18x4xbf16, #tpu.memory_space<vmem>>, vector<16x16x4xbf16>,
    %c0_8 = arith.constant 0 : index
    %c0_9 = arith.constant 0 : index
    %c0_10 = arith.constant 0 : index
    %5 = vector.load %arg5[%c0_8, %c0_9, %c0_10] : memref<18x18x4xbf16, #tpu.memory_space<vmem>>, vector<16x16x4xbf16>
    %6 = vector.shape_cast %5 : vector<16x16x4xbf16> to vector<256x4xbf16>
    %c0_11 = arith.constant 0 : index
    %c0_12 = arith.constant 0 : index
    %7 = vector.load %arg6[%c0_11, %c0_12] : memref<256x36xbf16, #tpu.memory_space<vmem>>, vector<256x4xbf16>
    tpu.vector_store %arg6[%c0_11, %c0_12], %6 {strides = array<i32>} : memref<256x36xbf16, #tpu.memory_space<vmem>>, vector<256x4xbf16>,
    %c0_13 = arith.constant 0 : index
    %c1_14 = arith.constant 1 : index
    %c0_15 = arith.constant 0 : index
    %8 = vector.load %arg5[%c0_13, %c1_14, %c0_15] : memref<18x18x4xbf16, #tpu.memory_space<vmem>>, vector<16x16x4xbf16>
    %9 = vector.shape_cast %8 : vector<16x16x4xbf16> to vector<256x4xbf16>
    %c0_16 = arith.constant 0 : index
    %c4 = arith.constant 4 : index
    %10 = vector.load %arg6[%c0_16, %c4] : memref<256x36xbf16, #tpu.memory_space<vmem>>, vector<256x4xbf16>
    tpu.vector_store %arg6[%c0_16, %c4], %9 {strides = array<i32>} : memref<256x36xbf16, #tpu.memory_space<vmem>>, vector<256x4xbf16>,
    %c0_17 = arith.constant 0 : index
    %c2 = arith.constant 2 : index
    %c0_18 = arith.constant 0 : index
    %11 = vector.load %arg5[%c0_17, %c2, %c0_18] : memref<18x18x4xbf16, #tpu.memory_space<vmem>>, vector<16x16x4xbf16>
    %12 = vector.shape_cast %11 : vector<16x16x4xbf16> to vector<256x4xbf16>
    %c0_19 = arith.constant 0 : index
    %c8 = arith.constant 8 : index
    %13 = vector.load %arg6[%c0_19, %c8] : memref<256x36xbf16, #tpu.memory_space<vmem>>, vector<256x4xbf16>
    tpu.vector_store %arg6[%c0_19, %c8], %12 {strides = array<i32>} : memref<256x36xbf16, #tpu.memory_space<vmem>>, vector<256x4xbf16>,
    %c1_20 = arith.constant 1 : index
    %c0_21 = arith.constant 0 : index
    %c0_22 = arith.constant 0 : index
    %14 = vector.load %arg5[%c1_20, %c0_21, %c0_22] : memref<18x18x4xbf16, #tpu.memory_space<vmem>>, vector<16x16x4xbf16>
    %15 = vector.shape_cast %14 : vector<16x16x4xbf16> to vector<256x4xbf16>
    %c0_23 = arith.constant 0 : index
    %c12 = arith.constant 12 : index
    %16 = vector.load %arg6[%c0_23, %c12] : memref<256x36xbf16, #tpu.memory_space<vmem>>, vector<256x4xbf16>
    tpu.vector_store %arg6[%c0_23, %c12], %15 {strides = array<i32>} : memref<256x36xbf16, #tpu.memory_space<vmem>>, vector<256x4xbf16>,
    %c1_24 = arith.constant 1 : index
    %c1_25 = arith.constant 1 : index
    %c0_26 = arith.constant 0 : index
    %17 = vector.load %arg5[%c1_24, %c1_25, %c0_26] : memref<18x18x4xbf16, #tpu.memory_space<vmem>>, vector<16x16x4xbf16>
    %18 = vector.shape_cast %17 : vector<16x16x4xbf16> to vector<256x4xbf16>
    %c0_27 = arith.constant 0 : index
    %c16 = arith.constant 16 : index
    %19 = vector.load %arg6[%c0_27, %c16] : memref<256x36xbf16, #tpu.memory_space<vmem>>, vector<256x4xbf16>
    tpu.vector_store %arg6[%c0_27, %c16], %18 {strides = array<i32>} : memref<256x36xbf16, #tpu.memory_space<vmem>>, vector<256x4xbf16>,
    %c1_28 = arith.constant 1 : index
    %c2_29 = arith.constant 2 : index
    %c0_30 = arith.constant 0 : index
    %20 = vector.load %arg5[%c1_28, %c2_29, %c0_30] : memref<18x18x4xbf16, #tpu.memory_space<vmem>>, vector<16x16x4xbf16>
    %21 = vector.shape_cast %20 : vector<16x16x4xbf16> to vector<256x4xbf16>
    %c0_31 = arith.constant 0 : index
    %c20 = arith.constant 20 : index
    %22 = vector.load %arg6[%c0_31, %c20] : memref<256x36xbf16, #tpu.memory_space<vmem>>, vector<256x4xbf16>
    tpu.vector_store %arg6[%c0_31, %c20], %21 {strides = array<i32>} : memref<256x36xbf16, #tpu.memory_space<vmem>>, vector<256x4xbf16>,
    %c2_32 = arith.constant 2 : index
    %c0_33 = arith.constant 0 : index
    %c0_34 = arith.constant 0 : index
    %23 = vector.load %arg5[%c2_32, %c0_33, %c0_34] : memref<18x18x4xbf16, #tpu.memory_space<vmem>>, vector<16x16x4xbf16>
    %24 = vector.shape_cast %23 : vector<16x16x4xbf16> to vector<256x4xbf16>
    %c0_35 = arith.constant 0 : index
    %c24 = arith.constant 24 : index
    %25 = vector.load %arg6[%c0_35, %c24] : memref<256x36xbf16, #tpu.memory_space<vmem>>, vector<256x4xbf16>
    tpu.vector_store %arg6[%c0_35, %c24], %24 {strides = array<i32>} : memref<256x36xbf16, #tpu.memory_space<vmem>>, vector<256x4xbf16>,
    %c2_36 = arith.constant 2 : index
    %c1_37 = arith.constant 1 : index
    %c0_38 = arith.constant 0 : index
    %26 = vector.load %arg5[%c2_36, %c1_37, %c0_38] : memref<18x18x4xbf16, #tpu.memory_space<vmem>>, vector<16x16x4xbf16>
    %27 = vector.shape_cast %26 : vector<16x16x4xbf16> to vector<256x4xbf16>
    %c0_39 = arith.constant 0 : index
    %c28 = arith.constant 28 : index
    %28 = vector.load %arg6[%c0_39, %c28] : memref<256x36xbf16, #tpu.memory_space<vmem>>, vector<256x4xbf16>
    tpu.vector_store %arg6[%c0_39, %c28], %27 {strides = array<i32>} : memref<256x36xbf16, #tpu.memory_space<vmem>>, vector<256x4xbf16>,
    %c2_40 = arith.constant 2 : index
    %c2_41 = arith.constant 2 : index
    %c0_42 = arith.constant 0 : index
    %29 = vector.load %arg5[%c2_40, %c2_41, %c0_42] : memref<18x18x4xbf16, #tpu.memory_space<vmem>>, vector<16x16x4xbf16>
    %30 = vector.shape_cast %29 : vector<16x16x4xbf16> to vector<256x4xbf16>
    %c0_43 = arith.constant 0 : index
    %c32 = arith.constant 32 : index
    %31 = vector.load %arg6[%c0_43, %c32] : memref<256x36xbf16, #tpu.memory_space<vmem>>, vector<256x4xbf16>
    tpu.vector_store %arg6[%c0_43, %c32], %30 {strides = array<i32>} : memref<256x36xbf16, #tpu.memory_space<vmem>>, vector<256x4xbf16>,
    %c0_44 = arith.constant 0 : index
    %c0_45 = arith.constant 0 : index
    %32 = vector.load %arg2[%c0_44, %c0_45] : memref<8x36xbf16, #tpu.memory_space<vmem>>, vector<8x36xbf16>
    %c0_46 = arith.constant 0 : index
    %c0_47 = arith.constant 0 : index
    %33 = vector.load %arg6[%c0_46, %c0_47] : memref<256x36xbf16, #tpu.memory_space<vmem>>, vector<256x36xbf16>
    %cst_48 = arith.constant dense<0.000000e+00> : vector<8x256xf32>
    %34 = tpu.matmul %32, %33, %cst_48 {dimension_numbers = #tpu.dot_dimension_numbers<[1], [1], [0], [0], [0, 0, 1, 0], [], []>} : vector<8x36xbf16>, vector<256x36xbf16>, vector<8x256xf32> -> vector<8x256xf32>
    %c0_49 = arith.constant 0 : index
    %c0_50 = arith.constant 0 : index
    %35 = vector.load %arg3[%c0_49, %c0_50] : memref<8x1xf32, #tpu.memory_space<vmem>>, vector<8x1xf32>
    %36 = vector.broadcast %35 : vector<8x1xf32> to vector<8x256xf32>
    %37 = arith.addf %34, %36 : vector<8x256xf32>
    %38 = arith.negf %37 : vector<8x256xf32>
    %39 = math.exp %38 : vector<8x256xf32>
    %cst_51 = arith.constant 1.000000e+00 : f32
    %40 = vector.broadcast %cst_51 : f32 to vector<8x256xf32>
    %41 = arith.addf %40, %39 : vector<8x256xf32>
    %42 = arith.divf %40, %41 : vector<8x256xf32>
    %43 = arith.mulf %37, %42 : vector<8x256xf32>
    %c0_52 = arith.constant 0 : index
    %c0_53 = arith.constant 0 : index
    %c0_54 = arith.constant 0 : index
    %44 = vector.load %arg4[%c0_52, %c0_53, %c0_54] : memref<1x8x256xf32, #tpu.memory_space<vmem>>, vector<1x8x256xf32>
    %45 = vector.shape_cast %44 : vector<1x8x256xf32> to vector<8x256xf32>
    %46 = vector.shape_cast %43 : vector<8x256xf32> to vector<1x8x256xf32>
    tpu.vector_store %arg4[%c0_52, %c0_53, %c0_54], %46 {strides = array<i32>} : memref<1x8x256xf32, #tpu.memory_space<vmem>>, vector<1x8x256xf32>,
    return
  }
  func.func @transform_0(%arg0: i32) -> (i32, i32, i32, i32) {
    %c0_i32 = arith.constant 0 : i32
    %c0_i32_0 = arith.constant 0 : i32
    %c0_i32_1 = arith.constant 0 : i32
    %c0_i32_2 = arith.constant 0 : i32
    return %arg0, %c0_i32, %c0_i32_0, %c0_i32_1 : i32, i32, i32, i32
  }
  func.func @transform_1(%arg0: i32) -> (i32, i32) {
    %c0_i32 = arith.constant 0 : i32
    %c0_i32_0 = arith.constant 0 : i32
    %c0_i32_1 = arith.constant 0 : i32
    return %c0_i32, %c0_i32_0 : i32, i32
  }
  func.func @transform_2(%arg0: i32) -> (i32, i32) {
    %c0_i32 = arith.constant 0 : i32
    %c0_i32_0 = arith.constant 0 : i32
    %c0_i32_1 = arith.constant 0 : i32
    return %c0_i32, %c0_i32_0 : i32, i32
  }
  func.func @transform_3(%arg0: i32) -> (i32, i32, i32) {
    %c0_i32 = arith.constant 0 : i32
    %c0_i32_0 = arith.constant 0 : i32
    %c0_i32_1 = arith.constant 0 : i32
    return %arg0, %c0_i32, %c0_i32_0 : i32, i32, i32
  }
}

</mosaic_0001>

<llo_original>
// kernel: tpu_custom_call.1
$region0: #{tpu_custom_call.1}
  #allocation0 [shape = 'u32[]', space=smem, size = 0x4, offset = 0x4, fixed_abs, tag = 'smem constant byte address 0x4 - core index']
  #allocation1 [shape = 'u32[144,128]{1,0:T(1,128)}', space=vmem, size = 0x12000, scoped, tag = 'internal scratch']
  #allocation2 [shape = 'bf16[18,18,4]{2,1,0:T(8,128)(2,1)}', space=vmem, size = 0x1b000, scoped, tag = 'scratch operand']
  #allocation3 [shape = 'bf16[256,36]{1,0:T(16,128)(2,1)}', space=vmem, size = 0x10000, scoped, tag = 'scratch operand']
  %s0 = inlined_call_operand.vmem [shape: bf16[2,16,16,4], index: 0, kind: input, shape index: {}]
  %s1 = inlined_call_operand.vmem [shape: bf16[8,36], index: 1, kind: input, shape index: {}]
  %s2 = inlined_call_operand.vmem [shape: f32[8,1], index: 2, kind: input, shape index: {}]
  %s3 = inlined_call_operand.hbm [shape: f32[2,8,256], index: 3, kind: output, shape index: {}]
  %s4 = sld [smem:[#allocation0]]
  $region45: #{tpu_custom_call.1} parent=0
    _
  %s6 = ssub.s32 1, %s4
  %s7 = scalar_select 0, %s6, %s4
  $region1: #{tpu_custom_call.1} parent=0
    #allocation4 [shape = 'u8[16384]{0}', space=vmem, size = 0x4000, scoped, tag = 'output window, operand 0']
    #allocation5 [shape = 's32[2]{0}', space=sflag, size = 0x8, scoped, tag = 'scoped memory for tpu_custom_call.1']
    %8 = vsyncpa [#allocation5], 0
    %s9 = scalar_lea.sflag [#allocation5], 1
    %10 = vsyncpa %s9, 0
    loop: start=0, step=1, limit=4
    $region2: #{tpu_custom_call.1} parent=1 // loop_pre_header
      _
    $region3: #{tpu_custom_call.1} parent=1 // loop_header
      %s12 = sphi 0, %s16
      %p13 = scmp.ge.s32.totalorder %s12, 4
      %s22 = sphi 0, %s24
      %s25 = sphi 0, %s22
      %s26 = sphi 0, %s25
      %s42 = sphi 0, %s26
      %s46 = sphi 0, %s46
      %s48 = sphi 0, %s46
      %s49 = sphi 0, %s48
      %s63 = sphi 0, %s49
      %s67 = sphi 0, %s67
      %s69 = sphi 0, %s67
      %s70 = sphi 0, %s69
      %s84 = sphi 0, %s70
      %s90 = sphi 0, %s92
      %s93 = sphi 0, %s90
      %s94 = sphi 0, %s93
      %s110 = sphi 0, %s94
    $region4: #{tpu_custom_call.1} parent=1 // loop_header_branch
      %15 = sbr.rel (%p13) target = $region8
    $region5: #{tpu_custom_call.1} parent=1 // loop_body
      %s17 = ssub.s32 %s12, 1
      %s18 = ssub.s32 %s12, 2
      %s19 = sadd.s32 %s12, 1
      %s20 = ssub.s32 %s12, %s19
      %p21 = scmp.eq.s32.totalorder %s20, 0
      %s23 = sadd.s32 %s22, 1
      %s24 = scalar_select %p21, %s22, %s23
      %p27 = pneg %p21
      %p28 = scmp.eq.s32.totalorder %s12, 1
      %p29 = por %p27, %p28
      %p30 = scmp.ne.s32.totalorder %s22, %s25
      %p31 = scmp.eq.s32.totalorder %s12, 0
      %p32 = por %p30, %p31
      %p33 = scmp.ne.s32.totalorder %s22, %s25
      %p34 = scmp.eq.s32.totalorder %s17, 1
      %p35 = por %p33, %p34
      %p36 = scmp.ne.s32.totalorder %s25, %s26
      %p37 = scmp.eq.s32.totalorder %s17, 0
      %p38 = por %p36, %p37
      %p39 = scmp.ne.s32.totalorder %s25, %s26
      %p40 = scmp.eq.s32.totalorder %s18, 1
      %p41 = por %p39, %p40
      %p43 = scmp.ne.s32.totalorder %s26, %s42
      %p44 = scmp.eq.s32.totalorder %s18, 0
      %p45 = por %p43, %p44
      %s47 = sadd.s32 %s46, 1
      %p50 = scmp.eq.s32.totalorder %s12, 1
      %p51 = scmp.ne.s32.totalorder %s46, %s48
      %p52 = scmp.eq.s32.totalorder %s12, 0
      %p53 = por %p51, %p52
      %p54 = scmp.ne.s32.totalorder %s46, %s48
      %p55 = scmp.eq.s32.totalorder %s17, 1
      %p56 = por %p54, %p55
      %p57 = scmp.ne.s32.totalorder %s48, %s49
      %p58 = scmp.eq.s32.totalorder %s17, 0
      %p59 = por %p57, %p58
      %p60 = scmp.ne.s32.totalorder %s48, %s49
      %p61 = scmp.eq.s32.totalorder %s18, 1
      %p62 = por %p60, %p61
      %p64 = scmp.ne.s32.totalorder %s49, %s63
      %p65 = scmp.eq.s32.totalorder %s18, 0
      %p66 = por %p64, %p65
      %s68 = sadd.s32 %s67, 1
      %p71 = scmp.eq.s32.totalorder %s12, 1
      %p72 = scmp.ne.s32.totalorder %s67, %s69
      %p73 = scmp.eq.s32.totalorder %s12, 0
      %p74 = por %p72, %p73
      %p75 = scmp.ne.s32.totalorder %s67, %s69
      %p76 = scmp.eq.s32.totalorder %s17, 1
      %p77 = por %p75, %p76
      %p78 = scmp.ne.s32.totalorder %s69, %s70
      %p79 = scmp.eq.s32.totalorder %s17, 0
      %p80 = por %p78, %p79
      %p81 = scmp.ne.s32.totalorder %s69, %s70
      %p82 = scmp.eq.s32.totalorder %s18, 1
      %p83 = por %p81, %p82
      %p85 = scmp.ne.s32.totalorder %s70, %s84
      %p86 = scmp.eq.s32.totalorder %s18, 0
      %p87 = por %p85, %p86
      %s88 = ssub.s32 %s12, %s19
      %p89 = scmp.eq.s32.totalorder %s88, 0
      %s91 = sadd.s32 %s90, 1
      %s92 = scalar_select %p89, %s90, %s91
      %p95 = pneg %p89
      %p96 = scmp.eq.s32.totalorder %s12, 1
      %p97 = por %p95, %p96
      %p98 = scmp.ne.s32.totalorder %s90, %s93
      %p99 = scmp.eq.s32.totalorder %s12, 0
      %p100 = por %p98, %p99
      %p101 = scmp.ne.s32.totalorder %s90, %s93
      %p102 = scmp.eq.s32.totalorder %s17, 1
      %p103 = por %p101, %p102
      %p104 = scmp.ne.s32.totalorder %s93, %s94
      %p105 = scmp.eq.s32.totalorder %s17, 0
      %p106 = por %p104, %p105
      %p107 = scmp.ne.s32.totalorder %s93, %s94
      %p108 = scmp.eq.s32.totalorder %s18, 1
      %p109 = por %p107, %p108
      %p111 = scmp.ne.s32.totalorder %s94, %s110
      %p112 = scmp.eq.s32.totalorder %s18, 0
      %p113 = por %p111, %p112
      %p114 = scmp.le.s32.totalorder 1, %s12
      %p115 = scmp.lt.s32.totalorder %s12, 3
      %p116 = pnand %p114, %p115
      %p117 = pneg %p116
      // Predicated region
      $region9: #{tpu_custom_call.1} parent=5 // pred_check
        _
      $region10: #{tpu_custom_call.1} parent=5 // pred_check_branch
        %119 = sbr.rel (%p116) target = $region12
      $region11: #{tpu_custom_call.1} parent=5 // pred_region
        %s120 = ssub.s32 %s12, 1
        // Predicated region
        $region13: #{tpu_custom_call.1} parent=11 // pred_check
          %p121 = pneg %p59
        $region14: #{tpu_custom_call.1} parent=11 // pred_check_branch
          %123 = sbr.rel (%p121) target = $region16
        $region15: #{tpu_custom_call.1} parent=11 // pred_region
          _
        $region16: #{tpu_custom_call.1} parent=11 // pred_fallthru
          _
        // Predicated region
        $region17: #{tpu_custom_call.1} parent=11 // pred_check
          %p124 = pneg %p80
        $region18: #{tpu_custom_call.1} parent=11 // pred_check_branch
          %126 = sbr.rel (%p124) target = $region20
        $region19: #{tpu_custom_call.1} parent=11 // pred_region
          _
        $region20: #{tpu_custom_call.1} parent=11 // pred_fallthru
          _
      $region12: #{tpu_custom_call.1} parent=5 // pred_fallthru
        _
      %p127 = scmp.lt.s32.totalorder %s12, 2
      // Predicated region
      $region21: #{tpu_custom_call.1} parent=5 // pred_check
        %p128 = pneg %p127
      $region22: #{tpu_custom_call.1} parent=5 // pred_check_branch
        %130 = sbr.rel (%p128) target = $region24
      $region23: #{tpu_custom_call.1} parent=5 // pred_region
        // Predicated region
        $region25: #{tpu_custom_call.1} parent=23 // pred_check
          %p131 = pneg %p32
        $region26: #{tpu_custom_call.1} parent=23 // pred_check_branch
          %133 = sbr.rel (%p131) target = $region28
        $region27: #{tpu_custom_call.1} parent=23 // pred_region
          %p134 = scmp.lt.s32.totalorder %s12, 1
          %s135 = scalar_select %p134, %s12, 1
          %s136 = smul.addr %s135, 32
          %s137 = smul.addr %s136, 4
          %s138 = scalar_lea.vmem %s0, %s137
        $region28: #{tpu_custom_call.1} parent=23 // pred_fallthru
          _
      $region24: #{tpu_custom_call.1} parent=5 // pred_fallthru
        _
      %p139 = scmp.le.s32.totalorder 1, %s12
      %p140 = scmp.lt.s32.totalorder %s12, 3
      %p141 = pnand %p139, %p140
      %p142 = pneg %p141
      // Predicated region
      $region29: #{tpu_custom_call.1} parent=5 // pred_check
        _
      $region30: #{tpu_custom_call.1} parent=5 // pred_check_branch
        %144 = sbr.rel (%p141) target = $region32
      $region31: #{tpu_custom_call.1} parent=5 // pred_region
        %s145 = ssub.s32 %s12, 1
        %p146 = scmp.lt.s32.totalorder %s17, 1
        %s147 = scalar_select %p146, %s17, 1
        %s148 = smul.addr %s147, 32
        %s149 = smul.addr %s148, 4
        %s150 = scalar_lea.vmem %s0, %s149
        %p151 = pneg %p38
        %p152 = pneg %p35
        %p153 = pneg %p59
        %p154 = pneg %p56
        %p155 = pneg %p80
        %p156 = pneg %p77
        %p157 = pneg %p106
        %p158 = pneg %p103
        %s159 = sand.u32 %s93, 1
        %s160 = scalar_lea.sflag [#allocation5], %s159
        %s161 = sand.u32 %s93, 1
        %s162 = smul.addr %s161, 16
        %s163 = scalar_lea.vmem [#allocation4], %s162
        %p164 = scmp.lt.s32.totalorder %s17, 1
        %s165 = scalar_select %p164, %s17, 1
        %s166 = smul.addr %s165, 32
        %s167 = smul.addr %s166, 4
        %s168 = scalar_lea.vmem %s0, %s167
        %vm170 = vcmask 27648
        %171 = vst.msk [vmem:[#allocation2] sm:$0xf] %vm170, 0
        %172 = vst.msk [vmem:[#allocation2 + $0x4] sm:$0xf] %vm170, 0
        %vm173 = vcmask 24576
        %174 = vst.msk [vmem:[#allocation2 + $0x8] sm:$0x1] %vm173, 0
        %175 = vst.msk [vmem:[#allocation2 + $0xc] sm:$0xf] %vm170, 0
        %176 = vst.msk [vmem:[#allocation2 + $0x10] sm:$0xf] %vm170, 0
        %177 = vst.msk [vmem:[#allocation2 + $0x14] sm:$0x1] %vm173, 0
        %178 = vst.msk [vmem:[#allocation2 + $0x18] sm:$0xf] %vm170, 0
        %179 = vst.msk [vmem:[#allocation2 + $0x1c] sm:$0xf] %vm170, 0
        %180 = vst.msk [vmem:[#allocation2 + $0x20] sm:$0x1] %vm173, 0
        %181 = vst.msk [vmem:[#allocation2 + $0x24] sm:$0xf] %vm170, 0
        %182 = vst.msk [vmem:[#allocation2 + $0x28] sm:$0xf] %vm170, 0
        %183 = vst.msk [vmem:[#allocation2 + $0x2c] sm:$0x1] %vm173, 0
        %184 = vst.msk [vmem:[#allocation2 + $0x30] sm:$0xf] %vm170, 0
        %185 = vst.msk [vmem:[#allocation2 + $0x34] sm:$0xf] %vm170, 0
        %186 = vst.msk [vmem:[#allocation2 + $0x38] sm:$0x1] %vm173, 0
        %187 = vst.msk [vmem:[#allocation2 + $0x3c] sm:$0xf] %vm170, 0
        %188 = vst.msk [vmem:[#allocation2 + $0x40] sm:$0xf] %vm170, 0
        %189 = vst.msk [vmem:[#allocation2 + $0x44] sm:$0x1] %vm173, 0
        %190 = vst.msk [vmem:[#allocation2 + $0x48] sm:$0xf] %vm170, 0
        %191 = vst.msk [vmem:[#allocation2 + $0x4c] sm:$0xf] %vm170, 0
        %192 = vst.msk [vmem:[#allocation2 + $0x50] sm:$0x1] %vm173, 0
        %193 = vst.msk [vmem:[#allocation2 + $0x54] sm:$0xf] %vm170, 0
        %194 = vst.msk [vmem:[#allocation2 + $0x58] sm:$0xf] %vm170, 0
        %195 = vst.msk [vmem:[#allocation2 + $0x5c] sm:$0x1] %vm173, 0
        %196 = vst.msk [vmem:[#allocation2 + $0x60] sm:$0xf] %vm170, 0
        %197 = vst.msk [vmem:[#allocation2 + $0x64] sm:$0xf] %vm170, 0
        %198 = vst.msk [vmem:[#allocation2 + $0x68] sm:$0x1] %vm173, 0
        %199 = vst.msk [vmem:[#allocation2 + $0x6c] sm:$0xf] %vm170, 0
        %200 = vst.msk [vmem:[#allocation2 + $0x70] sm:$0xf] %vm170, 0
        %201 = vst.msk [vmem:[#allocation2 + $0x74] sm:$0x1] %vm173, 0
        %202 = vst.msk [vmem:[#allocation2 + $0x78] sm:$0xf] %vm170, 0
        %203 = vst.msk [vmem:[#allocation2 + $0x7c] sm:$0xf] %vm170, 0
        %204 = vst.msk [vmem:[#allocation2 + $0x80] sm:$0x1] %vm173, 0
        %205 = vst.msk [vmem:[#allocation2 + $0x84] sm:$0xf] %vm170, 0
        %206 = vst.msk [vmem:[#allocation2 + $0x88] sm:$0xf] %vm170, 0
        %207 = vst.msk [vmem:[#allocation2 + $0x8c] sm:$0x1] %vm173, 0
        %208 = vst.msk [vmem:[#allocation2 + $0x90] sm:$0xf] %vm170, 0
        %209 = vst.msk [vmem:[#allocation2 + $0x94] sm:$0xf] %vm170, 0
        %210 = vst.msk [vmem:[#allocation2 + $0x98] sm:$0x1] %vm173, 0
        %211 = vst.msk [vmem:[#allocation2 + $0x9c] sm:$0xf] %vm170, 0
        %212 = vst.msk [vmem:[#allocation2 + $0xa0] sm:$0xf] %vm170, 0
        %213 = vst.msk [vmem:[#allocation2 + $0xa4] sm:$0x1] %vm173, 0
        %214 = vst.msk [vmem:[#allocation2 + $0xa8] sm:$0xf] %vm170, 0
        %215 = vst.msk [vmem:[#allocation2 + $0xac] sm:$0xf] %vm170, 0
        %216 = vst.msk [vmem:[#allocation2 + $0xb0] sm:$0x1] %vm173, 0
        %217 = vst.msk [vmem:[#allocation2 + $0xb4] sm:$0xf] %vm170, 0
        %218 = vst.msk [vmem:[#allocation2 + $0xb8] sm:$0xf] %vm170, 0
        %219 = vst.msk [vmem:[#allocation2 + $0xbc] sm:$0x1] %vm173, 0
        %220 = vst.msk [vmem:[#allocation2 + $0xc0] sm:$0xf] %vm170, 0
        %221 = vst.msk [vmem:[#allocation2 + $0xc4] sm:$0xf] %vm170, 0
        %222 = vst.msk [vmem:[#allocation2 + $0xc8] sm:$0x1] %vm173, 0
        %223 = vst.msk [vmem:[#allocation2 + $0xcc] sm:$0xf] %vm170, 0
        %224 = vst.msk [vmem:[#allocation2 + $0xd0] sm:$0xf] %vm170, 0
        %225 = vst.msk [vmem:[#allocation2 + $0xd4] sm:$0x1] %vm173, 0
        %v226 = vld [vmem:[%s168] sm:$0xf]
        %v227 = vld [vmem:[%s168 + $0x4] sm:$0xf]
        %v228 = vld [vmem:[%s168 + $0x8] sm:$0xf]
        %v229 = vld [vmem:[%s168 + $0xc] sm:$0xf]
        %v230 = vld [vmem:[%s168 + $0x10] sm:$0xf]
        %v231 = vld [vmem:[%s168 + $0x14] sm:$0xf]
        %v232 = vld [vmem:[%s168 + $0x18] sm:$0xf]
        %v233 = vld [vmem:[%s168 + $0x1c] sm:$0xf]
        %v234 = vld [vmem:[%s168 + $0x20] sm:$0xf]
        %v235 = vld [vmem:[%s168 + $0x24] sm:$0xf]
        %v236 = vld [vmem:[%s168 + $0x28] sm:$0xf]
        %v237 = vld [vmem:[%s168 + $0x2c] sm:$0xf]
        %v238 = vld [vmem:[%s168 + $0x30] sm:$0xf]
        %v239 = vld [vmem:[%s168 + $0x34] sm:$0xf]
        %v240 = vld [vmem:[%s168 + $0x38] sm:$0xf]
        %v241 = vld [vmem:[%s168 + $0x3c] sm:$0xf]
        %v242 = vld [vmem:[%s168 + $0x40] sm:$0xf]
        %v243 = vld [vmem:[%s168 + $0x44] sm:$0xf]
        %v244 = vld [vmem:[%s168 + $0x48] sm:$0xf]
        %v245 = vld [vmem:[%s168 + $0x4c] sm:$0xf]
        %v246 = vld [vmem:[%s168 + $0x50] sm:$0xf]
        %v247 = vld [vmem:[%s168 + $0x54] sm:$0xf]
        %v248 = vld [vmem:[%s168 + $0x58] sm:$0xf]
        %v249 = vld [vmem:[%s168 + $0x5c] sm:$0xf]
        %v250 = vld [vmem:[%s168 + $0x60] sm:$0xf]
        %v251 = vld [vmem:[%s168 + $0x64] sm:$0xf]
        %v252 = vld [vmem:[%s168 + $0x68] sm:$0xf]
        %v253 = vld [vmem:[%s168 + $0x6c] sm:$0xf]
        %v254 = vld [vmem:[%s168 + $0x70] sm:$0xf]
        %v255 = vld [vmem:[%s168 + $0x74] sm:$0xf]
        %v256 = vld [vmem:[%s168 + $0x78] sm:$0xf]
        %v257 = vld [vmem:[%s168 + $0x7c] sm:$0xf]
        %vm258 = vsmask.f32 256
        %vm259 = vsmask.f32 4368
        %vm260 = vmor %vm258, %vm259
        %v262 = vshrl.u32 %v226, 16
        %v264 = vrot.slane %v262, 7
        %v265 = vshll.u32 %v226, 16
        %v267 = vor.u32 %v264, %v265
        %v268 = vrot.slane %v264, 4
        %v270 = vshrl.u32 %v227, 16
        %v272 = vrot.slane %v270, 7
        %v273 = vshll.u32 %v227, 16
        %v275 = vor.u32 %v272, %v273
        %v276 = vsel %vm260, %v268, %v275
        %v277 = vrot.slane %v272, 4
        %v279 = vshrl.u32 %v228, 16
        %v281 = vrot.slane %v279, 7
        %v282 = vshll.u32 %v228, 16
        %v284 = vor.u32 %v281, %v282
        %v285 = vrot.slane %v281, 4
        %v287 = vshrl.u32 %v229, 16
        %v289 = vrot.slane %v287, 7
        %v290 = vshll.u32 %v229, 16
        %v292 = vor.u32 %v289, %v290
        %v293 = vsel %vm260, %v285, %v292
        %v294 = vrot.slane %v289, 4
        %v296 = vshrl.u32 %v230, 16
        %v298 = vrot.slane %v296, 7
        %v299 = vshll.u32 %v230, 16
        %v301 = vor.u32 %v298, %v299
        %v302 = vrot.slane %v298, 4
        %v304 = vshrl.u32 %v231, 16
        %v306 = vrot.slane %v304, 7
        %v307 = vshll.u32 %v231, 16
        %v309 = vor.u32 %v306, %v307
        %v310 = vsel %vm260, %v302, %v309
        %v311 = vrot.slane %v306, 4
        %v313 = vshrl.u32 %v232, 16
        %v315 = vrot.slane %v313, 7
        %v316 = vshll.u32 %v232, 16
        %v318 = vor.u32 %v315, %v316
        %v319 = vrot.slane %v315, 4
        %v321 = vshrl.u32 %v233, 16
        %v323 = vrot.slane %v321, 7
        %v324 = vshll.u32 %v233, 16
        %v326 = vor.u32 %v323, %v324
        %v327 = vsel %vm260, %v319, %v326
        %v328 = vrot.slane %v323, 4
        %v330 = vshrl.u32 %v234, 16
        %v332 = vrot.slane %v330, 7
        %v333 = vshll.u32 %v234, 16
        %v335 = vor.u32 %v332, %v333
        %v336 = vrot.slane %v332, 4
        %v338 = vshrl.u32 %v235, 16
        %v340 = vrot.slane %v338, 7
        %v341 = vshll.u32 %v235, 16
        %v343 = vor.u32 %v340, %v341
        %v344 = vsel %vm260, %v336, %v343
        %v345 = vrot.slane %v340, 4
        %v347 = vshrl.u32 %v236, 16
        %v349 = vrot.slane %v347, 7
        %v350 = vshll.u32 %v236, 16
        %v352 = vor.u32 %v349, %v350
        %v353 = vrot.slane %v349, 4
        %v355 = vshrl.u32 %v237, 16
        %v357 = vrot.slane %v355, 7
        %v358 = vshll.u32 %v237, 16
        %v360 = vor.u32 %v357, %v358
        %v361 = vsel %vm260, %v353, %v360
        %v362 = vrot.slane %v357, 4
        %v364 = vshrl.u32 %v238, 16
        %v366 = vrot.slane %v364, 7
        %v367 = vshll.u32 %v238, 16
        %v369 = vor.u32 %v366, %v367
        %v370 = vrot.slane %v366, 4
        %v372 = vshrl.u32 %v239, 16
        %v374 = vrot.slane %v372, 7
        %v375 = vshll.u32 %v239, 16
        %v377 = vor.u32 %v374, %v375
        %v378 = vsel %vm260, %v370, %v377
        %v379 = vrot.slane %v374, 4
        %v381 = vshrl.u32 %v240, 16
        %v383 = vrot.slane %v381, 7
        %v384 = vshll.u32 %v240, 16
        %v386 = vor.u32 %v383, %v384
        %v387 = vrot.slane %v383, 4
        %v389 = vshrl.u32 %v241, 16
        %v391 = vrot.slane %v389, 7
        %v392 = vshll.u32 %v241, 16
        %v394 = vor.u32 %v391, %v392
        %v395 = vsel %vm260, %v387, %v394
        %v396 = vrot.slane %v391, 4
        %v398 = vshrl.u32 %v242, 16
        %v400 = vrot.slane %v398, 7
        %v401 = vshll.u32 %v242, 16
        %v403 = vor.u32 %v400, %v401
        %v404 = vrot.slane %v400, 4
        %v406 = vshrl.u32 %v243, 16
        %v408 = vrot.slane %v406, 7
        %v409 = vshll.u32 %v243, 16
        %v411 = vor.u32 %v408, %v409
        %v412 = vsel %vm260, %v404, %v411
        %v413 = vrot.slane %v408, 4
        %v415 = vshrl.u32 %v244, 16
        %v417 = vrot.slane %v415, 7
        %v418 = vshll.u32 %v244, 16
        %v420 = vor.u32 %v417, %v418
        %v421 = vrot.slane %v417, 4
        %v423 = vshrl.u32 %v245, 16
        %v425 = vrot.slane %v423, 7
        %v426 = vshll.u32 %v245, 16
        %v428 = vor.u32 %v425, %v426
        %v429 = vsel %vm260, %v421, %v428
        %v430 = vrot.slane %v425, 4
        %v432 = vshrl.u32 %v246, 16
        %v434 = vrot.slane %v432, 7
        %v435 = vshll.u32 %v246, 16
        %v437 = vor.u32 %v434, %v435
        %v438 = vrot.slane %v434, 4
        %v440 = vshrl.u32 %v247, 16
        %v442 = vrot.slane %v440, 7
        %v443 = vshll.u32 %v247, 16
        %v445 = vor.u32 %v442, %v443
        %v446 = vsel %vm260, %v438, %v445
        %v447 = vrot.slane %v442, 4
        %v449 = vshrl.u32 %v248, 16
        %v451 = vrot.slane %v449, 7
        %v452 = vshll.u32 %v248, 16
        %v454 = vor.u32 %v451, %v452
        %v455 = vrot.slane %v451, 4
        %v457 = vshrl.u32 %v249, 16
        %v459 = vrot.slane %v457, 7
        %v460 = vshll.u32 %v249, 16
        %v462 = vor.u32 %v459, %v460
        %v463 = vsel %vm260, %v455, %v462
        %v464 = vrot.slane %v459, 4
        %v466 = vshrl.u32 %v250, 16
        %v468 = vrot.slane %v466, 7
        %v469 = vshll.u32 %v250, 16
        %v471 = vor.u32 %v468, %v469
        %v472 = vrot.slane %v468, 4
        %v474 = vshrl.u32 %v251, 16
        %v476 = vrot.slane %v474, 7
        %v477 = vshll.u32 %v251, 16
        %v479 = vor.u32 %v476, %v477
        %v480 = vsel %vm260, %v472, %v479
        %v481 = vrot.slane %v476, 4
        %v483 = vshrl.u32 %v252, 16
        %v485 = vrot.slane %v483, 7
        %v486 = vshll.u32 %v252, 16
        %v488 = vor.u32 %v485, %v486
        %v489 = vrot.slane %v485, 4
        %v491 = vshrl.u32 %v253, 16
        %v493 = vrot.slane %v491, 7
        %v494 = vshll.u32 %v253, 16
        %v496 = vor.u32 %v493, %v494
        %v497 = vsel %vm260, %v489, %v496
        %v498 = vrot.slane %v493, 4
        %v500 = vshrl.u32 %v254, 16
        %v502 = vrot.slane %v500, 7
        %v503 = vshll.u32 %v254, 16
        %v505 = vor.u32 %v502, %v503
        %v506 = vrot.slane %v502, 4
        %v508 = vshrl.u32 %v255, 16
        %v510 = vrot.slane %v508, 7
        %v511 = vshll.u32 %v255, 16
        %v513 = vor.u32 %v510, %v511
        %v514 = vsel %vm260, %v506, %v513
        %v515 = vrot.slane %v510, 4
        %v517 = vshrl.u32 %v256, 16
        %v519 = vrot.slane %v517, 7
        %v520 = vshll.u32 %v256, 16
        %v522 = vor.u32 %v519, %v520
        %v523 = vrot.slane %v519, 4
        %v525 = vshrl.u32 %v257, 16
        %v527 = vrot.slane %v525, 7
        %v528 = vshll.u32 %v257, 16
        %v530 = vor.u32 %v527, %v528
        %v531 = vsel %vm260, %v523, %v530
        %v532 = vrot.slane %v527, 4
        %s581 = scalar_lea.vmem [#allocation2], 12
        %vm582 = vcmask 27648
        %vm583 = vsmask.f32 7938
        %vm584 = vmand %vm582, %vm583
        %v585 = vld [vmem:[%s581] sm:$0xf]
        %v586 = vsel %vm584, %v267, %v585
        %587 = vst [vmem:[%s581] sm:$0xf] %v586
        %588 = vst.msk [vmem:[%s581 + $0x4] sm:$0xf] %vm170, %v276
        %vm589 = vcmask 24576
        %vm590 = vmand %vm589, %vm258
        %v591 = vld [vmem:[%s581 + $0x8] sm:$0x1]
        %v592 = vsel %vm590, %v277, %v591
        %593 = vst [vmem:[%s581 + $0x8] sm:$0x1] %v592
        %v594 = vld [vmem:[%s581 + $0xc] sm:$0xf]
        %v595 = vsel %vm584, %v284, %v594
        %596 = vst [vmem:[%s581 + $0xc] sm:$0xf] %v595
        %597 = vst.msk [vmem:[%s581 + $0x10] sm:$0xf] %vm170, %v293
        %v598 = vld [vmem:[%s581 + $0x14] sm:$0x1]
        %v599 = vsel %vm590, %v294, %v598
        %600 = vst [vmem:[%s581 + $0x14] sm:$0x1] %v599
        %v601 = vld [vmem:[%s581 + $0x18] sm:$0xf]
        %v602 = vsel %vm584, %v301, %v601
        %603 = vst [vmem:[%s581 + $0x18] sm:$0xf] %v602
        %604 = vst.msk [vmem:[%s581 + $0x1c] sm:$0xf] %vm170, %v310
        %v605 = vld [vmem:[%s581 + $0x20] sm:$0x1]
        %v606 = vsel %vm590, %v311, %v605
        %607 = vst [vmem:[%s581 + $0x20] sm:$0x1] %v606
        %v608 = vld [vmem:[%s581 + $0x24] sm:$0xf]
        %v609 = vsel %vm584, %v318, %v608
        %610 = vst [vmem:[%s581 + $0x24] sm:$0xf] %v609
        %611 = vst.msk [vmem:[%s581 + $0x28] sm:$0xf] %vm170, %v327
        %v612 = vld [vmem:[%s581 + $0x2c] sm:$0x1]
        %v613 = vsel %vm590, %v328, %v612
        %614 = vst [vmem:[%s581 + $0x2c] sm:$0x1] %v613
        %v615 = vld [vmem:[%s581 + $0x30] sm:$0xf]
        %v616 = vsel %vm584, %v335, %v615
        %617 = vst [vmem:[%s581 + $0x30] sm:$0xf] %v616
        %618 = vst.msk [vmem:[%s581 + $0x34] sm:$0xf] %vm170, %v344
        %v619 = vld [vmem:[%s581 + $0x38] sm:$0x1]
        %v620 = vsel %vm590, %v345, %v619
        %621 = vst [vmem:[%s581 + $0x38] sm:$0x1] %v620
        %v622 = vld [vmem:[%s581 + $0x3c] sm:$0xf]
        %v623 = vsel %vm584, %v352, %v622
        %624 = vst [vmem:[%s581 + $0x3c] sm:$0xf] %v623
        %625 = vst.msk [vmem:[%s581 + $0x40] sm:$0xf] %vm170, %v361
        %v626 = vld [vmem:[%s581 + $0x44] sm:$0x1]
        %v627 = vsel %vm590, %v362, %v626
        %628 = vst [vmem:[%s581 + $0x44] sm:$0x1] %v627
        %v629 = vld [vmem:[%s581 + $0x48] sm:$0xf]
        %v630 = vsel %vm584, %v369, %v629
        %631 = vst [vmem:[%s581 + $0x48] sm:$0xf] %v630
        %632 = vst.msk [vmem:[%s581 + $0x4c] sm:$0xf] %vm170, %v378
        %v633 = vld [vmem:[%s581 + $0x50] sm:$0x1]
        %v634 = vsel %vm590, %v379, %v633
        %635 = vst [vmem:[%s581 + $0x50] sm:$0x1] %v634
        %v636 = vld [vmem:[%s581 + $0x54] sm:$0xf]
        %v637 = vsel %vm584, %v386, %v636
        %638 = vst [vmem:[%s581 + $0x54] sm:$0xf] %v637
        %639 = vst.msk [vmem:[%s581 + $0x58] sm:$0xf] %vm170, %v395
        %v640 = vld [vmem:[%s581 + $0x5c] sm:$0x1]
        %v641 = vsel %vm590, %v396, %v640
        %642 = vst [vmem:[%s581 + $0x5c] sm:$0x1] %v641
        %v643 = vld [vmem:[%s581 + $0x60] sm:$0xf]
        %v644 = vsel %vm584, %v403, %v643
        %645 = vst [vmem:[%s581 + $0x60] sm:$0xf] %v644
        %646 = vst.msk [vmem:[%s581 + $0x64] sm:$0xf] %vm170, %v412
        %v647 = vld [vmem:[%s581 + $0x68] sm:$0x1]
        %v648 = vsel %vm590, %v413, %v647
        %649 = vst [vmem:[%s581 + $0x68] sm:$0x1] %v648
        %v650 = vld [vmem:[%s581 + $0x6c] sm:$0xf]
        %v651 = vsel %vm584, %v420, %v650
        %652 = vst [vmem:[%s581 + $0x6c] sm:$0xf] %v651
        %653 = vst.msk [vmem:[%s581 + $0x70] sm:$0xf] %vm170, %v429
        %v654 = vld [vmem:[%s581 + $0x74] sm:$0x1]
        %v655 = vsel %vm590, %v430, %v654
        %656 = vst [vmem:[%s581 + $0x74] sm:$0x1] %v655
        %v657 = vld [vmem:[%s581 + $0x78] sm:$0xf]
        %v658 = vsel %vm584, %v437, %v657
        %659 = vst [vmem:[%s581 + $0x78] sm:$0xf] %v658
        %660 = vst.msk [vmem:[%s581 + $0x7c] sm:$0xf] %vm170, %v446
        %v661 = vld [vmem:[%s581 + $0x80] sm:$0x1]
        %v662 = vsel %vm590, %v447, %v661
        %663 = vst [vmem:[%s581 + $0x80] sm:$0x1] %v662
        %v664 = vld [vmem:[%s581 + $0x84] sm:$0xf]
        %v665 = vsel %vm584, %v454, %v664
        %666 = vst [vmem:[%s581 + $0x84] sm:$0xf] %v665
        %667 = vst.msk [vmem:[%s581 + $0x88] sm:$0xf] %vm170, %v463
        %v668 = vld [vmem:[%s581 + $0x8c] sm:$0x1]
        %v669 = vsel %vm590, %v464, %v668
        %670 = vst [vmem:[%s581 + $0x8c] sm:$0x1] %v669
        %v671 = vld [vmem:[%s581 + $0x90] sm:$0xf]
        %v672 = vsel %vm584, %v471, %v671
        %673 = vst [vmem:[%s581 + $0x90] sm:$0xf] %v672
        %674 = vst.msk [vmem:[%s581 + $0x94] sm:$0xf] %vm170, %v480
        %v675 = vld [vmem:[%s581 + $0x98] sm:$0x1]
        %v676 = vsel %vm590, %v481, %v675
        %677 = vst [vmem:[%s581 + $0x98] sm:$0x1] %v676
        %v678 = vld [vmem:[%s581 + $0x9c] sm:$0xf]
        %v679 = vsel %vm584, %v488, %v678
        %680 = vst [vmem:[%s581 + $0x9c] sm:$0xf] %v679
        %681 = vst.msk [vmem:[%s581 + $0xa0] sm:$0xf] %vm170, %v497
        %v682 = vld [vmem:[%s581 + $0xa4] sm:$0x1]
        %v683 = vsel %vm590, %v498, %v682
        %684 = vst [vmem:[%s581 + $0xa4] sm:$0x1] %v683
        %v685 = vld [vmem:[%s581 + $0xa8] sm:$0xf]
        %v686 = vsel %vm584, %v505, %v685
        %687 = vst [vmem:[%s581 + $0xa8] sm:$0xf] %v686
        %688 = vst.msk [vmem:[%s581 + $0xac] sm:$0xf] %vm170, %v514
        %v689 = vld [vmem:[%s581 + $0xb0] sm:$0x1]
        %v690 = vsel %vm590, %v515, %v689
        %691 = vst [vmem:[%s581 + $0xb0] sm:$0x1] %v690
        %v692 = vld [vmem:[%s581 + $0xb4] sm:$0xf]
        %v693 = vsel %vm584, %v522, %v692
        %694 = vst [vmem:[%s581 + $0xb4] sm:$0xf] %v693
        %695 = vst.msk [vmem:[%s581 + $0xb8] sm:$0xf] %vm170, %v531
        %v696 = vld [vmem:[%s581 + $0xbc] sm:$0x1]
        %v697 = vsel %vm590, %v532, %v696
        %698 = vst [vmem:[%s581 + $0xbc] sm:$0x1] %v697
        %v699 = vld [vmem:[#allocation2] sm:$0xf]
        %v700 = vld [vmem:[#allocation2 + $0x4] sm:$0xf]
        %v701 = vld [vmem:[#allocation2 + $0xc] sm:$0xf]
        %v702 = vld [vmem:[#allocation2 + $0x10] sm:$0xf]
        %v703 = vld [vmem:[#allocation2 + $0x18] sm:$0xf]
        %v704 = vld [vmem:[#allocation2 + $0x1c] sm:$0xf]
        %v705 = vld [vmem:[#allocation2 + $0x24] sm:$0xf]
        %v706 = vld [vmem:[#allocation2 + $0x28] sm:$0xf]
        %v707 = vld [vmem:[#allocation2 + $0x30] sm:$0xf]
        %v708 = vld [vmem:[#allocation2 + $0x34] sm:$0xf]
        %v709 = vld [vmem:[#allocation2 + $0x3c] sm:$0xf]
        %v710 = vld [vmem:[#allocation2 + $0x40] sm:$0xf]
        %v711 = vld [vmem:[#allocation2 + $0x48] sm:$0xf]
        %v712 = vld [vmem:[#allocation2 + $0x4c] sm:$0xf]
        %v713 = vld [vmem:[#allocation2 + $0x54] sm:$0xf]
        %v714 = vld [vmem:[#allocation2 + $0x58] sm:$0xf]
        %v715 = vld [vmem:[#allocation2 + $0x60] sm:$0xf]
        %v716 = vld [vmem:[#allocation2 + $0x64] sm:$0xf]
        %v717 = vld [vmem:[#allocation2 + $0x6c] sm:$0xf]
        %v718 = vld [vmem:[#allocation2 + $0x70] sm:$0xf]
        %v719 = vld [vmem:[#allocation2 + $0x78] sm:$0xf]
        %v720 = vld [vmem:[#allocation2 + $0x7c] sm:$0xf]
        %v721 = vld [vmem:[#allocation2 + $0x84] sm:$0xf]
        %v722 = vld [vmem:[#allocation2 + $0x88] sm:$0xf]
        %v723 = vld [vmem:[#allocation2 + $0x90] sm:$0xf]
        %v724 = vld [vmem:[#allocation2 + $0x94] sm:$0xf]
        %v725 = vld [vmem:[#allocation2 + $0x9c] sm:$0xf]
        %v726 = vld [vmem:[#allocation2 + $0xa0] sm:$0xf]
        %v727 = vld [vmem:[#allocation2 + $0xa8] sm:$0xf]
        %v728 = vld [vmem:[#allocation2 + $0xac] sm:$0xf]
        %v729 = vld [vmem:[#allocation2 + $0xb4] sm:$0xf]
        %v730 = vld [vmem:[#allocation2 + $0xb8] sm:$0xf]
        %v763 = vunpack.c.l.b16 %v699
        %v764 = vunpack.c.l.b16 %v700
        %v765 = vunpack.c.l.b16 %v701
        %v766 = vunpack.c.l.b16 %v702
        %v767 = vunpack.c.l.b16 %v703
        %v768 = vunpack.c.l.b16 %v704
        %v769 = vunpack.c.l.b16 %v705
        %v770 = vunpack.c.l.b16 %v706
        %v771 = vunpack.c.l.b16 %v707
        %v772 = vunpack.c.l.b16 %v708
        %v773 = vunpack.c.l.b16 %v709
        %v774 = vunpack.c.l.b16 %v710
        %v775 = vunpack.c.l.b16 %v711
        %v776 = vunpack.c.l.b16 %v712
        %v777 = vunpack.c.l.b16 %v713
        %v778 = vunpack.c.l.b16 %v714
        %v779 = vunpack.c.l.b16 %v715
        %v780 = vunpack.c.l.b16 %v716
        %v781 = vunpack.c.l.b16 %v717
        %v782 = vunpack.c.l.b16 %v718
        %v783 = vunpack.c.l.b16 %v719
        %v784 = vunpack.c.l.b16 %v720
        %v785 = vunpack.c.l.b16 %v721
        %v786 = vunpack.c.l.b16 %v722
        %v787 = vunpack.c.l.b16 %v723
        %v788 = vunpack.c.l.b16 %v724
        %v789 = vunpack.c.l.b16 %v725
        %v790 = vunpack.c.l.b16 %v726
        %v791 = vunpack.c.l.b16 %v727
        %v792 = vunpack.c.l.b16 %v728
        %v793 = vunpack.c.l.b16 %v729
        %v794 = vunpack.c.l.b16 %v730
        %v795 = vpack.c.b16 %v764, %v763
        %v796 = vpack.c.b16 %v766, %v765
        %v797 = vpack.c.b16 %v768, %v767
        %v798 = vpack.c.b16 %v770, %v769
        %v799 = vpack.c.b16 %v772, %v771
        %v800 = vpack.c.b16 %v774, %v773
        %v801 = vpack.c.b16 %v776, %v775
        %v802 = vpack.c.b16 %v778, %v777
        %v803 = vpack.c.b16 %v780, %v779
        %v804 = vpack.c.b16 %v782, %v781
        %v805 = vpack.c.b16 %v784, %v783
        %v806 = vpack.c.b16 %v786, %v785
        %v807 = vpack.c.b16 %v788, %v787
        %v808 = vpack.c.b16 %v790, %v789
        %v809 = vpack.c.b16 %v792, %v791
        %v810 = vpack.c.b16 %v794, %v793
        %vm827 = vcmask 31744
        %828 = vst.msk [vmem:[#allocation3] sm:$0xff] %vm827, %v795
        %829 = vst.msk [vmem:[#allocation3 + $0x8] sm:$0xff] %vm827, %v796
        %830 = vst.msk [vmem:[#allocation3 + $0x10] sm:$0xff] %vm827, %v797
        %831 = vst.msk [vmem:[#allocation3 + $0x18] sm:$0xff] %vm827, %v798
        %832 = vst.msk [vmem:[#allocation3 + $0x20] sm:$0xff] %vm827, %v799
        %833 = vst.msk [vmem:[#allocation3 + $0x28] sm:$0xff] %vm827, %v800
        %834 = vst.msk [vmem:[#allocation3 + $0x30] sm:$0xff] %vm827, %v801
        %835 = vst.msk [vmem:[#allocation3 + $0x38] sm:$0xff] %vm827, %v802
        %836 = vst.msk [vmem:[#allocation3 + $0x40] sm:$0xff] %vm827, %v803
        %837 = vst.msk [vmem:[#allocation3 + $0x48] sm:$0xff] %vm827, %v804
        %838 = vst.msk [vmem:[#allocation3 + $0x50] sm:$0xff] %vm827, %v805
        %839 = vst.msk [vmem:[#allocation3 + $0x58] sm:$0xff] %vm827, %v806
        %840 = vst.msk [vmem:[#allocation3 + $0x60] sm:$0xff] %vm827, %v807
        %841 = vst.msk [vmem:[#allocation3 + $0x68] sm:$0xff] %vm827, %v808
        %842 = vst.msk [vmem:[#allocation3 + $0x70] sm:$0xff] %vm827, %v809
        %843 = vst.msk [vmem:[#allocation3 + $0x78] sm:$0xff] %vm827, %v810
        %v844 = vld [vmem:[#allocation2] sm:$0xf]
        %v845 = vld [vmem:[#allocation2 + $0x4] sm:$0xf]
        %v846 = vld [vmem:[#allocation2 + $0x8] sm:$0x1]
        %v847 = vld [vmem:[#allocation2 + $0xc] sm:$0xf]
        %v848 = vld [vmem:[#allocation2 + $0x10] sm:$0xf]
        %v849 = vld [vmem:[#allocation2 + $0x14] sm:$0x1]
        %v850 = vld [vmem:[#allocation2 + $0x18] sm:$0xf]
        %v851 = vld [vmem:[#allocation2 + $0x1c] sm:$0xf]
        %v852 = vld [vmem:[#allocation2 + $0x20] sm:$0x1]
        %v853 = vld [vmem:[#allocation2 + $0x24] sm:$0xf]
        %v854 = vld [vmem:[#allocation2 + $0x28] sm:$0xf]
        %v855 = vld [vmem:[#allocation2 + $0x2c] sm:$0x1]
        %v856 = vld [vmem:[#allocation2 + $0x30] sm:$0xf]
        %v857 = vld [vmem:[#allocation2 + $0x34] sm:$0xf]
        %v858 = vld [vmem:[#allocation2 + $0x38] sm:$0x1]
        %v859 = vld [vmem:[#allocation2 + $0x3c] sm:$0xf]
        %v860 = vld [vmem:[#allocation2 + $0x40] sm:$0xf]
        %v861 = vld [vmem:[#allocation2 + $0x44] sm:$0x1]
        %v862 = vld [vmem:[#allocation2 + $0x48] sm:$0xf]
        %v863 = vld [vmem:[#allocation2 + $0x4c] sm:$0xf]
        %v864 = vld [vmem:[#allocation2 + $0x50] sm:$0x1]
        %v865 = vld [vmem:[#allocation2 + $0x54] sm:$0xf]
        %v866 = vld [vmem:[#allocation2 + $0x58] sm:$0xf]
        %v867 = vld [vmem:[#allocation2 + $0x5c] sm:$0x1]
        %v868 = vld [vmem:[#allocation2 + $0x60] sm:$0xf]
        %v869 = vld [vmem:[#allocation2 + $0x64] sm:$0xf]
        %v870 = vld [vmem:[#allocation2 + $0x68] sm:$0x1]
        %v871 = vld [vmem:[#allocation2 + $0x6c] sm:$0xf]
        %v872 = vld [vmem:[#allocation2 + $0x70] sm:$0xf]
        %v873 = vld [vmem:[#allocation2 + $0x74] sm:$0x1]
        %v874 = vld [vmem:[#allocation2 + $0x78] sm:$0xf]
        %v875 = vld [vmem:[#allocation2 + $0x7c] sm:$0xf]
        %v876 = vld [vmem:[#allocation2 + $0x80] sm:$0x1]
        %v877 = vld [vmem:[#allocation2 + $0x84] sm:$0xf]
        %v878 = vld [vmem:[#allocation2 + $0x88] sm:$0xf]
        %v879 = vld [vmem:[#allocation2 + $0x8c] sm:$0x1]
        %v880 = vld [vmem:[#allocation2 + $0x90] sm:$0xf]
        %v881 = vld [vmem:[#allocation2 + $0x94] sm:$0xf]
        %v882 = vld [vmem:[#allocation2 + $0x98] sm:$0x1]
        %v883 = vld [vmem:[#allocation2 + $0x9c] sm:$0xf]
        %v884 = vld [vmem:[#allocation2 + $0xa0] sm:$0xf]
        %v885 = vld [vmem:[#allocation2 + $0xa4] sm:$0x1]
        %v886 = vld [vmem:[#allocation2 + $0xa8] sm:$0xf]
        %v887 = vld [vmem:[#allocation2 + $0xac] sm:$0xf]
        %v888 = vld [vmem:[#allocation2 + $0xb0] sm:$0x1]
        %v889 = vld [vmem:[#allocation2 + $0xb4] sm:$0xf]
        %v890 = vld [vmem:[#allocation2 + $0xb8] sm:$0xf]
        %v891 = vld [vmem:[#allocation2 + $0xbc] sm:$0x1]
        %vm892 = vsmask.f32 3328
        %vm893 = vsmask.f32 7440
        %vm894 = vmor %vm892, %vm893
        %v896 = vshrl.u32 %v844, 16
        %v898 = vrot.slane %v896, 4
        %v899 = vshll.u32 %v844, 16
        %v901 = vrot.slane %v899, 5
        %v902 = vor.u32 %v898, %v901
        %v903 = vrot.slane %v902, 4
        %v905 = vshll.u32 %v845, 16
        %v907 = vrot.slane %v905, 5
        %v908 = vsel %vm894, %v903, %v907
        %v909 = vshrl.u32 %v845, 16
        %v911 = vrot.slane %v909, 4
        %v912 = vor.u32 %v911, %v907
        %v913 = vrot.slane %v912, 4
        %v915 = vshll.u32 %v846, 16
        %v917 = vrot.slane %v915, 5
        %v918 = vsel %vm894, %v913, %v917
        %v920 = vshrl.u32 %v847, 16
        %v922 = vrot.slane %v920, 4
        %v923 = vshll.u32 %v847, 16
        %v925 = vrot.slane %v923, 5
        %v926 = vor.u32 %v922, %v925
        %v927 = vrot.slane %v926, 4
        %v929 = vshll.u32 %v848, 16
        %v931 = vrot.slane %v929, 5
        %v932 = vsel %vm894, %v927, %v931
        %v933 = vshrl.u32 %v848, 16
        %v935 = vrot.slane %v933, 4
        %v936 = vor.u32 %v935, %v931
        %v937 = vrot.slane %v936, 4
        %v939 = vshll.u32 %v849, 16
        %v941 = vrot.slane %v939, 5
        %v942 = vsel %vm894, %v937, %v941
        %v944 = vshrl.u32 %v850, 16
        %v946 = vrot.slane %v944, 4
        %v947 = vshll.u32 %v850, 16
        %v949 = vrot.slane %v947, 5
        %v950 = vor.u32 %v946, %v949
        %v951 = vrot.slane %v950, 4
        %v953 = vshll.u32 %v851, 16
        %v955 = vrot.slane %v953, 5
        %v956 = vsel %vm894, %v951, %v955
        %v957 = vshrl.u32 %v851, 16
        %v959 = vrot.slane %v957, 4
        %v960 = vor.u32 %v959, %v955
        %v961 = vrot.slane %v960, 4
        %v963 = vshll.u32 %v852, 16
        %v965 = vrot.slane %v963, 5
        %v966 = vsel %vm894, %v961, %v965
        %v968 = vshrl.u32 %v853, 16
        %v970 = vrot.slane %v968, 4
        %v971 = vshll.u32 %v853, 16
        %v973 = vrot.slane %v971, 5
        %v974 = vor.u32 %v970, %v973
        %v975 = vrot.slane %v974, 4
        %v977 = vshll.u32 %v854, 16
        %v979 = vrot.slane %v977, 5
        %v980 = vsel %vm894, %v975, %v979
        %v981 = vshrl.u32 %v854, 16
        %v983 = vrot.slane %v981, 4
        %v984 = vor.u32 %v983, %v979
        %v985 = vrot.slane %v984, 4
        %v987 = vshll.u32 %v855, 16
        %v989 = vrot.slane %v987, 5
        %v990 = vsel %vm894, %v985, %v989
        %v992 = vshrl.u32 %v856, 16
        %v994 = vrot.slane %v992, 4
        %v995 = vshll.u32 %v856, 16
        %v997 = vrot.slane %v995, 5
        %v998 = vor.u32 %v994, %v997
        %v999 = vrot.slane %v998, 4
        %v1001 = vshll.u32 %v857, 16
        %v1003 = vrot.slane %v1001, 5
        %v1004 = vsel %vm894, %v999, %v1003
        %v1005 = vshrl.u32 %v857, 16
        %v1007 = vrot.slane %v1005, 4
        %v1008 = vor.u32 %v1007, %v1003
        %v1009 = vrot.slane %v1008, 4
        %v1011 = vshll.u32 %v858, 16
        %v1013 = vrot.slane %v1011, 5
        %v1014 = vsel %vm894, %v1009, %v1013
        %v1016 = vshrl.u32 %v859, 16
        %v1018 = vrot.slane %v1016, 4
        %v1019 = vshll.u32 %v859, 16
        %v1021 = vrot.slane %v1019, 5
        %v1022 = vor.u32 %v1018, %v1021
        %v1023 = vrot.slane %v1022, 4
        %v1025 = vshll.u32 %v860, 16
        %v1027 = vrot.slane %v1025, 5
        %v1028 = vsel %vm894, %v1023, %v1027
        %v1029 = vshrl.u32 %v860, 16
        %v1031 = vrot.slane %v1029, 4
        %v1032 = vor.u32 %v1031, %v1027
        %v1033 = vrot.slane %v1032, 4
        %v1035 = vshll.u32 %v861, 16
        %v1037 = vrot.slane %v1035, 5
        %v1038 = vsel %vm894, %v1033, %v1037
        %v1040 = vshrl.u32 %v862, 16
        %v1042 = vrot.slane %v1040, 4
        %v1043 = vshll.u32 %v862, 16
        %v1045 = vrot.slane %v1043, 5
        %v1046 = vor.u32 %v1042, %v1045
        %v1047 = vrot.slane %v1046, 4
        %v1049 = vshll.u32 %v863, 16
        %v1051 = vrot.slane %v1049, 5
        %v1052 = vsel %vm894, %v1047, %v1051
        %v1053 = vshrl.u32 %v863, 16
        %v1055 = vrot.slane %v1053, 4
        %v1056 = vor.u32 %v1055, %v1051
        %v1057 = vrot.slane %v1056, 4
        %v1059 = vshll.u32 %v864, 16
        %v1061 = vrot.slane %v1059, 5
        %v1062 = vsel %vm894, %v1057, %v1061
        %v1064 = vshrl.u32 %v865, 16
        %v1066 = vrot.slane %v1064, 4
        %v1067 = vshll.u32 %v865, 16
        %v1069 = vrot.slane %v1067, 5
        %v1070 = vor.u32 %v1066, %v1069
        %v1071 = vrot.slane %v1070, 4
        %v1073 = vshll.u32 %v866, 16
        %v1075 = vrot.slane %v1073, 5
        %v1076 = vsel %vm894, %v1071, %v1075
        %v1077 = vshrl.u32 %v866, 16
        %v1079 = vrot.slane %v1077, 4
        %v1080 = vor.u32 %v1079, %v1075
        %v1081 = vrot.slane %v1080, 4
        %v1083 = vshll.u32 %v867, 16
        %v1085 = vrot.slane %v1083, 5
        %v1086 = vsel %vm894, %v1081, %v1085
        %v1088 = vshrl.u32 %v868, 16
        %v1090 = vrot.slane %v1088, 4
        %v1091 = vshll.u32 %v868, 16
        %v1093 = vrot.slane %v1091, 5
        %v1094 = vor.u32 %v1090, %v1093
        %v1095 = vrot.slane %v1094, 4
        %v1097 = vshll.u32 %v869, 16
        %v1099 = vrot.slane %v1097, 5
        %v1100 = vsel %vm894, %v1095, %v1099
        %v1101 = vshrl.u32 %v869, 16
        %v1103 = vrot.slane %v1101, 4
        %v1104 = vor.u32 %v1103, %v1099
        %v1105 = vrot.slane %v1104, 4
        %v1107 = vshll.u32 %v870, 16
        %v1109 = vrot.slane %v1107, 5
        %v1110 = vsel %vm894, %v1105, %v1109
        %v1112 = vshrl.u32 %v871, 16
        %v1114 = vrot.slane %v1112, 4
        %v1115 = vshll.u32 %v871, 16
        %v1117 = vrot.slane %v1115, 5
        %v1118 = vor.u32 %v1114, %v1117
        %v1119 = vrot.slane %v1118, 4
        %v1121 = vshll.u32 %v872, 16
        %v1123 = vrot.slane %v1121, 5
        %v1124 = vsel %vm894, %v1119, %v1123
        %v1125 = vshrl.u32 %v872, 16
        %v1127 = vrot.slane %v1125, 4
        %v1128 = vor.u32 %v1127, %v1123
        %v1129 = vrot.slane %v1128, 4
        %v1131 = vshll.u32 %v873, 16
        %v1133 = vrot.slane %v1131, 5
        %v1134 = vsel %vm894, %v1129, %v1133
        %v1136 = vshrl.u32 %v874, 16
        %v1138 = vrot.slane %v1136, 4
        %v1139 = vshll.u32 %v874, 16
        %v1141 = vrot.slane %v1139, 5
        %v1142 = vor.u32 %v1138, %v1141
        %v1143 = vrot.slane %v1142, 4
        %v1145 = vshll.u32 %v875, 16
        %v1147 = vrot.slane %v1145, 5
        %v1148 = vsel %vm894, %v1143, %v1147
        %v1149 = vshrl.u32 %v875, 16
        %v1151 = vrot.slane %v1149, 4
        %v1152 = vor.u32 %v1151, %v1147
        %v1153 = vrot.slane %v1152, 4
        %v1155 = vshll.u32 %v876, 16
        %v1157 = vrot.slane %v1155, 5
        %v1158 = vsel %vm894, %v1153, %v1157
        %v1160 = vshrl.u32 %v877, 16
        %v1162 = vrot.slane %v1160, 4
        %v1163 = vshll.u32 %v877, 16
        %v1165 = vrot.slane %v1163, 5
        %v1166 = vor.u32 %v1162, %v1165
        %v1167 = vrot.slane %v1166, 4
        %v1169 = vshll.u32 %v878, 16
        %v1171 = vrot.slane %v1169, 5
        %v1172 = vsel %vm894, %v1167, %v1171
        %v1173 = vshrl.u32 %v878, 16
        %v1175 = vrot.slane %v1173, 4
        %v1176 = vor.u32 %v1175, %v1171
        %v1177 = vrot.slane %v1176, 4
        %v1179 = vshll.u32 %v879, 16
        %v1181 = vrot.slane %v1179, 5
        %v1182 = vsel %vm894, %v1177, %v1181
        %v1184 = vshrl.u32 %v880, 16
        %v1186 = vrot.slane %v1184, 4
        %v1187 = vshll.u32 %v880, 16
        %v1189 = vrot.slane %v1187, 5
        %v1190 = vor.u32 %v1186, %v1189
        %v1191 = vrot.slane %v1190, 4
        %v1193 = vshll.u32 %v881, 16
        %v1195 = vrot.slane %v1193, 5
        %v1196 = vsel %vm894, %v1191, %v1195
        %v1197 = vshrl.u32 %v881, 16
        %v1199 = vrot.slane %v1197, 4
        %v1200 = vor.u32 %v1199, %v1195
        %v1201 = vrot.slane %v1200, 4
        %v1203 = vshll.u32 %v882, 16
        %v1205 = vrot.slane %v1203, 5
        %v1206 = vsel %vm894, %v1201, %v1205
        %v1208 = vshrl.u32 %v883, 16
        %v1210 = vrot.slane %v1208, 4
        %v1211 = vshll.u32 %v883, 16
        %v1213 = vrot.slane %v1211, 5
        %v1214 = vor.u32 %v1210, %v1213
        %v1215 = vrot.slane %v1214, 4
        %v1217 = vshll.u32 %v884, 16
        %v1219 = vrot.slane %v1217, 5
        %v1220 = vsel %vm894, %v1215, %v1219
        %v1221 = vshrl.u32 %v884, 16
        %v1223 = vrot.slane %v1221, 4
        %v1224 = vor.u32 %v1223, %v1219
        %v1225 = vrot.slane %v1224, 4
        %v1227 = vshll.u32 %v885, 16
        %v1229 = vrot.slane %v1227, 5
        %v1230 = vsel %vm894, %v1225, %v1229
        %v1232 = vshrl.u32 %v886, 16
        %v1234 = vrot.slane %v1232, 4
        %v1235 = vshll.u32 %v886, 16
        %v1237 = vrot.slane %v1235, 5
        %v1238 = vor.u32 %v1234, %v1237
        %v1239 = vrot.slane %v1238, 4
        %v1241 = vshll.u32 %v887, 16
        %v1243 = vrot.slane %v1241, 5
        %v1244 = vsel %vm894, %v1239, %v1243
        %v1245 = vshrl.u32 %v887, 16
        %v1247 = vrot.slane %v1245, 4
        %v1248 = vor.u32 %v1247, %v1243
        %v1249 = vrot.slane %v1248, 4
        %v1251 = vshll.u32 %v888, 16
        %v1253 = vrot.slane %v1251, 5
        %v1254 = vsel %vm894, %v1249, %v1253
        %v1256 = vshrl.u32 %v889, 16
        %v1258 = vrot.slane %v1256, 4
        %v1259 = vshll.u32 %v889, 16
        %v1261 = vrot.slane %v1259, 5
        %v1262 = vor.u32 %v1258, %v1261
        %v1263 = vrot.slane %v1262, 4
        %v1265 = vshll.u32 %v890, 16
        %v1267 = vrot.slane %v1265, 5
        %v1268 = vsel %vm894, %v1263, %v1267
        %v1269 = vshrl.u32 %v890, 16
        %v1271 = vrot.slane %v1269, 4
        %v1272 = vor.u32 %v1271, %v1267
        %v1273 = vrot.slane %v1272, 4
        %v1275 = vshll.u32 %v891, 16
        %v1277 = vrot.slane %v1275, 5
        %v1278 = vsel %vm894, %v1273, %v1277
        %v1279 = vunpack.c.l.b16 %v908
        %v1280 = vunpack.c.l.b16 %v918
        %v1281 = vunpack.c.l.b16 %v932
        %v1282 = vunpack.c.l.b16 %v942
        %v1283 = vunpack.c.l.b16 %v956
        %v1284 = vunpack.c.l.b16 %v966
        %v1285 = vunpack.c.l.b16 %v980
        %v1286 = vunpack.c.l.b16 %v990
        %v1287 = vunpack.c.l.b16 %v1004
        %v1288 = vunpack.c.l.b16 %v1014
        %v1289 = vunpack.c.l.b16 %v1028
        %v1290 = vunpack.c.l.b16 %v1038
        %v1291 = vunpack.c.l.b16 %v1052
        %v1292 = vunpack.c.l.b16 %v1062
        %v1293 = vunpack.c.l.b16 %v1076
        %v1294 = vunpack.c.l.b16 %v1086
        %v1295 = vunpack.c.l.b16 %v1100
        %v1296 = vunpack.c.l.b16 %v1110
        %v1297 = vunpack.c.l.b16 %v1124
        %v1298 = vunpack.c.l.b16 %v1134
        %v1299 = vunpack.c.l.b16 %v1148
        %v1300 = vunpack.c.l.b16 %v1158
        %v1301 = vunpack.c.l.b16 %v1172
        %v1302 = vunpack.c.l.b16 %v1182
        %v1303 = vunpack.c.l.b16 %v1196
        %v1304 = vunpack.c.l.b16 %v1206
        %v1305 = vunpack.c.l.b16 %v1220
        %v1306 = vunpack.c.l.b16 %v1230
        %v1307 = vunpack.c.l.b16 %v1244
        %v1308 = vunpack.c.l.b16 %v1254
        %v1309 = vunpack.c.l.b16 %v1268
        %v1310 = vunpack.c.l.b16 %v1278
        %v1311 = vpack.c.b16 %v1280, %v1279
        %v1312 = vpack.c.b16 %v1282, %v1281
        %v1313 = vpack.c.b16 %v1284, %v1283
        %v1314 = vpack.c.b16 %v1286, %v1285
        %v1315 = vpack.c.b16 %v1288, %v1287
        %v1316 = vpack.c.b16 %v1290, %v1289
        %v1317 = vpack.c.b16 %v1292, %v1291
        %v1318 = vpack.c.b16 %v1294, %v1293
        %v1319 = vpack.c.b16 %v1296, %v1295
        %v1320 = vpack.c.b16 %v1298, %v1297
        %v1321 = vpack.c.b16 %v1300, %v1299
        %v1322 = vpack.c.b16 %v1302, %v1301
        %v1323 = vpack.c.b16 %v1304, %v1303
        %v1324 = vpack.c.b16 %v1306, %v1305
        %v1325 = vpack.c.b16 %v1308, %v1307
        %v1326 = vpack.c.b16 %v1310, %v1309
        %1327 = vrot.lane.b32.xlu0 %v1311, 4
        %v1328 = vpop.permute.xlu0 %1327
        %1329 = vrot.lane.b32.xlu0 %v1312, 4
        %v1330 = vpop.permute.xlu0 %1329
        %1331 = vrot.lane.b32.xlu0 %v1313, 4
        %v1332 = vpop.permute.xlu0 %1331
        %1333 = vrot.lane.b32.xlu0 %v1314, 4
        %v1334 = vpop.permute.xlu0 %1333
        %1335 = vrot.lane.b32.xlu0 %v1315, 4
        %v1336 = vpop.permute.xlu0 %1335
        %1337 = vrot.lane.b32.xlu0 %v1316, 4
        %v1338 = vpop.permute.xlu0 %1337
        %1339 = vrot.lane.b32.xlu0 %v1317, 4
        %v1340 = vpop.permute.xlu0 %1339
        %1341 = vrot.lane.b32.xlu0 %v1318, 4
        %v1342 = vpop.permute.xlu0 %1341
        %1343 = vrot.lane.b32.xlu0 %v1319, 4
        %v1344 = vpop.permute.xlu0 %1343
        %1345 = vrot.lane.b32.xlu0 %v1320, 4
        %v1346 = vpop.permute.xlu0 %1345
        %1347 = vrot.lane.b32.xlu0 %v1321, 4
        %v1348 = vpop.permute.xlu0 %1347
        %1349 = vrot.lane.b32.xlu0 %v1322, 4
        %v1350 = vpop.permute.xlu0 %1349
        %1351 = vrot.lane.b32.xlu0 %v1323, 4
        %v1352 = vpop.permute.xlu0 %1351
        %1353 = vrot.lane.b32.xlu0 %v1324, 4
        %v1354 = vpop.permute.xlu0 %1353
        %1355 = vrot.lane.b32.xlu0 %v1325, 4
        %v1356 = vpop.permute.xlu0 %1355
        %1357 = vrot.lane.b32.xlu0 %v1326, 4
        %v1358 = vpop.permute.xlu0 %1357
        %vm1375 = vcmask 64544
        %1376 = vst.msk [vmem:[#allocation3] sm:$0xff] %vm1375, %v1328
        %1377 = vst.msk [vmem:[#allocation3 + $0x8] sm:$0xff] %vm1375, %v1330
        %1378 = vst.msk [vmem:[#allocation3 + $0x10] sm:$0xff] %vm1375, %v1332
        %1379 = vst.msk [vmem:[#allocation3 + $0x18] sm:$0xff] %vm1375, %v1334
        %1380 = vst.msk [vmem:[#allocation3 + $0x20] sm:$0xff] %vm1375, %v1336
        %1381 = vst.msk [vmem:[#allocation3 + $0x28] sm:$0xff] %vm1375, %v1338
        %1382 = vst.msk [vmem:[#allocation3 + $0x30] sm:$0xff] %vm1375, %v1340
        %1383 = vst.msk [vmem:[#allocation3 + $0x38] sm:$0xff] %vm1375, %v1342
        %1384 = vst.msk [vmem:[#allocation3 + $0x40] sm:$0xff] %vm1375, %v1344
        %1385 = vst.msk [vmem:[#allocation3 + $0x48] sm:$0xff] %vm1375, %v1346
        %1386 = vst.msk [vmem:[#allocation3 + $0x50] sm:$0xff] %vm1375, %v1348
        %1387 = vst.msk [vmem:[#allocation3 + $0x58] sm:$0xff] %vm1375, %v1350
        %1388 = vst.msk [vmem:[#allocation3 + $0x60] sm:$0xff] %vm1375, %v1352
        %1389 = vst.msk [vmem:[#allocation3 + $0x68] sm:$0xff] %vm1375, %v1354
        %1390 = vst.msk [vmem:[#allocation3 + $0x70] sm:$0xff] %vm1375, %v1356
        %1391 = vst.msk [vmem:[#allocation3 + $0x78] sm:$0xff] %vm1375, %v1358
        %v1392 = vld [vmem:[#allocation2] sm:$0xe]
        %v1393 = vld [vmem:[#allocation2 + $0x4] sm:$0xf]
        %v1394 = vld [vmem:[#allocation2 + $0x8] sm:$0x1]
        %v1395 = vld [vmem:[#allocation2 + $0xc] sm:$0xe]
        %v1396 = vld [vmem:[#allocation2 + $0x10] sm:$0xf]
        %v1397 = vld [vmem:[#allocation2 + $0x14] sm:$0x1]
        %v1398 = vld [vmem:[#allocation2 + $0x18] sm:$0xe]
        %v1399 = vld [vmem:[#allocation2 + $0x1c] sm:$0xf]
        %v1400 = vld [vmem:[#allocation2 + $0x20] sm:$0x1]
        %v1401 = vld [vmem:[#allocation2 + $0x24] sm:$0xe]
        %v1402 = vld [vmem:[#allocation2 + $0x28] sm:$0xf]
        %v1403 = vld [vmem:[#allocation2 + $0x2c] sm:$0x1]
        %v1404 = vld [vmem:[#allocation2 + $0x30] sm:$0xe]
        %v1405 = vld [vmem:[#allocation2 + $0x34] sm:$0xf]
        %v1406 = vld [vmem:[#allocation2 + $0x38] sm:$0x1]
        %v1407 = vld [vmem:[#allocation2 + $0x3c] sm:$0xe]
        %v1408 = vld [vmem:[#allocation2 + $0x40] sm:$0xf]
        %v1409 = vld [vmem:[#allocation2 + $0x44] sm:$0x1]
        %v1410 = vld [vmem:[#allocation2 + $0x48] sm:$0xe]
        %v1411 = vld [vmem:[#allocation2 + $0x4c] sm:$0xf]
        %v1412 = vld [vmem:[#allocation2 + $0x50] sm:$0x1]
        %v1413 = vld [vmem:[#allocation2 + $0x54] sm:$0xe]
        %v1414 = vld [vmem:[#allocation2 + $0x58] sm:$0xf]
        %v1415 = vld [vmem:[#allocation2 + $0x5c] sm:$0x1]
        %v1416 = vld [vmem:[#allocation2 + $0x60] sm:$0xe]
        %v1417 = vld [vmem:[#allocation2 + $0x64] sm:$0xf]
        %v1418 = vld [vmem:[#allocation2 + $0x68] sm:$0x1]
        %v1419 = vld [vmem:[#allocation2 + $0x6c] sm:$0xe]
        %v1420 = vld [vmem:[#allocation2 + $0x70] sm:$0xf]
        %v1421 = vld [vmem:[#allocation2 + $0x74] sm:$0x1]
        %v1422 = vld [vmem:[#allocation2 + $0x78] sm:$0xe]
        %v1423 = vld [vmem:[#allocation2 + $0x7c] sm:$0xf]
        %v1424 = vld [vmem:[#allocation2 + $0x80] sm:$0x1]
        %v1425 = vld [vmem:[#allocation2 + $0x84] sm:$0xe]
        %v1426 = vld [vmem:[#allocation2 + $0x88] sm:$0xf]
        %v1427 = vld [vmem:[#allocation2 + $0x8c] sm:$0x1]
        %v1428 = vld [vmem:[#allocation2 + $0x90] sm:$0xe]
        %v1429 = vld [vmem:[#allocation2 + $0x94] sm:$0xf]
        %v1430 = vld [vmem:[#allocation2 + $0x98] sm:$0x1]
        %v1431 = vld [vmem:[#allocation2 + $0x9c] sm:$0xe]
        %v1432 = vld [vmem:[#allocation2 + $0xa0] sm:$0xf]
        %v1433 = vld [vmem:[#allocation2 + $0xa4] sm:$0x1]
        %v1434 = vld [vmem:[#allocation2 + $0xa8] sm:$0xe]
        %v1435 = vld [vmem:[#allocation2 + $0xac] sm:$0xf]
        %v1436 = vld [vmem:[#allocation2 + $0xb0] sm:$0x1]
        %v1437 = vld [vmem:[#allocation2 + $0xb4] sm:$0xe]
        %v1438 = vld [vmem:[#allocation2 + $0xb8] sm:$0xf]
        %v1439 = vld [vmem:[#allocation2 + $0xbc] sm:$0x1]
        %vm1488 = vcmask 1042432
        %vm1489 = vcmask 1046532
        %vm1490 = vmor %vm1488, %vm1489
        %v1491 = vrot.slane %v1392, 5
        %v1492 = vrot.slane %v1491, 4
        %v1493 = vrot.slane %v1393, 5
        %v1494 = vsel %vm1490, %v1492, %v1493
        %v1495 = vrot.slane %v1493, 4
        %v1496 = vrot.slane %v1394, 5
        %v1497 = vsel %vm1490, %v1495, %v1496
        %v1498 = vrot.slane %v1395, 5
        %v1499 = vrot.slane %v1498, 4
        %v1500 = vrot.slane %v1396, 5
        %v1501 = vsel %vm1490, %v1499, %v1500
        %v1502 = vrot.slane %v1500, 4
        %v1503 = vrot.slane %v1397, 5
        %v1504 = vsel %vm1490, %v1502, %v1503
        %v1505 = vrot.slane %v1398, 5
        %v1506 = vrot.slane %v1505, 4
        %v1507 = vrot.slane %v1399, 5
        %v1508 = vsel %vm1490, %v1506, %v1507
        %v1509 = vrot.slane %v1507, 4
        %v1510 = vrot.slane %v1400, 5
        %v1511 = vsel %vm1490, %v1509, %v1510
        %v1512 = vrot.slane %v1401, 5
        %v1513 = vrot.slane %v1512, 4
        %v1514 = vrot.slane %v1402, 5
        %v1515 = vsel %vm1490, %v1513, %v1514
        %v1516 = vrot.slane %v1514, 4
        %v1517 = vrot.slane %v1403, 5
        %v1518 = vsel %vm1490, %v1516, %v1517
        %v1519 = vrot.slane %v1404, 5
        %v1520 = vrot.slane %v1519, 4
        %v1521 = vrot.slane %v1405, 5
        %v1522 = vsel %vm1490, %v1520, %v1521
        %v1523 = vrot.slane %v1521, 4
        %v1524 = vrot.slane %v1406, 5
        %v1525 = vsel %vm1490, %v1523, %v1524
        %v1526 = vrot.slane %v1407, 5
        %v1527 = vrot.slane %v1526, 4
        %v1528 = vrot.slane %v1408, 5
        %v1529 = vsel %vm1490, %v1527, %v1528
        %v1530 = vrot.slane %v1528, 4
        %v1531 = vrot.slane %v1409, 5
        %v1532 = vsel %vm1490, %v1530, %v1531
        %v1533 = vrot.slane %v1410, 5
        %v1534 = vrot.slane %v1533, 4
        %v1535 = vrot.slane %v1411, 5
        %v1536 = vsel %vm1490, %v1534, %v1535
        %v1537 = vrot.slane %v1535, 4
        %v1538 = vrot.slane %v1412, 5
        %v1539 = vsel %vm1490, %v1537, %v1538
        %v1540 = vrot.slane %v1413, 5
        %v1541 = vrot.slane %v1540, 4
        %v1542 = vrot.slane %v1414, 5
        %v1543 = vsel %vm1490, %v1541, %v1542
        %v1544 = vrot.slane %v1542, 4
        %v1545 = vrot.slane %v1415, 5
        %v1546 = vsel %vm1490, %v1544, %v1545
        %v1547 = vrot.slane %v1416, 5
        %v1548 = vrot.slane %v1547, 4
        %v1549 = vrot.slane %v1417, 5
        %v1550 = vsel %vm1490, %v1548, %v1549
        %v1551 = vrot.slane %v1549, 4
        %v1552 = vrot.slane %v1418, 5
        %v1553 = vsel %vm1490, %v1551, %v1552
        %v1554 = vrot.slane %v1419, 5
        %v1555 = vrot.slane %v1554, 4
        %v1556 = vrot.slane %v1420, 5
        %v1557 = vsel %vm1490, %v1555, %v1556
        %v1558 = vrot.slane %v1556, 4
        %v1559 = vrot.slane %v1421, 5
        %v1560 = vsel %vm1490, %v1558, %v1559
        %v1561 = vrot.slane %v1422, 5
        %v1562 = vrot.slane %v1561, 4
        %v1563 = vrot.slane %v1423, 5
        %v1564 = vsel %vm1490, %v1562, %v1563
        %v1565 = vrot.slane %v1563, 4
        %v1566 = vrot.slane %v1424, 5
        %v1567 = vsel %vm1490, %v1565, %v1566
        %v1568 = vrot.slane %v1425, 5
        %v1569 = vrot.slane %v1568, 4
        %v1570 = vrot.slane %v1426, 5
        %v1571 = vsel %vm1490, %v1569, %v1570
        %v1572 = vrot.slane %v1570, 4
        %v1573 = vrot.slane %v1427, 5
        %v1574 = vsel %vm1490, %v1572, %v1573
        %v1575 = vrot.slane %v1428, 5
        %v1576 = vrot.slane %v1575, 4
        %v1577 = vrot.slane %v1429, 5
        %v1578 = vsel %vm1490, %v1576, %v1577
        %v1579 = vrot.slane %v1577, 4
        %v1580 = vrot.slane %v1430, 5
        %v1581 = vsel %vm1490, %v1579, %v1580
        %v1582 = vrot.slane %v1431, 5
        %v1583 = vrot.slane %v1582, 4
        %v1584 = vrot.slane %v1432, 5
        %v1585 = vsel %vm1490, %v1583, %v1584
        %v1586 = vrot.slane %v1584, 4
        %v1587 = vrot.slane %v1433, 5
        %v1588 = vsel %vm1490, %v1586, %v1587
        %v1589 = vrot.slane %v1434, 5
        %v1590 = vrot.slane %v1589, 4
        %v1591 = vrot.slane %v1435, 5
        %v1592 = vsel %vm1490, %v1590, %v1591
        %v1593 = vrot.slane %v1591, 4
        %v1594 = vrot.slane %v1436, 5
        %v1595 = vsel %vm1490, %v1593, %v1594
        %v1596 = vrot.slane %v1437, 5
        %v1597 = vrot.slane %v1596, 4
        %v1598 = vrot.slane %v1438, 5
        %v1599 = vsel %vm1490, %v1597, %v1598
        %v1600 = vrot.slane %v1598, 4
        %v1601 = vrot.slane %v1439, 5
        %v1602 = vsel %vm1490, %v1600, %v1601
        %v1603 = vunpack.c.l.b16 %v1494
        %v1604 = vunpack.c.l.b16 %v1497
        %v1605 = vunpack.c.l.b16 %v1501
        %v1606 = vunpack.c.l.b16 %v1504
        %v1607 = vunpack.c.l.b16 %v1508
        %v1608 = vunpack.c.l.b16 %v1511
        %v1609 = vunpack.c.l.b16 %v1515
        %v1610 = vunpack.c.l.b16 %v1518
        %v1611 = vunpack.c.l.b16 %v1522
        %v1612 = vunpack.c.l.b16 %v1525
        %v1613 = vunpack.c.l.b16 %v1529
        %v1614 = vunpack.c.l.b16 %v1532
        %v1615 = vunpack.c.l.b16 %v1536
        %v1616 = vunpack.c.l.b16 %v1539
        %v1617 = vunpack.c.l.b16 %v1543
        %v1618 = vunpack.c.l.b16 %v1546
        %v1619 = vunpack.c.l.b16 %v1550
        %v1620 = vunpack.c.l.b16 %v1553
        %v1621 = vunpack.c.l.b16 %v1557
        %v1622 = vunpack.c.l.b16 %v1560
        %v1623 = vunpack.c.l.b16 %v1564
        %v1624 = vunpack.c.l.b16 %v1567
        %v1625 = vunpack.c.l.b16 %v1571
        %v1626 = vunpack.c.l.b16 %v1574
        %v1627 = vunpack.c.l.b16 %v1578
        %v1628 = vunpack.c.l.b16 %v1581
        %v1629 = vunpack.c.l.b16 %v1585
        %v1630 = vunpack.c.l.b16 %v1588
        %v1631 = vunpack.c.l.b16 %v1592
        %v1632 = vunpack.c.l.b16 %v1595
        %v1633 = vunpack.c.l.b16 %v1599
        %v1634 = vunpack.c.l.b16 %v1602
        %v1635 = vpack.c.b16 %v1604, %v1603
        %v1636 = vpack.c.b16 %v1606, %v1605
        %v1637 = vpack.c.b16 %v1608, %v1607
        %v1638 = vpack.c.b16 %v1610, %v1609
        %v1639 = vpack.c.b16 %v1612, %v1611
        %v1640 = vpack.c.b16 %v1614, %v1613
        %v1641 = vpack.c.b16 %v1616, %v1615
        %v1642 = vpack.c.b16 %v1618, %v1617
        %v1643 = vpack.c.b16 %v1620, %v1619
        %v1644 = vpack.c.b16 %v1622, %v1621
        %v1645 = vpack.c.b16 %v1624, %v1623
        %v1646 = vpack.c.b16 %v1626, %v1625
        %v1647 = vpack.c.b16 %v1628, %v1627
        %v1648 = vpack.c.b16 %v1630, %v1629
        %v1649 = vpack.c.b16 %v1632, %v1631
        %v1650 = vpack.c.b16 %v1634, %v1633
        %1651 = vrot.lane.b32.xlu0 %v1635, 8
        %v1652 = vpop.permute.xlu0 %1651
        %1653 = vrot.lane.b32.xlu0 %v1636, 8
        %v1654 = vpop.permute.xlu0 %1653
        %1655 = vrot.lane.b32.xlu0 %v1637, 8
        %v1656 = vpop.permute.xlu0 %1655
        %1657 = vrot.lane.b32.xlu0 %v1638, 8
        %v1658 = vpop.permute.xlu0 %1657
        %1659 = vrot.lane.b32.xlu0 %v1639, 8
        %v1660 = vpop.permute.xlu0 %1659
        %1661 = vrot.lane.b32.xlu0 %v1640, 8
        %v1662 = vpop.permute.xlu0 %1661
        %1663 = vrot.lane.b32.xlu0 %v1641, 8
        %v1664 = vpop.permute.xlu0 %1663
        %1665 = vrot.lane.b32.xlu0 %v1642, 8
        %v1666 = vpop.permute.xlu0 %1665
        %1667 = vrot.lane.b32.xlu0 %v1643, 8
        %v1668 = vpop.permute.xlu0 %1667
        %1669 = vrot.lane.b32.xlu0 %v1644, 8
        %v1670 = vpop.permute.xlu0 %1669
        %1671 = vrot.lane.b32.xlu0 %v1645, 8
        %v1672 = vpop.permute.xlu0 %1671
        %1673 = vrot.lane.b32.xlu0 %v1646, 8
        %v1674 = vpop.permute.xlu0 %1673
        %1675 = vrot.lane.b32.xlu0 %v1647, 8
        %v1676 = vpop.permute.xlu0 %1675
        %1677 = vrot.lane.b32.xlu0 %v1648, 8
        %v1678 = vpop.permute.xlu0 %1677
        %1679 = vrot.lane.b32.xlu0 %v1649, 8
        %v1680 = vpop.permute.xlu0 %1679
        %1681 = vrot.lane.b32.xlu0 %v1650, 8
        %v1682 = vpop.permute.xlu0 %1681
        %vm1699 = vcmask 97344
        %1700 = vst.msk [vmem:[#allocation3] sm:$0xff] %vm1699, %v1652
        %1701 = vst.msk [vmem:[#allocation3 + $0x8] sm:$0xff] %vm1699, %v1654
        %1702 = vst.msk [vmem:[#allocation3 + $0x10] sm:$0xff] %vm1699, %v1656
        %1703 = vst.msk [vmem:[#allocation3 + $0x18] sm:$0xff] %vm1699, %v1658
        %1704 = vst.msk [vmem:[#allocation3 + $0x20] sm:$0xff] %vm1699, %v1660
        %1705 = vst.msk [vmem:[#allocation3 + $0x28] sm:$0xff] %vm1699, %v1662
        %1706 = vst.msk [vmem:[#allocation3 + $0x30] sm:$0xff] %vm1699, %v1664
        %1707 = vst.msk [vmem:[#allocation3 + $0x38] sm:$0xff] %vm1699, %v1666
        %1708 = vst.msk [vmem:[#allocation3 + $0x40] sm:$0xff] %vm1699, %v1668
        %1709 = vst.msk [vmem:[#allocation3 + $0x48] sm:$0xff] %vm1699, %v1670
        %1710 = vst.msk [vmem:[#allocation3 + $0x50] sm:$0xff] %vm1699, %v1672
        %1711 = vst.msk [vmem:[#allocation3 + $0x58] sm:$0xff] %vm1699, %v1674
        %1712 = vst.msk [vmem:[#allocation3 + $0x60] sm:$0xff] %vm1699, %v1676
        %1713 = vst.msk [vmem:[#allocation3 + $0x68] sm:$0xff] %vm1699, %v1678
        %1714 = vst.msk [vmem:[#allocation3 + $0x70] sm:$0xff] %vm1699, %v1680
        %1715 = vst.msk [vmem:[#allocation3 + $0x78] sm:$0xff] %vm1699, %v1682
        %v1716 = vld [vmem:[%s581] sm:$0xf]
        %v1717 = vld [vmem:[%s581 + $0x4] sm:$0xf]
        %v1718 = vld [vmem:[%s581 + $0xc] sm:$0xf]
        %v1719 = vld [vmem:[%s581 + $0x10] sm:$0xf]
        %v1720 = vld [vmem:[%s581 + $0x18] sm:$0xf]
        %v1721 = vld [vmem:[%s581 + $0x1c] sm:$0xf]
        %v1722 = vld [vmem:[%s581 + $0x24] sm:$0xf]
        %v1723 = vld [vmem:[%s581 + $0x28] sm:$0xf]
        %v1724 = vld [vmem:[%s581 + $0x30] sm:$0xf]
        %v1725 = vld [vmem:[%s581 + $0x34] sm:$0xf]
        %v1726 = vld [vmem:[%s581 + $0x3c] sm:$0xf]
        %v1727 = vld [vmem:[%s581 + $0x40] sm:$0xf]
        %v1728 = vld [vmem:[%s581 + $0x48] sm:$0xf]
        %v1729 = vld [vmem:[%s581 + $0x4c] sm:$0xf]
        %v1730 = vld [vmem:[%s581 + $0x54] sm:$0xf]
        %v1731 = vld [vmem:[%s581 + $0x58] sm:$0xf]
        %v1732 = vld [vmem:[%s581 + $0x60] sm:$0xf]
        %v1733 = vld [vmem:[%s581 + $0x64] sm:$0xf]
        %v1734 = vld [vmem:[%s581 + $0x6c] sm:$0xf]
        %v1735 = vld [vmem:[%s581 + $0x70] sm:$0xf]
        %v1736 = vld [vmem:[%s581 + $0x78] sm:$0xf]
        %v1737 = vld [vmem:[%s581 + $0x7c] sm:$0xf]
        %v1738 = vld [vmem:[%s581 + $0x84] sm:$0xf]
        %v1739 = vld [vmem:[%s581 + $0x88] sm:$0xf]
        %v1740 = vld [vmem:[%s581 + $0x90] sm:$0xf]
        %v1741 = vld [vmem:[%s581 + $0x94] sm:$0xf]
        %v1742 = vld [vmem:[%s581 + $0x9c] sm:$0xf]
        %v1743 = vld [vmem:[%s581 + $0xa0] sm:$0xf]
        %v1744 = vld [vmem:[%s581 + $0xa8] sm:$0xf]
        %v1745 = vld [vmem:[%s581 + $0xac] sm:$0xf]
        %v1746 = vld [vmem:[%s581 + $0xb4] sm:$0xf]
        %v1747 = vld [vmem:[%s581 + $0xb8] sm:$0xf]
        %v1780 = vunpack.c.l.b16 %v1716
        %v1781 = vunpack.c.l.b16 %v1717
        %v1782 = vunpack.c.l.b16 %v1718
        %v1783 = vunpack.c.l.b16 %v1719
        %v1784 = vunpack.c.l.b16 %v1720
        %v1785 = vunpack.c.l.b16 %v1721
        %v1786 = vunpack.c.l.b16 %v1722
        %v1787 = vunpack.c.l.b16 %v1723
        %v1788 = vunpack.c.l.b16 %v1724
        %v1789 = vunpack.c.l.b16 %v1725
        %v1790 = vunpack.c.l.b16 %v1726
        %v1791 = vunpack.c.l.b16 %v1727
        %v1792 = vunpack.c.l.b16 %v1728
        %v1793 = vunpack.c.l.b16 %v1729
        %v1794 = vunpack.c.l.b16 %v1730
        %v1795 = vunpack.c.l.b16 %v1731
        %v1796 = vunpack.c.l.b16 %v1732
        %v1797 = vunpack.c.l.b16 %v1733
        %v1798 = vunpack.c.l.b16 %v1734
        %v1799 = vunpack.c.l.b16 %v1735
        %v1800 = vunpack.c.l.b16 %v1736
        %v1801 = vunpack.c.l.b16 %v1737
        %v1802 = vunpack.c.l.b16 %v1738
        %v1803 = vunpack.c.l.b16 %v1739
        %v1804 = vunpack.c.l.b16 %v1740
        %v1805 = vunpack.c.l.b16 %v1741
        %v1806 = vunpack.c.l.b16 %v1742
        %v1807 = vunpack.c.l.b16 %v1743
        %v1808 = vunpack.c.l.b16 %v1744
        %v1809 = vunpack.c.l.b16 %v1745
        %v1810 = vunpack.c.l.b16 %v1746
        %v1811 = vunpack.c.l.b16 %v1747
        %v1812 = vpack.c.b16 %v1781, %v1780
        %v1813 = vpack.c.b16 %v1783, %v1782
        %v1814 = vpack.c.b16 %v1785, %v1784
        %v1815 = vpack.c.b16 %v1787, %v1786
        %v1816 = vpack.c.b16 %v1789, %v1788
        %v1817 = vpack.c.b16 %v1791, %v1790
        %v1818 = vpack.c.b16 %v1793, %v1792
        %v1819 = vpack.c.b16 %v1795, %v1794
        %v1820 = vpack.c.b16 %v1797, %v1796
        %v1821 = vpack.c.b16 %v1799, %v1798
        %v1822 = vpack.c.b16 %v1801, %v1800
        %v1823 = vpack.c.b16 %v1803, %v1802
        %v1824 = vpack.c.b16 %v1805, %v1804
        %v1825 = vpack.c.b16 %v1807, %v1806
        %v1826 = vpack.c.b16 %v1809, %v1808
        %v1827 = vpack.c.b16 %v1811, %v1810
        %1828 = vrot.lane.b32.xlu0 %v1812, 12
        %v1829 = vpop.permute.xlu0 %1828
        %1830 = vrot.lane.b32.xlu0 %v1813, 12
        %v1831 = vpop.permute.xlu0 %1830
        %1832 = vrot.lane.b32.xlu0 %v1814, 12
        %v1833 = vpop.permute.xlu0 %1832
        %1834 = vrot.lane.b32.xlu0 %v1815, 12
        %v1835 = vpop.permute.xlu0 %1834
        %1836 = vrot.lane.b32.xlu0 %v1816, 12
        %v1837 = vpop.permute.xlu0 %1836
        %1838 = vrot.lane.b32.xlu0 %v1817, 12
        %v1839 = vpop.permute.xlu0 %1838
        %1840 = vrot.lane.b32.xlu0 %v1818, 12
        %v1841 = vpop.permute.xlu0 %1840
        %1842 = vrot.lane.b32.xlu0 %v1819, 12
        %v1843 = vpop.permute.xlu0 %1842
        %1844 = vrot.lane.b32.xlu0 %v1820, 12
        %v1845 = vpop.permute.xlu0 %1844
        %1846 = vrot.lane.b32.xlu0 %v1821, 12
        %v1847 = vpop.permute.xlu0 %1846
        %1848 = vrot.lane.b32.xlu0 %v1822, 12
        %v1849 = vpop.permute.xlu0 %1848
        %1850 = vrot.lane.b32.xlu0 %v1823, 12
        %v1851 = vpop.permute.xlu0 %1850
        %1852 = vrot.lane.b32.xlu0 %v1824, 12
        %v1853 = vpop.permute.xlu0 %1852
        %1854 = vrot.lane.b32.xlu0 %v1825, 12
        %v1855 = vpop.permute.xlu0 %1854
        %1856 = vrot.lane.b32.xlu0 %v1826, 12
        %v1857 = vpop.permute.xlu0 %1856
        %1858 = vrot.lane.b32.xlu0 %v1827, 12
        %v1859 = vpop.permute.xlu0 %1858
        %vm1876 = vcmask 130144
        %1877 = vst.msk [vmem:[#allocation3] sm:$0xff] %vm1876, %v1829
        %1878 = vst.msk [vmem:[#allocation3 + $0x8] sm:$0xff] %vm1876, %v1831
        %1879 = vst.msk [vmem:[#allocation3 + $0x10] sm:$0xff] %vm1876, %v1833
        %1880 = vst.msk [vmem:[#allocation3 + $0x18] sm:$0xff] %vm1876, %v1835
        %1881 = vst.msk [vmem:[#allocation3 + $0x20] sm:$0xff] %vm1876, %v1837
        %1882 = vst.msk [vmem:[#allocation3 + $0x28] sm:$0xff] %vm1876, %v1839
        %1883 = vst.msk [vmem:[#allocation3 + $0x30] sm:$0xff] %vm1876, %v1841
        %1884 = vst.msk [vmem:[#allocation3 + $0x38] sm:$0xff] %vm1876, %v1843
        %1885 = vst.msk [vmem:[#allocation3 + $0x40] sm:$0xff] %vm1876, %v1845
        %1886 = vst.msk [vmem:[#allocation3 + $0x48] sm:$0xff] %vm1876, %v1847
        %1887 = vst.msk [vmem:[#allocation3 + $0x50] sm:$0xff] %vm1876, %v1849
        %1888 = vst.msk [vmem:[#allocation3 + $0x58] sm:$0xff] %vm1876, %v1851
        %1889 = vst.msk [vmem:[#allocation3 + $0x60] sm:$0xff] %vm1876, %v1853
        %1890 = vst.msk [vmem:[#allocation3 + $0x68] sm:$0xff] %vm1876, %v1855
        %1891 = vst.msk [vmem:[#allocation3 + $0x70] sm:$0xff] %vm1876, %v1857
        %1892 = vst.msk [vmem:[#allocation3 + $0x78] sm:$0xff] %vm1876, %v1859
        %v1893 = vld [vmem:[%s581] sm:$0xf]
        %v1894 = vld [vmem:[%s581 + $0x4] sm:$0xf]
        %v1895 = vld [vmem:[%s581 + $0x8] sm:$0x1]
        %v1896 = vld [vmem:[%s581 + $0xc] sm:$0xf]
        %v1897 = vld [vmem:[%s581 + $0x10] sm:$0xf]
        %v1898 = vld [vmem:[%s581 + $0x14] sm:$0x1]
        %v1899 = vld [vmem:[%s581 + $0x18] sm:$0xf]
        %v1900 = vld [vmem:[%s581 + $0x1c] sm:$0xf]
        %v1901 = vld [vmem:[%s581 + $0x20] sm:$0x1]
        %v1902 = vld [vmem:[%s581 + $0x24] sm:$0xf]
        %v1903 = vld [vmem:[%s581 + $0x28] sm:$0xf]
        %v1904 = vld [vmem:[%s581 + $0x2c] sm:$0x1]
        %v1905 = vld [vmem:[%s581 + $0x30] sm:$0xf]
        %v1906 = vld [vmem:[%s581 + $0x34] sm:$0xf]
        %v1907 = vld [vmem:[%s581 + $0x38] sm:$0x1]
        %v1908 = vld [vmem:[%s581 + $0x3c] sm:$0xf]
        %v1909 = vld [vmem:[%s581 + $0x40] sm:$0xf]
        %v1910 = vld [vmem:[%s581 + $0x44] sm:$0x1]
        %v1911 = vld [vmem:[%s581 + $0x48] sm:$0xf]
        %v1912 = vld [vmem:[%s581 + $0x4c] sm:$0xf]
        %v1913 = vld [vmem:[%s581 + $0x50] sm:$0x1]
        %v1914 = vld [vmem:[%s581 + $0x54] sm:$0xf]
        %v1915 = vld [vmem:[%s581 + $0x58] sm:$0xf]
        %v1916 = vld [vmem:[%s581 + $0x5c] sm:$0x1]
        %v1917 = vld [vmem:[%s581 + $0x60] sm:$0xf]
        %v1918 = vld [vmem:[%s581 + $0x64] sm:$0xf]
        %v1919 = vld [vmem:[%s581 + $0x68] sm:$0x1]
        %v1920 = vld [vmem:[%s581 + $0x6c] sm:$0xf]
        %v1921 = vld [vmem:[%s581 + $0x70] sm:$0xf]
        %v1922 = vld [vmem:[%s581 + $0x74] sm:$0x1]
        %v1923 = vld [vmem:[%s581 + $0x78] sm:$0xf]
        %v1924 = vld [vmem:[%s581 + $0x7c] sm:$0xf]
        %v1925 = vld [vmem:[%s581 + $0x80] sm:$0x1]
        %v1926 = vld [vmem:[%s581 + $0x84] sm:$0xf]
        %v1927 = vld [vmem:[%s581 + $0x88] sm:$0xf]
        %v1928 = vld [vmem:[%s581 + $0x8c] sm:$0x1]
        %v1929 = vld [vmem:[%s581 + $0x90] sm:$0xf]
        %v1930 = vld [vmem:[%s581 + $0x94] sm:$0xf]
        %v1931 = vld [vmem:[%s581 + $0x98] sm:$0x1]
        %v1932 = vld [vmem:[%s581 + $0x9c] sm:$0xf]
        %v1933 = vld [vmem:[%s581 + $0xa0] sm:$0xf]
        %v1934 = vld [vmem:[%s581 + $0xa4] sm:$0x1]
        %v1935 = vld [vmem:[%s581 + $0xa8] sm:$0xf]
        %v1936 = vld [vmem:[%s581 + $0xac] sm:$0xf]
        %v1937 = vld [vmem:[%s581 + $0xb0] sm:$0x1]
        %v1938 = vld [vmem:[%s581 + $0xb4] sm:$0xf]
        %v1939 = vld [vmem:[%s581 + $0xb8] sm:$0xf]
        %v1940 = vld [vmem:[%s581 + $0xbc] sm:$0x1]
        %v1942 = vshrl.u32 %v1893, 16
        %v1944 = vrot.slane %v1942, 4
        %v1945 = vshll.u32 %v1893, 16
        %v1947 = vrot.slane %v1945, 5
        %v1948 = vor.u32 %v1944, %v1947
        %v1949 = vrot.slane %v1948, 4
        %v1951 = vshll.u32 %v1894, 16
        %v1953 = vrot.slane %v1951, 5
        %v1954 = vsel %vm894, %v1949, %v1953
        %v1955 = vshrl.u32 %v1894, 16
        %v1957 = vrot.slane %v1955, 4
        %v1958 = vor.u32 %v1957, %v1953
        %v1959 = vrot.slane %v1958, 4
        %v1961 = vshll.u32 %v1895, 16
        %v1963 = vrot.slane %v1961, 5
        %v1964 = vsel %vm894, %v1959, %v1963
        %v1966 = vshrl.u32 %v1896, 16
        %v1968 = vrot.slane %v1966, 4
        %v1969 = vshll.u32 %v1896, 16
        %v1971 = vrot.slane %v1969, 5
        %v1972 = vor.u32 %v1968, %v1971
        %v1973 = vrot.slane %v1972, 4
        %v1975 = vshll.u32 %v1897, 16
        %v1977 = vrot.slane %v1975, 5
        %v1978 = vsel %vm894, %v1973, %v1977
        %v1979 = vshrl.u32 %v1897, 16
        %v1981 = vrot.slane %v1979, 4
        %v1982 = vor.u32 %v1981, %v1977
        %v1983 = vrot.slane %v1982, 4
        %v1985 = vshll.u32 %v1898, 16
        %v1987 = vrot.slane %v1985, 5
        %v1988 = vsel %vm894, %v1983, %v1987
        %v1990 = vshrl.u32 %v1899, 16
        %v1992 = vrot.slane %v1990, 4
        %v1993 = vshll.u32 %v1899, 16
        %v1995 = vrot.slane %v1993, 5
        %v1996 = vor.u32 %v1992, %v1995
        %v1997 = vrot.slane %v1996, 4
        %v1999 = vshll.u32 %v1900, 16
        %v2001 = vrot.slane %v1999, 5
        %v2002 = vsel %vm894, %v1997, %v2001
        %v2003 = vshrl.u32 %v1900, 16
        %v2005 = vrot.slane %v2003, 4
        %v2006 = vor.u32 %v2005, %v2001
        %v2007 = vrot.slane %v2006, 4
        %v2009 = vshll.u32 %v1901, 16
        %v2011 = vrot.slane %v2009, 5
        %v2012 = vsel %vm894, %v2007, %v2011
        %v2014 = vshrl.u32 %v1902, 16
        %v2016 = vrot.slane %v2014, 4
        %v2017 = vshll.u32 %v1902, 16
        %v2019 = vrot.slane %v2017, 5
        %v2020 = vor.u32 %v2016, %v2019
        %v2021 = vrot.slane %v2020, 4
        %v2023 = vshll.u32 %v1903, 16
        %v2025 = vrot.slane %v2023, 5
        %v2026 = vsel %vm894, %v2021, %v2025
        %v2027 = vshrl.u32 %v1903, 16
        %v2029 = vrot.slane %v2027, 4
        %v2030 = vor.u32 %v2029, %v2025
        %v2031 = vrot.slane %v2030, 4
        %v2033 = vshll.u32 %v1904, 16
        %v2035 = vrot.slane %v2033, 5
        %v2036 = vsel %vm894, %v2031, %v2035
        %v2038 = vshrl.u32 %v1905, 16
        %v2040 = vrot.slane %v2038, 4
        %v2041 = vshll.u32 %v1905, 16
        %v2043 = vrot.slane %v2041, 5
        %v2044 = vor.u32 %v2040, %v2043
        %v2045 = vrot.slane %v2044, 4
        %v2047 = vshll.u32 %v1906, 16
        %v2049 = vrot.slane %v2047, 5
        %v2050 = vsel %vm894, %v2045, %v2049
        %v2051 = vshrl.u32 %v1906, 16
        %v2053 = vrot.slane %v2051, 4
        %v2054 = vor.u32 %v2053, %v2049
        %v2055 = vrot.slane %v2054, 4
        %v2057 = vshll.u32 %v1907, 16
        %v2059 = vrot.slane %v2057, 5
        %v2060 = vsel %vm894, %v2055, %v2059
        %v2062 = vshrl.u32 %v1908, 16
        %v2064 = vrot.slane %v2062, 4
        %v2065 = vshll.u32 %v1908, 16
        %v2067 = vrot.slane %v2065, 5
        %v2068 = vor.u32 %v2064, %v2067
        %v2069 = vrot.slane %v2068, 4
        %v2071 = vshll.u32 %v1909, 16
        %v2073 = vrot.slane %v2071, 5
        %v2074 = vsel %vm894, %v2069, %v2073
        %v2075 = vshrl.u32 %v1909, 16
        %v2077 = vrot.slane %v2075, 4
        %v2078 = vor.u32 %v2077, %v2073
        %v2079 = vrot.slane %v2078, 4
        %v2081 = vshll.u32 %v1910, 16
        %v2083 = vrot.slane %v2081, 5
        %v2084 = vsel %vm894, %v2079, %v2083
        %v2086 = vshrl.u32 %v1911, 16
        %v2088 = vrot.slane %v2086, 4
        %v2089 = vshll.u32 %v1911, 16
        %v2091 = vrot.slane %v2089, 5
        %v2092 = vor.u32 %v2088, %v2091
        %v2093 = vrot.slane %v2092, 4
        %v2095 = vshll.u32 %v1912, 16
        %v2097 = vrot.slane %v2095, 5
        %v2098 = vsel %vm894, %v2093, %v2097
        %v2099 = vshrl.u32 %v1912, 16
        %v2101 = vrot.slane %v2099, 4
        %v2102 = vor.u32 %v2101, %v2097
        %v2103 = vrot.slane %v2102, 4
        %v2105 = vshll.u32 %v1913, 16
        %v2107 = vrot.slane %v2105, 5
        %v2108 = vsel %vm894, %v2103, %v2107
        %v2110 = vshrl.u32 %v1914, 16
        %v2112 = vrot.slane %v2110, 4
        %v2113 = vshll.u32 %v1914, 16
        %v2115 = vrot.slane %v2113, 5
        %v2116 = vor.u32 %v2112, %v2115
        %v2117 = vrot.slane %v2116, 4
        %v2119 = vshll.u32 %v1915, 16
        %v2121 = vrot.slane %v2119, 5
        %v2122 = vsel %vm894, %v2117, %v2121
        %v2123 = vshrl.u32 %v1915, 16
        %v2125 = vrot.slane %v2123, 4
        %v2126 = vor.u32 %v2125, %v2121
        %v2127 = vrot.slane %v2126, 4
        %v2129 = vshll.u32 %v1916, 16
        %v2131 = vrot.slane %v2129, 5
        %v2132 = vsel %vm894, %v2127, %v2131
        %v2134 = vshrl.u32 %v1917, 16
        %v2136 = vrot.slane %v2134, 4
        %v2137 = vshll.u32 %v1917, 16
        %v2139 = vrot.slane %v2137, 5
        %v2140 = vor.u32 %v2136, %v2139
        %v2141 = vrot.slane %v2140, 4
        %v2143 = vshll.u32 %v1918, 16
        %v2145 = vrot.slane %v2143, 5
        %v2146 = vsel %vm894, %v2141, %v2145
        %v2147 = vshrl.u32 %v1918, 16
        %v2149 = vrot.slane %v2147, 4
        %v2150 = vor.u32 %v2149, %v2145
        %v2151 = vrot.slane %v2150, 4
        %v2153 = vshll.u32 %v1919, 16
        %v2155 = vrot.slane %v2153, 5
        %v2156 = vsel %vm894, %v2151, %v2155
        %v2158 = vshrl.u32 %v1920, 16
        %v2160 = vrot.slane %v2158, 4
        %v2161 = vshll.u32 %v1920, 16
        %v2163 = vrot.slane %v2161, 5
        %v2164 = vor.u32 %v2160, %v2163
        %v2165 = vrot.slane %v2164, 4
        %v2167 = vshll.u32 %v1921, 16
        %v2169 = vrot.slane %v2167, 5
        %v2170 = vsel %vm894, %v2165, %v2169
        %v2171 = vshrl.u32 %v1921, 16
        %v2173 = vrot.slane %v2171, 4
        %v2174 = vor.u32 %v2173, %v2169
        %v2175 = vrot.slane %v2174, 4
        %v2177 = vshll.u32 %v1922, 16
        %v2179 = vrot.slane %v2177, 5
        %v2180 = vsel %vm894, %v2175, %v2179
        %v2182 = vshrl.u32 %v1923, 16
        %v2184 = vrot.slane %v2182, 4
        %v2185 = vshll.u32 %v1923, 16
        %v2187 = vrot.slane %v2185, 5
        %v2188 = vor.u32 %v2184, %v2187
        %v2189 = vrot.slane %v2188, 4
        %v2191 = vshll.u32 %v1924, 16
        %v2193 = vrot.slane %v2191, 5
        %v2194 = vsel %vm894, %v2189, %v2193
        %v2195 = vshrl.u32 %v1924, 16
        %v2197 = vrot.slane %v2195, 4
        %v2198 = vor.u32 %v2197, %v2193
        %v2199 = vrot.slane %v2198, 4
        %v2201 = vshll.u32 %v1925, 16
        %v2203 = vrot.slane %v2201, 5
        %v2204 = vsel %vm894, %v2199, %v2203
        %v2206 = vshrl.u32 %v1926, 16
        %v2208 = vrot.slane %v2206, 4
        %v2209 = vshll.u32 %v1926, 16
        %v2211 = vrot.slane %v2209, 5
        %v2212 = vor.u32 %v2208, %v2211
        %v2213 = vrot.slane %v2212, 4
        %v2215 = vshll.u32 %v1927, 16
        %v2217 = vrot.slane %v2215, 5
        %v2218 = vsel %vm894, %v2213, %v2217
        %v2219 = vshrl.u32 %v1927, 16
        %v2221 = vrot.slane %v2219, 4
        %v2222 = vor.u32 %v2221, %v2217
        %v2223 = vrot.slane %v2222, 4
        %v2225 = vshll.u32 %v1928, 16
        %v2227 = vrot.slane %v2225, 5
        %v2228 = vsel %vm894, %v2223, %v2227
        %v2230 = vshrl.u32 %v1929, 16
        %v2232 = vrot.slane %v2230, 4
        %v2233 = vshll.u32 %v1929, 16
        %v2235 = vrot.slane %v2233, 5
        %v2236 = vor.u32 %v2232, %v2235
        %v2237 = vrot.slane %v2236, 4
        %v2239 = vshll.u32 %v1930, 16
        %v2241 = vrot.slane %v2239, 5
        %v2242 = vsel %vm894, %v2237, %v2241
        %v2243 = vshrl.u32 %v1930, 16
        %v2245 = vrot.slane %v2243, 4
        %v2246 = vor.u32 %v2245, %v2241
        %v2247 = vrot.slane %v2246, 4
        %v2249 = vshll.u32 %v1931, 16
        %v2251 = vrot.slane %v2249, 5
        %v2252 = vsel %vm894, %v2247, %v2251
        %v2254 = vshrl.u32 %v1932, 16
        %v2256 = vrot.slane %v2254, 4
        %v2257 = vshll.u32 %v1932, 16
        %v2259 = vrot.slane %v2257, 5
        %v2260 = vor.u32 %v2256, %v2259
        %v2261 = vrot.slane %v2260, 4
        %v2263 = vshll.u32 %v1933, 16
        %v2265 = vrot.slane %v2263, 5
        %v2266 = vsel %vm894, %v2261, %v2265
        %v2267 = vshrl.u32 %v1933, 16
        %v2269 = vrot.slane %v2267, 4
        %v2270 = vor.u32 %v2269, %v2265
        %v2271 = vrot.slane %v2270, 4
        %v2273 = vshll.u32 %v1934, 16
        %v2275 = vrot.slane %v2273, 5
        %v2276 = vsel %vm894, %v2271, %v2275
        %v2278 = vshrl.u32 %v1935, 16
        %v2280 = vrot.slane %v2278, 4
        %v2281 = vshll.u32 %v1935, 16
        %v2283 = vrot.slane %v2281, 5
        %v2284 = vor.u32 %v2280, %v2283
        %v2285 = vrot.slane %v2284, 4
        %v2287 = vshll.u32 %v1936, 16
        %v2289 = vrot.slane %v2287, 5
        %v2290 = vsel %vm894, %v2285, %v2289
        %v2291 = vshrl.u32 %v1936, 16
        %v2293 = vrot.slane %v2291, 4
        %v2294 = vor.u32 %v2293, %v2289
        %v2295 = vrot.slane %v2294, 4
        %v2297 = vshll.u32 %v1937, 16
        %v2299 = vrot.slane %v2297, 5
        %v2300 = vsel %vm894, %v2295, %v2299
        %v2302 = vshrl.u32 %v1938, 16
        %v2304 = vrot.slane %v2302, 4
        %v2305 = vshll.u32 %v1938, 16
        %v2307 = vrot.slane %v2305, 5
        %v2308 = vor.u32 %v2304, %v2307
        %v2309 = vrot.slane %v2308, 4
        %v2311 = vshll.u32 %v1939, 16
        %v2313 = vrot.slane %v2311, 5
        %v2314 = vsel %vm894, %v2309, %v2313
        %v2315 = vshrl.u32 %v1939, 16
        %v2317 = vrot.slane %v2315, 4
        %v2318 = vor.u32 %v2317, %v2313
        %v2319 = vrot.slane %v2318, 4
        %v2321 = vshll.u32 %v1940, 16
        %v2323 = vrot.slane %v2321, 5
        %v2324 = vsel %vm894, %v2319, %v2323
        %v2325 = vunpack.c.l.b16 %v1954
        %v2326 = vunpack.c.l.b16 %v1964
        %v2327 = vunpack.c.l.b16 %v1978
        %v2328 = vunpack.c.l.b16 %v1988
        %v2329 = vunpack.c.l.b16 %v2002
        %v2330 = vunpack.c.l.b16 %v2012
        %v2331 = vunpack.c.l.b16 %v2026
        %v2332 = vunpack.c.l.b16 %v2036
        %v2333 = vunpack.c.l.b16 %v2050
        %v2334 = vunpack.c.l.b16 %v2060
        %v2335 = vunpack.c.l.b16 %v2074
        %v2336 = vunpack.c.l.b16 %v2084
        %v2337 = vunpack.c.l.b16 %v2098
        %v2338 = vunpack.c.l.b16 %v2108
        %v2339 = vunpack.c.l.b16 %v2122
        %v2340 = vunpack.c.l.b16 %v2132
        %v2341 = vunpack.c.l.b16 %v2146
        %v2342 = vunpack.c.l.b16 %v2156
        %v2343 = vunpack.c.l.b16 %v2170
        %v2344 = vunpack.c.l.b16 %v2180
        %v2345 = vunpack.c.l.b16 %v2194
        %v2346 = vunpack.c.l.b16 %v2204
        %v2347 = vunpack.c.l.b16 %v2218
        %v2348 = vunpack.c.l.b16 %v2228
        %v2349 = vunpack.c.l.b16 %v2242
        %v2350 = vunpack.c.l.b16 %v2252
        %v2351 = vunpack.c.l.b16 %v2266
        %v2352 = vunpack.c.l.b16 %v2276
        %v2353 = vunpack.c.l.b16 %v2290
        %v2354 = vunpack.c.l.b16 %v2300
        %v2355 = vunpack.c.l.b16 %v2314
        %v2356 = vunpack.c.l.b16 %v2324
        %v2357 = vpack.c.b16 %v2326, %v2325
        %v2358 = vpack.c.b16 %v2328, %v2327
        %v2359 = vpack.c.b16 %v2330, %v2329
        %v2360 = vpack.c.b16 %v2332, %v2331
        %v2361 = vpack.c.b16 %v2334, %v2333
        %v2362 = vpack.c.b16 %v2336, %v2335
        %v2363 = vpack.c.b16 %v2338, %v2337
        %v2364 = vpack.c.b16 %v2340, %v2339
        %v2365 = vpack.c.b16 %v2342, %v2341
        %v2366 = vpack.c.b16 %v2344, %v2343
        %v2367 = vpack.c.b16 %v2346, %v2345
        %v2368 = vpack.c.b16 %v2348, %v2347
        %v2369 = vpack.c.b16 %v2350, %v2349
        %v2370 = vpack.c.b16 %v2352, %v2351
        %v2371 = vpack.c.b16 %v2354, %v2353
        %v2372 = vpack.c.b16 %v2356, %v2355
        %2373 = vrot.lane.b32.xlu0 %v2357, 16
        %v2374 = vpop.permute.xlu0 %2373
        %2375 = vrot.lane.b32.xlu0 %v2358, 16
        %v2376 = vpop.permute.xlu0 %2375
        %2377 = vrot.lane.b32.xlu0 %v2359, 16
        %v2378 = vpop.permute.xlu0 %2377
        %2379 = vrot.lane.b32.xlu0 %v2360, 16
        %v2380 = vpop.permute.xlu0 %2379
        %2381 = vrot.lane.b32.xlu0 %v2361, 16
        %v2382 = vpop.permute.xlu0 %2381
        %2383 = vrot.lane.b32.xlu0 %v2362, 16
        %v2384 = vpop.permute.xlu0 %2383
        %2385 = vrot.lane.b32.xlu0 %v2363, 16
        %v2386 = vpop.permute.xlu0 %2385
        %2387 = vrot.lane.b32.xlu0 %v2364, 16
        %v2388 = vpop.permute.xlu0 %2387
        %2389 = vrot.lane.b32.xlu0 %v2365, 16
        %v2390 = vpop.permute.xlu0 %2389
        %2391 = vrot.lane.b32.xlu0 %v2366, 16
        %v2392 = vpop.permute.xlu0 %2391
        %2393 = vrot.lane.b32.xlu0 %v2367, 16
        %v2394 = vpop.permute.xlu0 %2393
        %2395 = vrot.lane.b32.xlu0 %v2368, 16
        %v2396 = vpop.permute.xlu0 %2395
        %2397 = vrot.lane.b32.xlu0 %v2369, 16
        %v2398 = vpop.permute.xlu0 %2397
        %2399 = vrot.lane.b32.xlu0 %v2370, 16
        %v2400 = vpop.permute.xlu0 %2399
        %2401 = vrot.lane.b32.xlu0 %v2371, 16
        %v2402 = vpop.permute.xlu0 %2401
        %2403 = vrot.lane.b32.xlu0 %v2372, 16
        %v2404 = vpop.permute.xlu0 %2403
        %vm2421 = vcmask 162944
        %2422 = vst.msk [vmem:[#allocation3] sm:$0xff] %vm2421, %v2374
        %2423 = vst.msk [vmem:[#allocation3 + $0x8] sm:$0xff] %vm2421, %v2376
        %2424 = vst.msk [vmem:[#allocation3 + $0x10] sm:$0xff] %vm2421, %v2378
        %2425 = vst.msk [vmem:[#allocation3 + $0x18] sm:$0xff] %vm2421, %v2380
        %2426 = vst.msk [vmem:[#allocation3 + $0x20] sm:$0xff] %vm2421, %v2382
        %2427 = vst.msk [vmem:[#allocation3 + $0x28] sm:$0xff] %vm2421, %v2384
        %2428 = vst.msk [vmem:[#allocation3 + $0x30] sm:$0xff] %vm2421, %v2386
        %2429 = vst.msk [vmem:[#allocation3 + $0x38] sm:$0xff] %vm2421, %v2388
        %2430 = vst.msk [vmem:[#allocation3 + $0x40] sm:$0xff] %vm2421, %v2390
        %2431 = vst.msk [vmem:[#allocation3 + $0x48] sm:$0xff] %vm2421, %v2392
        %2432 = vst.msk [vmem:[#allocation3 + $0x50] sm:$0xff] %vm2421, %v2394
        %2433 = vst.msk [vmem:[#allocation3 + $0x58] sm:$0xff] %vm2421, %v2396
        %2434 = vst.msk [vmem:[#allocation3 + $0x60] sm:$0xff] %vm2421, %v2398
        %2435 = vst.msk [vmem:[#allocation3 + $0x68] sm:$0xff] %vm2421, %v2400
        %2436 = vst.msk [vmem:[#allocation3 + $0x70] sm:$0xff] %vm2421, %v2402
        %2437 = vst.msk [vmem:[#allocation3 + $0x78] sm:$0xff] %vm2421, %v2404
        %v2438 = vld [vmem:[%s581] sm:$0xe]
        %v2439 = vld [vmem:[%s581 + $0x4] sm:$0xf]
        %v2440 = vld [vmem:[%s581 + $0x8] sm:$0x1]
        %v2441 = vld [vmem:[%s581 + $0xc] sm:$0xe]
        %v2442 = vld [vmem:[%s581 + $0x10] sm:$0xf]
        %v2443 = vld [vmem:[%s581 + $0x14] sm:$0x1]
        %v2444 = vld [vmem:[%s581 + $0x18] sm:$0xe]
        %v2445 = vld [vmem:[%s581 + $0x1c] sm:$0xf]
        %v2446 = vld [vmem:[%s581 + $0x20] sm:$0x1]
        %v2447 = vld [vmem:[%s581 + $0x24] sm:$0xe]
        %v2448 = vld [vmem:[%s581 + $0x28] sm:$0xf]
        %v2449 = vld [vmem:[%s581 + $0x2c] sm:$0x1]
        %v2450 = vld [vmem:[%s581 + $0x30] sm:$0xe]
        %v2451 = vld [vmem:[%s581 + $0x34] sm:$0xf]
        %v2452 = vld [vmem:[%s581 + $0x38] sm:$0x1]
        %v2453 = vld [vmem:[%s581 + $0x3c] sm:$0xe]
        %v2454 = vld [vmem:[%s581 + $0x40] sm:$0xf]
        %v2455 = vld [vmem:[%s581 + $0x44] sm:$0x1]
        %v2456 = vld [vmem:[%s581 + $0x48] sm:$0xe]
        %v2457 = vld [vmem:[%s581 + $0x4c] sm:$0xf]
        %v2458 = vld [vmem:[%s581 + $0x50] sm:$0x1]
        %v2459 = vld [vmem:[%s581 + $0x54] sm:$0xe]
        %v2460 = vld [vmem:[%s581 + $0x58] sm:$0xf]
        %v2461 = vld [vmem:[%s581 + $0x5c] sm:$0x1]
        %v2462 = vld [vmem:[%s581 + $0x60] sm:$0xe]
        %v2463 = vld [vmem:[%s581 + $0x64] sm:$0xf]
        %v2464 = vld [vmem:[%s581 + $0x68] sm:$0x1]
        %v2465 = vld [vmem:[%s581 + $0x6c] sm:$0xe]
        %v2466 = vld [vmem:[%s581 + $0x70] sm:$0xf]
        %v2467 = vld [vmem:[%s581 + $0x74] sm:$0x1]
        %v2468 = vld [vmem:[%s581 + $0x78] sm:$0xe]
        %v2469 = vld [vmem:[%s581 + $0x7c] sm:$0xf]
        %v2470 = vld [vmem:[%s581 + $0x80] sm:$0x1]
        %v2471 = vld [vmem:[%s581 + $0x84] sm:$0xe]
        %v2472 = vld [vmem:[%s581 + $0x88] sm:$0xf]
        %v2473 = vld [vmem:[%s581 + $0x8c] sm:$0x1]
        %v2474 = vld [vmem:[%s581 + $0x90] sm:$0xe]
        %v2475 = vld [vmem:[%s581 + $0x94] sm:$0xf]
        %v2476 = vld [vmem:[%s581 + $0x98] sm:$0x1]
        %v2477 = vld [vmem:[%s581 + $0x9c] sm:$0xe]
        %v2478 = vld [vmem:[%s581 + $0xa0] sm:$0xf]
        %v2479 = vld [vmem:[%s581 + $0xa4] sm:$0x1]
        %v2480 = vld [vmem:[%s581 + $0xa8] sm:$0xe]
        %v2481 = vld [vmem:[%s581 + $0xac] sm:$0xf]
        %v2482 = vld [vmem:[%s581 + $0xb0] sm:$0x1]
        %v2483 = vld [vmem:[%s581 + $0xb4] sm:$0xe]
        %v2484 = vld [vmem:[%s581 + $0xb8] sm:$0xf]
        %v2485 = vld [vmem:[%s581 + $0xbc] sm:$0x1]
        %v2534 = vrot.slane %v2438, 5
        %v2535 = vrot.slane %v2534, 4
        %v2536 = vrot.slane %v2439, 5
        %v2537 = vsel %vm1490, %v2535, %v2536
        %v2538 = vrot.slane %v2536, 4
        %v2539 = vrot.slane %v2440, 5
        %v2540 = vsel %vm1490, %v2538, %v2539
        %v2541 = vrot.slane %v2441, 5
        %v2542 = vrot.slane %v2541, 4
        %v2543 = vrot.slane %v2442, 5
        %v2544 = vsel %vm1490, %v2542, %v2543
        %v2545 = vrot.slane %v2543, 4
        %v2546 = vrot.slane %v2443, 5
        %v2547 = vsel %vm1490, %v2545, %v2546
        %v2548 = vrot.slane %v2444, 5
        %v2549 = vrot.slane %v2548, 4
        %v2550 = vrot.slane %v2445, 5
        %v2551 = vsel %vm1490, %v2549, %v2550
        %v2552 = vrot.slane %v2550, 4
        %v2553 = vrot.slane %v2446, 5
        %v2554 = vsel %vm1490, %v2552, %v2553
        %v2555 = vrot.slane %v2447, 5
        %v2556 = vrot.slane %v2555, 4
        %v2557 = vrot.slane %v2448, 5
        %v2558 = vsel %vm1490, %v2556, %v2557
        %v2559 = vrot.slane %v2557, 4
        %v2560 = vrot.slane %v2449, 5
        %v2561 = vsel %vm1490, %v2559, %v2560
        %v2562 = vrot.slane %v2450, 5
        %v2563 = vrot.slane %v2562, 4
        %v2564 = vrot.slane %v2451, 5
        %v2565 = vsel %vm1490, %v2563, %v2564
        %v2566 = vrot.slane %v2564, 4
        %v2567 = vrot.slane %v2452, 5
        %v2568 = vsel %vm1490, %v2566, %v2567
        %v2569 = vrot.slane %v2453, 5
        %v2570 = vrot.slane %v2569, 4
        %v2571 = vrot.slane %v2454, 5
        %v2572 = vsel %vm1490, %v2570, %v2571
        %v2573 = vrot.slane %v2571, 4
        %v2574 = vrot.slane %v2455, 5
        %v2575 = vsel %vm1490, %v2573, %v2574
        %v2576 = vrot.slane %v2456, 5
        %v2577 = vrot.slane %v2576, 4
        %v2578 = vrot.slane %v2457, 5
        %v2579 = vsel %vm1490, %v2577, %v2578
        %v2580 = vrot.slane %v2578, 4
        %v2581 = vrot.slane %v2458, 5
        %v2582 = vsel %vm1490, %v2580, %v2581
        %v2583 = vrot.slane %v2459, 5
        %v2584 = vrot.slane %v2583, 4
        %v2585 = vrot.slane %v2460, 5
        %v2586 = vsel %vm1490, %v2584, %v2585
        %v2587 = vrot.slane %v2585, 4
        %v2588 = vrot.slane %v2461, 5
        %v2589 = vsel %vm1490, %v2587, %v2588
        %v2590 = vrot.slane %v2462, 5
        %v2591 = vrot.slane %v2590, 4
        %v2592 = vrot.slane %v2463, 5
        %v2593 = vsel %vm1490, %v2591, %v2592
        %v2594 = vrot.slane %v2592, 4
        %v2595 = vrot.slane %v2464, 5
        %v2596 = vsel %vm1490, %v2594, %v2595
        %v2597 = vrot.slane %v2465, 5
        %v2598 = vrot.slane %v2597, 4
        %v2599 = vrot.slane %v2466, 5
        %v2600 = vsel %vm1490, %v2598, %v2599
        %v2601 = vrot.slane %v2599, 4
        %v2602 = vrot.slane %v2467, 5
        %v2603 = vsel %vm1490, %v2601, %v2602
        %v2604 = vrot.slane %v2468, 5
        %v2605 = vrot.slane %v2604, 4
        %v2606 = vrot.slane %v2469, 5
        %v2607 = vsel %vm1490, %v2605, %v2606
        %v2608 = vrot.slane %v2606, 4
        %v2609 = vrot.slane %v2470, 5
        %v2610 = vsel %vm1490, %v2608, %v2609
        %v2611 = vrot.slane %v2471, 5
        %v2612 = vrot.slane %v2611, 4
        %v2613 = vrot.slane %v2472, 5
        %v2614 = vsel %vm1490, %v2612, %v2613
        %v2615 = vrot.slane %v2613, 4
        %v2616 = vrot.slane %v2473, 5
        %v2617 = vsel %vm1490, %v2615, %v2616
        %v2618 = vrot.slane %v2474, 5
        %v2619 = vrot.slane %v2618, 4
        %v2620 = vrot.slane %v2475, 5
        %v2621 = vsel %vm1490, %v2619, %v2620
        %v2622 = vrot.slane %v2620, 4
        %v2623 = vrot.slane %v2476, 5
        %v2624 = vsel %vm1490, %v2622, %v2623
        %v2625 = vrot.slane %v2477, 5
        %v2626 = vrot.slane %v2625, 4
        %v2627 = vrot.slane %v2478, 5
        %v2628 = vsel %vm1490, %v2626, %v2627
        %v2629 = vrot.slane %v2627, 4
        %v2630 = vrot.slane %v2479, 5
        %v2631 = vsel %vm1490, %v2629, %v2630
        %v2632 = vrot.slane %v2480, 5
        %v2633 = vrot.slane %v2632, 4
        %v2634 = vrot.slane %v2481, 5
        %v2635 = vsel %vm1490, %v2633, %v2634
        %v2636 = vrot.slane %v2634, 4
        %v2637 = vrot.slane %v2482, 5
        %v2638 = vsel %vm1490, %v2636, %v2637
        %v2639 = vrot.slane %v2483, 5
        %v2640 = vrot.slane %v2639, 4
        %v2641 = vrot.slane %v2484, 5
        %v2642 = vsel %vm1490, %v2640, %v2641
        %v2643 = vrot.slane %v2641, 4
        %v2644 = vrot.slane %v2485, 5
        %v2645 = vsel %vm1490, %v2643, %v2644
        %v2646 = vunpack.c.l.b16 %v2537
        %v2647 = vunpack.c.l.b16 %v2540
        %v2648 = vunpack.c.l.b16 %v2544
        %v2649 = vunpack.c.l.b16 %v2547
        %v2650 = vunpack.c.l.b16 %v2551
        %v2651 = vunpack.c.l.b16 %v2554
        %v2652 = vunpack.c.l.b16 %v2558
        %v2653 = vunpack.c.l.b16 %v2561
        %v2654 = vunpack.c.l.b16 %v2565
        %v2655 = vunpack.c.l.b16 %v2568
        %v2656 = vunpack.c.l.b16 %v2572
        %v2657 = vunpack.c.l.b16 %v2575
        %v2658 = vunpack.c.l.b16 %v2579
        %v2659 = vunpack.c.l.b16 %v2582
        %v2660 = vunpack.c.l.b16 %v2586
        %v2661 = vunpack.c.l.b16 %v2589
        %v2662 = vunpack.c.l.b16 %v2593
        %v2663 = vunpack.c.l.b16 %v2596
        %v2664 = vunpack.c.l.b16 %v2600
        %v2665 = vunpack.c.l.b16 %v2603
        %v2666 = vunpack.c.l.b16 %v2607
        %v2667 = vunpack.c.l.b16 %v2610
        %v2668 = vunpack.c.l.b16 %v2614
        %v2669 = vunpack.c.l.b16 %v2617
        %v2670 = vunpack.c.l.b16 %v2621
        %v2671 = vunpack.c.l.b16 %v2624
        %v2672 = vunpack.c.l.b16 %v2628
        %v2673 = vunpack.c.l.b16 %v2631
        %v2674 = vunpack.c.l.b16 %v2635
        %v2675 = vunpack.c.l.b16 %v2638
        %v2676 = vunpack.c.l.b16 %v2642
        %v2677 = vunpack.c.l.b16 %v2645
        %v2678 = vpack.c.b16 %v2647, %v2646
        %v2679 = vpack.c.b16 %v2649, %v2648
        %v2680 = vpack.c.b16 %v2651, %v2650
        %v2681 = vpack.c.b16 %v2653, %v2652
        %v2682 = vpack.c.b16 %v2655, %v2654
        %v2683 = vpack.c.b16 %v2657, %v2656
        %v2684 = vpack.c.b16 %v2659, %v2658
        %v2685 = vpack.c.b16 %v2661, %v2660
        %v2686 = vpack.c.b16 %v2663, %v2662
        %v2687 = vpack.c.b16 %v2665, %v2664
        %v2688 = vpack.c.b16 %v2667, %v2666
        %v2689 = vpack.c.b16 %v2669, %v2668
        %v2690 = vpack.c.b16 %v2671, %v2670
        %v2691 = vpack.c.b16 %v2673, %v2672
        %v2692 = vpack.c.b16 %v2675, %v2674
        %v2693 = vpack.c.b16 %v2677, %v2676
        %2694 = vrot.lane.b32.xlu0 %v2678, 20
        %v2695 = vpop.permute.xlu0 %2694
        %2696 = vrot.lane.b32.xlu0 %v2679, 20
        %v2697 = vpop.permute.xlu0 %2696
        %2698 = vrot.lane.b32.xlu0 %v2680, 20
        %v2699 = vpop.permute.xlu0 %2698
        %2700 = vrot.lane.b32.xlu0 %v2681, 20
        %v2701 = vpop.permute.xlu0 %2700
        %2702 = vrot.lane.b32.xlu0 %v2682, 20
        %v2703 = vpop.permute.xlu0 %2702
        %2704 = vrot.lane.b32.xlu0 %v2683, 20
        %v2705 = vpop.permute.xlu0 %2704
        %2706 = vrot.lane.b32.xlu0 %v2684, 20
        %v2707 = vpop.permute.xlu0 %2706
        %2708 = vrot.lane.b32.xlu0 %v2685, 20
        %v2709 = vpop.permute.xlu0 %2708
        %2710 = vrot.lane.b32.xlu0 %v2686, 20
        %v2711 = vpop.permute.xlu0 %2710
        %2712 = vrot.lane.b32.xlu0 %v2687, 20
        %v2713 = vpop.permute.xlu0 %2712
        %2714 = vrot.lane.b32.xlu0 %v2688, 20
        %v2715 = vpop.permute.xlu0 %2714
        %2716 = vrot.lane.b32.xlu0 %v2689, 20
        %v2717 = vpop.permute.xlu0 %2716
        %2718 = vrot.lane.b32.xlu0 %v2690, 20
        %v2719 = vpop.permute.xlu0 %2718
        %2720 = vrot.lane.b32.xlu0 %v2691, 20
        %v2721 = vpop.permute.xlu0 %2720
        %2722 = vrot.lane.b32.xlu0 %v2692, 20
        %v2723 = vpop.permute.xlu0 %2722
        %2724 = vrot.lane.b32.xlu0 %v2693, 20
        %v2725 = vpop.permute.xlu0 %2724
        %vm2742 = vcmask 195744
        %2743 = vst.msk [vmem:[#allocation3] sm:$0xff] %vm2742, %v2695
        %2744 = vst.msk [vmem:[#allocation3 + $0x8] sm:$0xff] %vm2742, %v2697
        %2745 = vst.msk [vmem:[#allocation3 + $0x10] sm:$0xff] %vm2742, %v2699
        %2746 = vst.msk [vmem:[#allocation3 + $0x18] sm:$0xff] %vm2742, %v2701
        %2747 = vst.msk [vmem:[#allocation3 + $0x20] sm:$0xff] %vm2742, %v2703
        %2748 = vst.msk [vmem:[#allocation3 + $0x28] sm:$0xff] %vm2742, %v2705
        %2749 = vst.msk [vmem:[#allocation3 + $0x30] sm:$0xff] %vm2742, %v2707
        %2750 = vst.msk [vmem:[#allocation3 + $0x38] sm:$0xff] %vm2742, %v2709
        %2751 = vst.msk [vmem:[#allocation3 + $0x40] sm:$0xff] %vm2742, %v2711
        %2752 = vst.msk [vmem:[#allocation3 + $0x48] sm:$0xff] %vm2742, %v2713
        %2753 = vst.msk [vmem:[#allocation3 + $0x50] sm:$0xff] %vm2742, %v2715
        %2754 = vst.msk [vmem:[#allocation3 + $0x58] sm:$0xff] %vm2742, %v2717
        %2755 = vst.msk [vmem:[#allocation3 + $0x60] sm:$0xff] %vm2742, %v2719
        %2756 = vst.msk [vmem:[#allocation3 + $0x68] sm:$0xff] %vm2742, %v2721
        %2757 = vst.msk [vmem:[#allocation3 + $0x70] sm:$0xff] %vm2742, %v2723
        %2758 = vst.msk [vmem:[#allocation3 + $0x78] sm:$0xff] %vm2742, %v2725
        %s2759 = scalar_lea.vmem [#allocation2], 24
        %v2760 = vld [vmem:[%s2759] sm:$0xf]
        %v2761 = vld [vmem:[%s2759 + $0x4] sm:$0xf]
        %v2762 = vld [vmem:[%s2759 + $0xc] sm:$0xf]
        %v2763 = vld [vmem:[%s2759 + $0x10] sm:$0xf]
        %v2764 = vld [vmem:[%s2759 + $0x18] sm:$0xf]
        %v2765 = vld [vmem:[%s2759 + $0x1c] sm:$0xf]
        %v2766 = vld [vmem:[%s2759 + $0x24] sm:$0xf]
        %v2767 = vld [vmem:[%s2759 + $0x28] sm:$0xf]
        %v2768 = vld [vmem:[%s2759 + $0x30] sm:$0xf]
        %v2769 = vld [vmem:[%s2759 + $0x34] sm:$0xf]
        %v2770 = vld [vmem:[%s2759 + $0x3c] sm:$0xf]
        %v2771 = vld [vmem:[%s2759 + $0x40] sm:$0xf]
        %v2772 = vld [vmem:[%s2759 + $0x48] sm:$0xf]
        %v2773 = vld [vmem:[%s2759 + $0x4c] sm:$0xf]
        %v2774 = vld [vmem:[%s2759 + $0x54] sm:$0xf]
        %v2775 = vld [vmem:[%s2759 + $0x58] sm:$0xf]
        %v2776 = vld [vmem:[%s2759 + $0x60] sm:$0xf]
        %v2777 = vld [vmem:[%s2759 + $0x64] sm:$0xf]
        %v2778 = vld [vmem:[%s2759 + $0x6c] sm:$0xf]
        %v2779 = vld [vmem:[%s2759 + $0x70] sm:$0xf]
        %v2780 = vld [vmem:[%s2759 + $0x78] sm:$0xf]
        %v2781 = vld [vmem:[%s2759 + $0x7c] sm:$0xf]
        %v2782 = vld [vmem:[%s2759 + $0x84] sm:$0xf]
        %v2783 = vld [vmem:[%s2759 + $0x88] sm:$0xf]
        %v2784 = vld [vmem:[%s2759 + $0x90] sm:$0xf]
        %v2785 = vld [vmem:[%s2759 + $0x94] sm:$0xf]
        %v2786 = vld [vmem:[%s2759 + $0x9c] sm:$0xf]
        %v2787 = vld [vmem:[%s2759 + $0xa0] sm:$0xf]
        %v2788 = vld [vmem:[%s2759 + $0xa8] sm:$0xf]
        %v2789 = vld [vmem:[%s2759 + $0xac] sm:$0xf]
        %v2790 = vld [vmem:[%s2759 + $0xb4] sm:$0xf]
        %v2791 = vld [vmem:[%s2759 + $0xb8] sm:$0xf]
        %v2824 = vunpack.c.l.b16 %v2760
        %v2825 = vunpack.c.l.b16 %v2761
        %v2826 = vunpack.c.l.b16 %v2762
        %v2827 = vunpack.c.l.b16 %v2763
        %v2828 = vunpack.c.l.b16 %v2764
        %v2829 = vunpack.c.l.b16 %v2765
        %v2830 = vunpack.c.l.b16 %v2766
        %v2831 = vunpack.c.l.b16 %v2767
        %v2832 = vunpack.c.l.b16 %v2768
        %v2833 = vunpack.c.l.b16 %v2769
        %v2834 = vunpack.c.l.b16 %v2770
        %v2835 = vunpack.c.l.b16 %v2771
        %v2836 = vunpack.c.l.b16 %v2772
        %v2837 = vunpack.c.l.b16 %v2773
        %v2838 = vunpack.c.l.b16 %v2774
        %v2839 = vunpack.c.l.b16 %v2775
        %v2840 = vunpack.c.l.b16 %v2776
        %v2841 = vunpack.c.l.b16 %v2777
        %v2842 = vunpack.c.l.b16 %v2778
        %v2843 = vunpack.c.l.b16 %v2779
        %v2844 = vunpack.c.l.b16 %v2780
        %v2845 = vunpack.c.l.b16 %v2781
        %v2846 = vunpack.c.l.b16 %v2782
        %v2847 = vunpack.c.l.b16 %v2783
        %v2848 = vunpack.c.l.b16 %v2784
        %v2849 = vunpack.c.l.b16 %v2785
        %v2850 = vunpack.c.l.b16 %v2786
        %v2851 = vunpack.c.l.b16 %v2787
        %v2852 = vunpack.c.l.b16 %v2788
        %v2853 = vunpack.c.l.b16 %v2789
        %v2854 = vunpack.c.l.b16 %v2790
        %v2855 = vunpack.c.l.b16 %v2791
        %v2856 = vpack.c.b16 %v2825, %v2824
        %v2857 = vpack.c.b16 %v2827, %v2826
        %v2858 = vpack.c.b16 %v2829, %v2828
        %v2859 = vpack.c.b16 %v2831, %v2830
        %v2860 = vpack.c.b16 %v2833, %v2832
        %v2861 = vpack.c.b16 %v2835, %v2834
        %v2862 = vpack.c.b16 %v2837, %v2836
        %v2863 = vpack.c.b16 %v2839, %v2838
        %v2864 = vpack.c.b16 %v2841, %v2840
        %v2865 = vpack.c.b16 %v2843, %v2842
        %v2866 = vpack.c.b16 %v2845, %v2844
        %v2867 = vpack.c.b16 %v2847, %v2846
        %v2868 = vpack.c.b16 %v2849, %v2848
        %v2869 = vpack.c.b16 %v2851, %v2850
        %v2870 = vpack.c.b16 %v2853, %v2852
        %v2871 = vpack.c.b16 %v2855, %v2854
        %2872 = vrot.lane.b32.xlu0 %v2856, 24
        %v2873 = vpop.permute.xlu0 %2872
        %2874 = vrot.lane.b32.xlu0 %v2857, 24
        %v2875 = vpop.permute.xlu0 %2874
        %2876 = vrot.lane.b32.xlu0 %v2858, 24
        %v2877 = vpop.permute.xlu0 %2876
        %2878 = vrot.lane.b32.xlu0 %v2859, 24
        %v2879 = vpop.permute.xlu0 %2878
        %2880 = vrot.lane.b32.xlu0 %v2860, 24
        %v2881 = vpop.permute.xlu0 %2880
        %2882 = vrot.lane.b32.xlu0 %v2861, 24
        %v2883 = vpop.permute.xlu0 %2882
        %2884 = vrot.lane.b32.xlu0 %v2862, 24
        %v2885 = vpop.permute.xlu0 %2884
        %2886 = vrot.lane.b32.xlu0 %v2863, 24
        %v2887 = vpop.permute.xlu0 %2886
        %2888 = vrot.lane.b32.xlu0 %v2864, 24
        %v2889 = vpop.permute.xlu0 %2888
        %2890 = vrot.lane.b32.xlu0 %v2865, 24
        %v2891 = vpop.permute.xlu0 %2890
        %2892 = vrot.lane.b32.xlu0 %v2866, 24
        %v2893 = vpop.permute.xlu0 %2892
        %2894 = vrot.lane.b32.xlu0 %v2867, 24
        %v2895 = vpop.permute.xlu0 %2894
        %2896 = vrot.lane.b32.xlu0 %v2868, 24
        %v2897 = vpop.permute.xlu0 %2896
        %2898 = vrot.lane.b32.xlu0 %v2869, 24
        %v2899 = vpop.permute.xlu0 %2898
        %2900 = vrot.lane.b32.xlu0 %v2870, 24
        %v2901 = vpop.permute.xlu0 %2900
        %2902 = vrot.lane.b32.xlu0 %v2871, 24
        %v2903 = vpop.permute.xlu0 %2902
        %vm2920 = vcmask 228544
        %2921 = vst.msk [vmem:[#allocation3] sm:$0xff] %vm2920, %v2873
        %2922 = vst.msk [vmem:[#allocation3 + $0x8] sm:$0xff] %vm2920, %v2875
        %2923 = vst.msk [vmem:[#allocation3 + $0x10] sm:$0xff] %vm2920, %v2877
        %2924 = vst.msk [vmem:[#allocation3 + $0x18] sm:$0xff] %vm2920, %v2879
        %2925 = vst.msk [vmem:[#allocation3 + $0x20] sm:$0xff] %vm2920, %v2881
        %2926 = vst.msk [vmem:[#allocation3 + $0x28] sm:$0xff] %vm2920, %v2883
        %2927 = vst.msk [vmem:[#allocation3 + $0x30] sm:$0xff] %vm2920, %v2885
        %2928 = vst.msk [vmem:[#allocation3 + $0x38] sm:$0xff] %vm2920, %v2887
        %2929 = vst.msk [vmem:[#allocation3 + $0x40] sm:$0xff] %vm2920, %v2889
        %2930 = vst.msk [vmem:[#allocation3 + $0x48] sm:$0xff] %vm2920, %v2891
        %2931 = vst.msk [vmem:[#allocation3 + $0x50] sm:$0xff] %vm2920, %v2893
        %2932 = vst.msk [vmem:[#allocation3 + $0x58] sm:$0xff] %vm2920, %v2895
        %2933 = vst.msk [vmem:[#allocation3 + $0x60] sm:$0xff] %vm2920, %v2897
        %2934 = vst.msk [vmem:[#allocation3 + $0x68] sm:$0xff] %vm2920, %v2899
        %2935 = vst.msk [vmem:[#allocation3 + $0x70] sm:$0xff] %vm2920, %v2901
        %2936 = vst.msk [vmem:[#allocation3 + $0x78] sm:$0xff] %vm2920, %v2903
        %v2937 = vld [vmem:[%s2759] sm:$0xf]
        %v2938 = vld [vmem:[%s2759 + $0x4] sm:$0xf]
        %v2939 = vld [vmem:[%s2759 + $0x8] sm:$0x1]
        %v2940 = vld [vmem:[%s2759 + $0xc] sm:$0xf]
        %v2941 = vld [vmem:[%s2759 + $0x10] sm:$0xf]
        %v2942 = vld [vmem:[%s2759 + $0x14] sm:$0x1]
        %v2943 = vld [vmem:[%s2759 + $0x18] sm:$0xf]
        %v2944 = vld [vmem:[%s2759 + $0x1c] sm:$0xf]
        %v2945 = vld [vmem:[%s2759 + $0x20] sm:$0x1]
        %v2946 = vld [vmem:[%s2759 + $0x24] sm:$0xf]
        %v2947 = vld [vmem:[%s2759 + $0x28] sm:$0xf]
        %v2948 = vld [vmem:[%s2759 + $0x2c] sm:$0x1]
        %v2949 = vld [vmem:[%s2759 + $0x30] sm:$0xf]
        %v2950 = vld [vmem:[%s2759 + $0x34] sm:$0xf]
        %v2951 = vld [vmem:[%s2759 + $0x38] sm:$0x1]
        %v2952 = vld [vmem:[%s2759 + $0x3c] sm:$0xf]
        %v2953 = vld [vmem:[%s2759 + $0x40] sm:$0xf]
        %v2954 = vld [vmem:[%s2759 + $0x44] sm:$0x1]
        %v2955 = vld [vmem:[%s2759 + $0x48] sm:$0xf]
        %v2956 = vld [vmem:[%s2759 + $0x4c] sm:$0xf]
        %v2957 = vld [vmem:[%s2759 + $0x50] sm:$0x1]
        %v2958 = vld [vmem:[%s2759 + $0x54] sm:$0xf]
        %v2959 = vld [vmem:[%s2759 + $0x58] sm:$0xf]
        %v2960 = vld [vmem:[%s2759 + $0x5c] sm:$0x1]
        %v2961 = vld [vmem:[%s2759 + $0x60] sm:$0xf]
        %v2962 = vld [vmem:[%s2759 + $0x64] sm:$0xf]
        %v2963 = vld [vmem:[%s2759 + $0x68] sm:$0x1]
        %v2964 = vld [vmem:[%s2759 + $0x6c] sm:$0xf]
        %v2965 = vld [vmem:[%s2759 + $0x70] sm:$0xf]
        %v2966 = vld [vmem:[%s2759 + $0x74] sm:$0x1]
        %v2967 = vld [vmem:[%s2759 + $0x78] sm:$0xf]
        %v2968 = vld [vmem:[%s2759 + $0x7c] sm:$0xf]
        %v2969 = vld [vmem:[%s2759 + $0x80] sm:$0x1]
        %v2970 = vld [vmem:[%s2759 + $0x84] sm:$0xf]
        %v2971 = vld [vmem:[%s2759 + $0x88] sm:$0xf]
        %v2972 = vld [vmem:[%s2759 + $0x8c] sm:$0x1]
        %v2973 = vld [vmem:[%s2759 + $0x90] sm:$0xf]
        %v2974 = vld [vmem:[%s2759 + $0x94] sm:$0xf]
        %v2975 = vld [vmem:[%s2759 + $0x98] sm:$0x1]
        %v2976 = vld [vmem:[%s2759 + $0x9c] sm:$0xf]
        %v2977 = vld [vmem:[%s2759 + $0xa0] sm:$0xf]
        %v2978 = vld [vmem:[%s2759 + $0xa4] sm:$0x1]
        %v2979 = vld [vmem:[%s2759 + $0xa8] sm:$0xf]
        %v2980 = vld [vmem:[%s2759 + $0xac] sm:$0xf]
        %v2981 = vld [vmem:[%s2759 + $0xb0] sm:$0x1]
        %v2982 = vld [vmem:[%s2759 + $0xb4] sm:$0xf]
        %v2983 = vld [vmem:[%s2759 + $0xb8] sm:$0xf]
        %v2984 = vld [vmem:[%s2759 + $0xbc] sm:$0x1]
        %v2986 = vshrl.u32 %v2937, 16
        %v2988 = vrot.slane %v2986, 4
        %v2989 = vshll.u32 %v2937, 16
        %v2991 = vrot.slane %v2989, 5
        %v2992 = vor.u32 %v2988, %v2991
        %v2993 = vrot.slane %v2992, 4
        %v2995 = vshll.u32 %v2938, 16
        %v2997 = vrot.slane %v2995, 5
        %v2998 = vsel %vm894, %v2993, %v2997
        %v2999 = vshrl.u32 %v2938, 16
        %v3001 = vrot.slane %v2999, 4
        %v3002 = vor.u32 %v3001, %v2997
        %v3003 = vrot.slane %v3002, 4
        %v3005 = vshll.u32 %v2939, 16
        %v3007 = vrot.slane %v3005, 5
        %v3008 = vsel %vm894, %v3003, %v3007
        %v3010 = vshrl.u32 %v2940, 16
        %v3012 = vrot.slane %v3010, 4
        %v3013 = vshll.u32 %v2940, 16
        %v3015 = vrot.slane %v3013, 5
        %v3016 = vor.u32 %v3012, %v3015
        %v3017 = vrot.slane %v3016, 4
        %v3019 = vshll.u32 %v2941, 16
        %v3021 = vrot.slane %v3019, 5
        %v3022 = vsel %vm894, %v3017, %v3021
        %v3023 = vshrl.u32 %v2941, 16
        %v3025 = vrot.slane %v3023, 4
        %v3026 = vor.u32 %v3025, %v3021
        %v3027 = vrot.slane %v3026, 4
        %v3029 = vshll.u32 %v2942, 16
        %v3031 = vrot.slane %v3029, 5
        %v3032 = vsel %vm894, %v3027, %v3031
        %v3034 = vshrl.u32 %v2943, 16
        %v3036 = vrot.slane %v3034, 4
        %v3037 = vshll.u32 %v2943, 16
        %v3039 = vrot.slane %v3037, 5
        %v3040 = vor.u32 %v3036, %v3039
        %v3041 = vrot.slane %v3040, 4
        %v3043 = vshll.u32 %v2944, 16
        %v3045 = vrot.slane %v3043, 5
        %v3046 = vsel %vm894, %v3041, %v3045
        %v3047 = vshrl.u32 %v2944, 16
        %v3049 = vrot.slane %v3047, 4
        %v3050 = vor.u32 %v3049, %v3045
        %v3051 = vrot.slane %v3050, 4
        %v3053 = vshll.u32 %v2945, 16
        %v3055 = vrot.slane %v3053, 5
        %v3056 = vsel %vm894, %v3051, %v3055
        %v3058 = vshrl.u32 %v2946, 16
        %v3060 = vrot.slane %v3058, 4
        %v3061 = vshll.u32 %v2946, 16
        %v3063 = vrot.slane %v3061, 5
        %v3064 = vor.u32 %v3060, %v3063
        %v3065 = vrot.slane %v3064, 4
        %v3067 = vshll.u32 %v2947, 16
        %v3069 = vrot.slane %v3067, 5
        %v3070 = vsel %vm894, %v3065, %v3069
        %v3071 = vshrl.u32 %v2947, 16
        %v3073 = vrot.slane %v3071, 4
        %v3074 = vor.u32 %v3073, %v3069
        %v3075 = vrot.slane %v3074, 4
        %v3077 = vshll.u32 %v2948, 16
        %v3079 = vrot.slane %v3077, 5
        %v3080 = vsel %vm894, %v3075, %v3079
        %v3082 = vshrl.u32 %v2949, 16
        %v3084 = vrot.slane %v3082, 4
        %v3085 = vshll.u32 %v2949, 16
        %v3087 = vrot.slane %v3085, 5
        %v3088 = vor.u32 %v3084, %v3087
        %v3089 = vrot.slane %v3088, 4
        %v3091 = vshll.u32 %v2950, 16
        %v3093 = vrot.slane %v3091, 5
        %v3094 = vsel %vm894, %v3089, %v3093
        %v3095 = vshrl.u32 %v2950, 16
        %v3097 = vrot.slane %v3095, 4
        %v3098 = vor.u32 %v3097, %v3093
        %v3099 = vrot.slane %v3098, 4
        %v3101 = vshll.u32 %v2951, 16
        %v3103 = vrot.slane %v3101, 5
        %v3104 = vsel %vm894, %v3099, %v3103
        %v3106 = vshrl.u32 %v2952, 16
        %v3108 = vrot.slane %v3106, 4
        %v3109 = vshll.u32 %v2952, 16
        %v3111 = vrot.slane %v3109, 5
        %v3112 = vor.u32 %v3108, %v3111
        %v3113 = vrot.slane %v3112, 4
        %v3115 = vshll.u32 %v2953, 16
        %v3117 = vrot.slane %v3115, 5
        %v3118 = vsel %vm894, %v3113, %v3117
        %v3119 = vshrl.u32 %v2953, 16
        %v3121 = vrot.slane %v3119, 4
        %v3122 = vor.u32 %v3121, %v3117
        %v3123 = vrot.slane %v3122, 4
        %v3125 = vshll.u32 %v2954, 16
        %v3127 = vrot.slane %v3125, 5
        %v3128 = vsel %vm894, %v3123, %v3127
        %v3130 = vshrl.u32 %v2955, 16
        %v3132 = vrot.slane %v3130, 4
        %v3133 = vshll.u32 %v2955, 16
        %v3135 = vrot.slane %v3133, 5
        %v3136 = vor.u32 %v3132, %v3135
        %v3137 = vrot.slane %v3136, 4
        %v3139 = vshll.u32 %v2956, 16
        %v3141 = vrot.slane %v3139, 5
        %v3142 = vsel %vm894, %v3137, %v3141
        %v3143 = vshrl.u32 %v2956, 16
        %v3145 = vrot.slane %v3143, 4
        %v3146 = vor.u32 %v3145, %v3141
        %v3147 = vrot.slane %v3146, 4
        %v3149 = vshll.u32 %v2957, 16
        %v3151 = vrot.slane %v3149, 5
        %v3152 = vsel %vm894, %v3147, %v3151
        %v3154 = vshrl.u32 %v2958, 16
        %v3156 = vrot.slane %v3154, 4
        %v3157 = vshll.u32 %v2958, 16
        %v3159 = vrot.slane %v3157, 5
        %v3160 = vor.u32 %v3156, %v3159
        %v3161 = vrot.slane %v3160, 4
        %v3163 = vshll.u32 %v2959, 16
        %v3165 = vrot.slane %v3163, 5
        %v3166 = vsel %vm894, %v3161, %v3165
        %v3167 = vshrl.u32 %v2959, 16
        %v3169 = vrot.slane %v3167, 4
        %v3170 = vor.u32 %v3169, %v3165
        %v3171 = vrot.slane %v3170, 4
        %v3173 = vshll.u32 %v2960, 16
        %v3175 = vrot.slane %v3173, 5
        %v3176 = vsel %vm894, %v3171, %v3175
        %v3178 = vshrl.u32 %v2961, 16
        %v3180 = vrot.slane %v3178, 4
        %v3181 = vshll.u32 %v2961, 16
        %v3183 = vrot.slane %v3181, 5
        %v3184 = vor.u32 %v3180, %v3183
        %v3185 = vrot.slane %v3184, 4
        %v3187 = vshll.u32 %v2962, 16
        %v3189 = vrot.slane %v3187, 5
        %v3190 = vsel %vm894, %v3185, %v3189
        %v3191 = vshrl.u32 %v2962, 16
        %v3193 = vrot.slane %v3191, 4
        %v3194 = vor.u32 %v3193, %v3189
        %v3195 = vrot.slane %v3194, 4
        %v3197 = vshll.u32 %v2963, 16
        %v3199 = vrot.slane %v3197, 5
        %v3200 = vsel %vm894, %v3195, %v3199
        %v3202 = vshrl.u32 %v2964, 16
        %v3204 = vrot.slane %v3202, 4
        %v3205 = vshll.u32 %v2964, 16
        %v3207 = vrot.slane %v3205, 5
        %v3208 = vor.u32 %v3204, %v3207
        %v3209 = vrot.slane %v3208, 4
        %v3211 = vshll.u32 %v2965, 16
        %v3213 = vrot.slane %v3211, 5
        %v3214 = vsel %vm894, %v3209, %v3213
        %v3215 = vshrl.u32 %v2965, 16
        %v3217 = vrot.slane %v3215, 4
        %v3218 = vor.u32 %v3217, %v3213
        %v3219 = vrot.slane %v3218, 4
        %v3221 = vshll.u32 %v2966, 16
        %v3223 = vrot.slane %v3221, 5
        %v3224 = vsel %vm894, %v3219, %v3223
        %v3226 = vshrl.u32 %v2967, 16
        %v3228 = vrot.slane %v3226, 4
        %v3229 = vshll.u32 %v2967, 16
        %v3231 = vrot.slane %v3229, 5
        %v3232 = vor.u32 %v3228, %v3231
        %v3233 = vrot.slane %v3232, 4
        %v3235 = vshll.u32 %v2968, 16
        %v3237 = vrot.slane %v3235, 5
        %v3238 = vsel %vm894, %v3233, %v3237
        %v3239 = vshrl.u32 %v2968, 16
        %v3241 = vrot.slane %v3239, 4
        %v3242 = vor.u32 %v3241, %v3237
        %v3243 = vrot.slane %v3242, 4
        %v3245 = vshll.u32 %v2969, 16
        %v3247 = vrot.slane %v3245, 5
        %v3248 = vsel %vm894, %v3243, %v3247
        %v3250 = vshrl.u32 %v2970, 16
        %v3252 = vrot.slane %v3250, 4
        %v3253 = vshll.u32 %v2970, 16
        %v3255 = vrot.slane %v3253, 5
        %v3256 = vor.u32 %v3252, %v3255
        %v3257 = vrot.slane %v3256, 4
        %v3259 = vshll.u32 %v2971, 16
        %v3261 = vrot.slane %v3259, 5
        %v3262 = vsel %vm894, %v3257, %v3261
        %v3263 = vshrl.u32 %v2971, 16
        %v3265 = vrot.slane %v3263, 4
        %v3266 = vor.u32 %v3265, %v3261
        %v3267 = vrot.slane %v3266, 4
        %v3269 = vshll.u32 %v2972, 16
        %v3271 = vrot.slane %v3269, 5
        %v3272 = vsel %vm894, %v3267, %v3271
        %v3274 = vshrl.u32 %v2973, 16
        %v3276 = vrot.slane %v3274, 4
        %v3277 = vshll.u32 %v2973, 16
        %v3279 = vrot.slane %v3277, 5
        %v3280 = vor.u32 %v3276, %v3279
        %v3281 = vrot.slane %v3280, 4
        %v3283 = vshll.u32 %v2974, 16
        %v3285 = vrot.slane %v3283, 5
        %v3286 = vsel %vm894, %v3281, %v3285
        %v3287 = vshrl.u32 %v2974, 16
        %v3289 = vrot.slane %v3287, 4
        %v3290 = vor.u32 %v3289, %v3285
        %v3291 = vrot.slane %v3290, 4
        %v3293 = vshll.u32 %v2975, 16
        %v3295 = vrot.slane %v3293, 5
        %v3296 = vsel %vm894, %v3291, %v3295
        %v3298 = vshrl.u32 %v2976, 16
        %v3300 = vrot.slane %v3298, 4
        %v3301 = vshll.u32 %v2976, 16
        %v3303 = vrot.slane %v3301, 5
        %v3304 = vor.u32 %v3300, %v3303
        %v3305 = vrot.slane %v3304, 4
        %v3307 = vshll.u32 %v2977, 16
        %v3309 = vrot.slane %v3307, 5
        %v3310 = vsel %vm894, %v3305, %v3309
        %v3311 = vshrl.u32 %v2977, 16
        %v3313 = vrot.slane %v3311, 4
        %v3314 = vor.u32 %v3313, %v3309
        %v3315 = vrot.slane %v3314, 4
        %v3317 = vshll.u32 %v2978, 16
        %v3319 = vrot.slane %v3317, 5
        %v3320 = vsel %vm894, %v3315, %v3319
        %v3322 = vshrl.u32 %v2979, 16
        %v3324 = vrot.slane %v3322, 4
        %v3325 = vshll.u32 %v2979, 16
        %v3327 = vrot.slane %v3325, 5
        %v3328 = vor.u32 %v3324, %v3327
        %v3329 = vrot.slane %v3328, 4
        %v3331 = vshll.u32 %v2980, 16
        %v3333 = vrot.slane %v3331, 5
        %v3334 = vsel %vm894, %v3329, %v3333
        %v3335 = vshrl.u32 %v2980, 16
        %v3337 = vrot.slane %v3335, 4
        %v3338 = vor.u32 %v3337, %v3333
        %v3339 = vrot.slane %v3338, 4
        %v3341 = vshll.u32 %v2981, 16
        %v3343 = vrot.slane %v3341, 5
        %v3344 = vsel %vm894, %v3339, %v3343
        %v3346 = vshrl.u32 %v2982, 16
        %v3348 = vrot.slane %v3346, 4
        %v3349 = vshll.u32 %v2982, 16
        %v3351 = vrot.slane %v3349, 5
        %v3352 = vor.u32 %v3348, %v3351
        %v3353 = vrot.slane %v3352, 4
        %v3355 = vshll.u32 %v2983, 16
        %v3357 = vrot.slane %v3355, 5
        %v3358 = vsel %vm894, %v3353, %v3357
        %v3359 = vshrl.u32 %v2983, 16
        %v3361 = vrot.slane %v3359, 4
        %v3362 = vor.u32 %v3361, %v3357
        %v3363 = vrot.slane %v3362, 4
        %v3365 = vshll.u32 %v2984, 16
        %v3367 = vrot.slane %v3365, 5
        %v3368 = vsel %vm894, %v3363, %v3367
        %v3369 = vunpack.c.l.b16 %v2998
        %v3370 = vunpack.c.l.b16 %v3008
        %v3371 = vunpack.c.l.b16 %v3022
        %v3372 = vunpack.c.l.b16 %v3032
        %v3373 = vunpack.c.l.b16 %v3046
        %v3374 = vunpack.c.l.b16 %v3056
        %v3375 = vunpack.c.l.b16 %v3070
        %v3376 = vunpack.c.l.b16 %v3080
        %v3377 = vunpack.c.l.b16 %v3094
        %v3378 = vunpack.c.l.b16 %v3104
        %v3379 = vunpack.c.l.b16 %v3118
        %v3380 = vunpack.c.l.b16 %v3128
        %v3381 = vunpack.c.l.b16 %v3142
        %v3382 = vunpack.c.l.b16 %v3152
        %v3383 = vunpack.c.l.b16 %v3166
        %v3384 = vunpack.c.l.b16 %v3176
        %v3385 = vunpack.c.l.b16 %v3190
        %v3386 = vunpack.c.l.b16 %v3200
        %v3387 = vunpack.c.l.b16 %v3214
        %v3388 = vunpack.c.l.b16 %v3224
        %v3389 = vunpack.c.l.b16 %v3238
        %v3390 = vunpack.c.l.b16 %v3248
        %v3391 = vunpack.c.l.b16 %v3262
        %v3392 = vunpack.c.l.b16 %v3272
        %v3393 = vunpack.c.l.b16 %v3286
        %v3394 = vunpack.c.l.b16 %v3296
        %v3395 = vunpack.c.l.b16 %v3310
        %v3396 = vunpack.c.l.b16 %v3320
        %v3397 = vunpack.c.l.b16 %v3334
        %v3398 = vunpack.c.l.b16 %v3344
        %v3399 = vunpack.c.l.b16 %v3358
        %v3400 = vunpack.c.l.b16 %v3368
        %v3401 = vpack.c.b16 %v3370, %v3369
        %v3402 = vpack.c.b16 %v3372, %v3371
        %v3403 = vpack.c.b16 %v3374, %v3373
        %v3404 = vpack.c.b16 %v3376, %v3375
        %v3405 = vpack.c.b16 %v3378, %v3377
        %v3406 = vpack.c.b16 %v3380, %v3379
        %v3407 = vpack.c.b16 %v3382, %v3381
        %v3408 = vpack.c.b16 %v3384, %v3383
        %v3409 = vpack.c.b16 %v3386, %v3385
        %v3410 = vpack.c.b16 %v3388, %v3387
        %v3411 = vpack.c.b16 %v3390, %v3389
        %v3412 = vpack.c.b16 %v3392, %v3391
        %v3413 = vpack.c.b16 %v3394, %v3393
        %v3414 = vpack.c.b16 %v3396, %v3395
        %v3415 = vpack.c.b16 %v3398, %v3397
        %v3416 = vpack.c.b16 %v3400, %v3399
        %3417 = vrot.lane.b32.xlu0 %v3401, 28
        %v3418 = vpop.permute.xlu0 %3417
        %3419 = vrot.lane.b32.xlu0 %v3402, 28
        %v3420 = vpop.permute.xlu0 %3419
        %3421 = vrot.lane.b32.xlu0 %v3403, 28
        %v3422 = vpop.permute.xlu0 %3421
        %3423 = vrot.lane.b32.xlu0 %v3404, 28
        %v3424 = vpop.permute.xlu0 %3423
        %3425 = vrot.lane.b32.xlu0 %v3405, 28
        %v3426 = vpop.permute.xlu0 %3425
        %3427 = vrot.lane.b32.xlu0 %v3406, 28
        %v3428 = vpop.permute.xlu0 %3427
        %3429 = vrot.lane.b32.xlu0 %v3407, 28
        %v3430 = vpop.permute.xlu0 %3429
        %3431 = vrot.lane.b32.xlu0 %v3408, 28
        %v3432 = vpop.permute.xlu0 %3431
        %3433 = vrot.lane.b32.xlu0 %v3409, 28
        %v3434 = vpop.permute.xlu0 %3433
        %3435 = vrot.lane.b32.xlu0 %v3410, 28
        %v3436 = vpop.permute.xlu0 %3435
        %3437 = vrot.lane.b32.xlu0 %v3411, 28
        %v3438 = vpop.permute.xlu0 %3437
        %3439 = vrot.lane.b32.xlu0 %v3412, 28
        %v3440 = vpop.permute.xlu0 %3439
        %3441 = vrot.lane.b32.xlu0 %v3413, 28
        %v3442 = vpop.permute.xlu0 %3441
        %3443 = vrot.lane.b32.xlu0 %v3414, 28
        %v3444 = vpop.permute.xlu0 %3443
        %3445 = vrot.lane.b32.xlu0 %v3415, 28
        %v3446 = vpop.permute.xlu0 %3445
        %3447 = vrot.lane.b32.xlu0 %v3416, 28
        %v3448 = vpop.permute.xlu0 %3447
        %vm3465 = vcmask 261344
        %3466 = vst.msk [vmem:[#allocation3] sm:$0xff] %vm3465, %v3418
        %3467 = vst.msk [vmem:[#allocation3 + $0x8] sm:$0xff] %vm3465, %v3420
        %3468 = vst.msk [vmem:[#allocation3 + $0x10] sm:$0xff] %vm3465, %v3422
        %3469 = vst.msk [vmem:[#allocation3 + $0x18] sm:$0xff] %vm3465, %v3424
        %3470 = vst.msk [vmem:[#allocation3 + $0x20] sm:$0xff] %vm3465, %v3426
        %3471 = vst.msk [vmem:[#allocation3 + $0x28] sm:$0xff] %vm3465, %v3428
        %3472 = vst.msk [vmem:[#allocation3 + $0x30] sm:$0xff] %vm3465, %v3430
        %3473 = vst.msk [vmem:[#allocation3 + $0x38] sm:$0xff] %vm3465, %v3432
        %3474 = vst.msk [vmem:[#allocation3 + $0x40] sm:$0xff] %vm3465, %v3434
        %3475 = vst.msk [vmem:[#allocation3 + $0x48] sm:$0xff] %vm3465, %v3436
        %3476 = vst.msk [vmem:[#allocation3 + $0x50] sm:$0xff] %vm3465, %v3438
        %3477 = vst.msk [vmem:[#allocation3 + $0x58] sm:$0xff] %vm3465, %v3440
        %3478 = vst.msk [vmem:[#allocation3 + $0x60] sm:$0xff] %vm3465, %v3442
        %3479 = vst.msk [vmem:[#allocation3 + $0x68] sm:$0xff] %vm3465, %v3444
        %3480 = vst.msk [vmem:[#allocation3 + $0x70] sm:$0xff] %vm3465, %v3446
        %3481 = vst.msk [vmem:[#allocation3 + $0x78] sm:$0xff] %vm3465, %v3448
        %v3482 = vld [vmem:[%s2759] sm:$0xe]
        %v3483 = vld [vmem:[%s2759 + $0x4] sm:$0xf]
        %v3484 = vld [vmem:[%s2759 + $0x8] sm:$0x1]
        %v3485 = vld [vmem:[%s2759 + $0xc] sm:$0xe]
        %v3486 = vld [vmem:[%s2759 + $0x10] sm:$0xf]
        %v3487 = vld [vmem:[%s2759 + $0x14] sm:$0x1]
        %v3488 = vld [vmem:[%s2759 + $0x18] sm:$0xe]
        %v3489 = vld [vmem:[%s2759 + $0x1c] sm:$0xf]
        %v3490 = vld [vmem:[%s2759 + $0x20] sm:$0x1]
        %v3491 = vld [vmem:[%s2759 + $0x24] sm:$0xe]
        %v3492 = vld [vmem:[%s2759 + $0x28] sm:$0xf]
        %v3493 = vld [vmem:[%s2759 + $0x2c] sm:$0x1]
        %v3494 = vld [vmem:[%s2759 + $0x30] sm:$0xe]
        %v3495 = vld [vmem:[%s2759 + $0x34] sm:$0xf]
        %v3496 = vld [vmem:[%s2759 + $0x38] sm:$0x1]
        %v3497 = vld [vmem:[%s2759 + $0x3c] sm:$0xe]
        %v3498 = vld [vmem:[%s2759 + $0x40] sm:$0xf]
        %v3499 = vld [vmem:[%s2759 + $0x44] sm:$0x1]
        %v3500 = vld [vmem:[%s2759 + $0x48] sm:$0xe]
        %v3501 = vld [vmem:[%s2759 + $0x4c] sm:$0xf]
        %v3502 = vld [vmem:[%s2759 + $0x50] sm:$0x1]
        %v3503 = vld [vmem:[%s2759 + $0x54] sm:$0xe]
        %v3504 = vld [vmem:[%s2759 + $0x58] sm:$0xf]
        %v3505 = vld [vmem:[%s2759 + $0x5c] sm:$0x1]
        %v3506 = vld [vmem:[%s2759 + $0x60] sm:$0xe]
        %v3507 = vld [vmem:[%s2759 + $0x64] sm:$0xf]
        %v3508 = vld [vmem:[%s2759 + $0x68] sm:$0x1]
        %v3509 = vld [vmem:[%s2759 + $0x6c] sm:$0xe]
        %v3510 = vld [vmem:[%s2759 + $0x70] sm:$0xf]
        %v3511 = vld [vmem:[%s2759 + $0x74] sm:$0x1]
        %v3512 = vld [vmem:[%s2759 + $0x78] sm:$0xe]
        %v3513 = vld [vmem:[%s2759 + $0x7c] sm:$0xf]
        %v3514 = vld [vmem:[%s2759 + $0x80] sm:$0x1]
        %v3515 = vld [vmem:[%s2759 + $0x84] sm:$0xe]
        %v3516 = vld [vmem:[%s2759 + $0x88] sm:$0xf]
        %v3517 = vld [vmem:[%s2759 + $0x8c] sm:$0x1]
        %v3518 = vld [vmem:[%s2759 + $0x90] sm:$0xe]
        %v3519 = vld [vmem:[%s2759 + $0x94] sm:$0xf]
        %v3520 = vld [vmem:[%s2759 + $0x98] sm:$0x1]
        %v3521 = vld [vmem:[%s2759 + $0x9c] sm:$0xe]
        %v3522 = vld [vmem:[%s2759 + $0xa0] sm:$0xf]
        %v3523 = vld [vmem:[%s2759 + $0xa4] sm:$0x1]
        %v3524 = vld [vmem:[%s2759 + $0xa8] sm:$0xe]
        %v3525 = vld [vmem:[%s2759 + $0xac] sm:$0xf]
        %v3526 = vld [vmem:[%s2759 + $0xb0] sm:$0x1]
        %v3527 = vld [vmem:[%s2759 + $0xb4] sm:$0xe]
        %v3528 = vld [vmem:[%s2759 + $0xb8] sm:$0xf]
        %v3529 = vld [vmem:[%s2759 + $0xbc] sm:$0x1]
        %v3578 = vrot.slane %v3482, 5
        %v3579 = vrot.slane %v3578, 4
        %v3580 = vrot.slane %v3483, 5
        %v3581 = vsel %vm1490, %v3579, %v3580
        %v3582 = vrot.slane %v3580, 4
        %v3583 = vrot.slane %v3484, 5
        %v3584 = vsel %vm1490, %v3582, %v3583
        %v3585 = vrot.slane %v3485, 5
        %v3586 = vrot.slane %v3585, 4
        %v3587 = vrot.slane %v3486, 5
        %v3588 = vsel %vm1490, %v3586, %v3587
        %v3589 = vrot.slane %v3587, 4
        %v3590 = vrot.slane %v3487, 5
        %v3591 = vsel %vm1490, %v3589, %v3590
        %v3592 = vrot.slane %v3488, 5
        %v3593 = vrot.slane %v3592, 4
        %v3594 = vrot.slane %v3489, 5
        %v3595 = vsel %vm1490, %v3593, %v3594
        %v3596 = vrot.slane %v3594, 4
        %v3597 = vrot.slane %v3490, 5
        %v3598 = vsel %vm1490, %v3596, %v3597
        %v3599 = vrot.slane %v3491, 5
        %v3600 = vrot.slane %v3599, 4
        %v3601 = vrot.slane %v3492, 5
        %v3602 = vsel %vm1490, %v3600, %v3601
        %v3603 = vrot.slane %v3601, 4
        %v3604 = vrot.slane %v3493, 5
        %v3605 = vsel %vm1490, %v3603, %v3604
        %v3606 = vrot.slane %v3494, 5
        %v3607 = vrot.slane %v3606, 4
        %v3608 = vrot.slane %v3495, 5
        %v3609 = vsel %vm1490, %v3607, %v3608
        %v3610 = vrot.slane %v3608, 4
        %v3611 = vrot.slane %v3496, 5
        %v3612 = vsel %vm1490, %v3610, %v3611
        %v3613 = vrot.slane %v3497, 5
        %v3614 = vrot.slane %v3613, 4
        %v3615 = vrot.slane %v3498, 5
        %v3616 = vsel %vm1490, %v3614, %v3615
        %v3617 = vrot.slane %v3615, 4
        %v3618 = vrot.slane %v3499, 5
        %v3619 = vsel %vm1490, %v3617, %v3618
        %v3620 = vrot.slane %v3500, 5
        %v3621 = vrot.slane %v3620, 4
        %v3622 = vrot.slane %v3501, 5
        %v3623 = vsel %vm1490, %v3621, %v3622
        %v3624 = vrot.slane %v3622, 4
        %v3625 = vrot.slane %v3502, 5
        %v3626 = vsel %vm1490, %v3624, %v3625
        %v3627 = vrot.slane %v3503, 5
        %v3628 = vrot.slane %v3627, 4
        %v3629 = vrot.slane %v3504, 5
        %v3630 = vsel %vm1490, %v3628, %v3629
        %v3631 = vrot.slane %v3629, 4
        %v3632 = vrot.slane %v3505, 5
        %v3633 = vsel %vm1490, %v3631, %v3632
        %v3634 = vrot.slane %v3506, 5
        %v3635 = vrot.slane %v3634, 4
        %v3636 = vrot.slane %v3507, 5
        %v3637 = vsel %vm1490, %v3635, %v3636
        %v3638 = vrot.slane %v3636, 4
        %v3639 = vrot.slane %v3508, 5
        %v3640 = vsel %vm1490, %v3638, %v3639
        %v3641 = vrot.slane %v3509, 5
        %v3642 = vrot.slane %v3641, 4
        %v3643 = vrot.slane %v3510, 5
        %v3644 = vsel %vm1490, %v3642, %v3643
        %v3645 = vrot.slane %v3643, 4
        %v3646 = vrot.slane %v3511, 5
        %v3647 = vsel %vm1490, %v3645, %v3646
        %v3648 = vrot.slane %v3512, 5
        %v3649 = vrot.slane %v3648, 4
        %v3650 = vrot.slane %v3513, 5
        %v3651 = vsel %vm1490, %v3649, %v3650
        %v3652 = vrot.slane %v3650, 4
        %v3653 = vrot.slane %v3514, 5
        %v3654 = vsel %vm1490, %v3652, %v3653
        %v3655 = vrot.slane %v3515, 5
        %v3656 = vrot.slane %v3655, 4
        %v3657 = vrot.slane %v3516, 5
        %v3658 = vsel %vm1490, %v3656, %v3657
        %v3659 = vrot.slane %v3657, 4
        %v3660 = vrot.slane %v3517, 5
        %v3661 = vsel %vm1490, %v3659, %v3660
        %v3662 = vrot.slane %v3518, 5
        %v3663 = vrot.slane %v3662, 4
        %v3664 = vrot.slane %v3519, 5
        %v3665 = vsel %vm1490, %v3663, %v3664
        %v3666 = vrot.slane %v3664, 4
        %v3667 = vrot.slane %v3520, 5
        %v3668 = vsel %vm1490, %v3666, %v3667
        %v3669 = vrot.slane %v3521, 5
        %v3670 = vrot.slane %v3669, 4
        %v3671 = vrot.slane %v3522, 5
        %v3672 = vsel %vm1490, %v3670, %v3671
        %v3673 = vrot.slane %v3671, 4
        %v3674 = vrot.slane %v3523, 5
        %v3675 = vsel %vm1490, %v3673, %v3674
        %v3676 = vrot.slane %v3524, 5
        %v3677 = vrot.slane %v3676, 4
        %v3678 = vrot.slane %v3525, 5
        %v3679 = vsel %vm1490, %v3677, %v3678
        %v3680 = vrot.slane %v3678, 4
        %v3681 = vrot.slane %v3526, 5
        %v3682 = vsel %vm1490, %v3680, %v3681
        %v3683 = vrot.slane %v3527, 5
        %v3684 = vrot.slane %v3683, 4
        %v3685 = vrot.slane %v3528, 5
        %v3686 = vsel %vm1490, %v3684, %v3685
        %v3687 = vrot.slane %v3685, 4
        %v3688 = vrot.slane %v3529, 5
        %v3689 = vsel %vm1490, %v3687, %v3688
        %v3690 = vunpack.c.l.b16 %v3581
        %v3691 = vunpack.c.l.b16 %v3584
        %v3692 = vunpack.c.l.b16 %v3588
        %v3693 = vunpack.c.l.b16 %v3591
        %v3694 = vunpack.c.l.b16 %v3595
        %v3695 = vunpack.c.l.b16 %v3598
        %v3696 = vunpack.c.l.b16 %v3602
        %v3697 = vunpack.c.l.b16 %v3605
        %v3698 = vunpack.c.l.b16 %v3609
        %v3699 = vunpack.c.l.b16 %v3612
        %v3700 = vunpack.c.l.b16 %v3616
        %v3701 = vunpack.c.l.b16 %v3619
        %v3702 = vunpack.c.l.b16 %v3623
        %v3703 = vunpack.c.l.b16 %v3626
        %v3704 = vunpack.c.l.b16 %v3630
        %v3705 = vunpack.c.l.b16 %v3633
        %v3706 = vunpack.c.l.b16 %v3637
        %v3707 = vunpack.c.l.b16 %v3640
        %v3708 = vunpack.c.l.b16 %v3644
        %v3709 = vunpack.c.l.b16 %v3647
        %v3710 = vunpack.c.l.b16 %v3651
        %v3711 = vunpack.c.l.b16 %v3654
        %v3712 = vunpack.c.l.b16 %v3658
        %v3713 = vunpack.c.l.b16 %v3661
        %v3714 = vunpack.c.l.b16 %v3665
        %v3715 = vunpack.c.l.b16 %v3668
        %v3716 = vunpack.c.l.b16 %v3672
        %v3717 = vunpack.c.l.b16 %v3675
        %v3718 = vunpack.c.l.b16 %v3679
        %v3719 = vunpack.c.l.b16 %v3682
        %v3720 = vunpack.c.l.b16 %v3686
        %v3721 = vunpack.c.l.b16 %v3689
        %v3722 = vpack.c.b16 %v3691, %v3690
        %v3723 = vpack.c.b16 %v3693, %v3692
        %v3724 = vpack.c.b16 %v3695, %v3694
        %v3725 = vpack.c.b16 %v3697, %v3696
        %v3726 = vpack.c.b16 %v3699, %v3698
        %v3727 = vpack.c.b16 %v3701, %v3700
        %v3728 = vpack.c.b16 %v3703, %v3702
        %v3729 = vpack.c.b16 %v3705, %v3704
        %v3730 = vpack.c.b16 %v3707, %v3706
        %v3731 = vpack.c.b16 %v3709, %v3708
        %v3732 = vpack.c.b16 %v3711, %v3710
        %v3733 = vpack.c.b16 %v3713, %v3712
        %v3734 = vpack.c.b16 %v3715, %v3714
        %v3735 = vpack.c.b16 %v3717, %v3716
        %v3736 = vpack.c.b16 %v3719, %v3718
        %v3737 = vpack.c.b16 %v3721, %v3720
        %3738 = vrot.lane.b32.xlu0 %v3722, 32
        %v3739 = vpop.permute.xlu0 %3738
        %3740 = vrot.lane.b32.xlu0 %v3723, 32
        %v3741 = vpop.permute.xlu0 %3740
        %3742 = vrot.lane.b32.xlu0 %v3724, 32
        %v3743 = vpop.permute.xlu0 %3742
        %3744 = vrot.lane.b32.xlu0 %v3725, 32
        %v3745 = vpop.permute.xlu0 %3744
        %3746 = vrot.lane.b32.xlu0 %v3726, 32
        %v3747 = vpop.permute.xlu0 %3746
        %3748 = vrot.lane.b32.xlu0 %v3727, 32
        %v3749 = vpop.permute.xlu0 %3748
        %3750 = vrot.lane.b32.xlu0 %v3728, 32
        %v3751 = vpop.permute.xlu0 %3750
        %3752 = vrot.lane.b32.xlu0 %v3729, 32
        %v3753 = vpop.permute.xlu0 %3752
        %3754 = vrot.lane.b32.xlu0 %v3730, 32
        %v3755 = vpop.permute.xlu0 %3754
        %3756 = vrot.lane.b32.xlu0 %v3731, 32
        %v3757 = vpop.permute.xlu0 %3756
        %3758 = vrot.lane.b32.xlu0 %v3732, 32
        %v3759 = vpop.permute.xlu0 %3758
        %3760 = vrot.lane.b32.xlu0 %v3733, 32
        %v3761 = vpop.permute.xlu0 %3760
        %3762 = vrot.lane.b32.xlu0 %v3734, 32
        %v3763 = vpop.permute.xlu0 %3762
        %3764 = vrot.lane.b32.xlu0 %v3735, 32
        %v3765 = vpop.permute.xlu0 %3764
        %3766 = vrot.lane.b32.xlu0 %v3736, 32
        %v3767 = vpop.permute.xlu0 %3766
        %3768 = vrot.lane.b32.xlu0 %v3737, 32
        %v3769 = vpop.permute.xlu0 %3768
        %vm3786 = vcmask 294144
        %3787 = vst.msk [vmem:[#allocation3] sm:$0xff] %vm3786, %v3739
        %3788 = vst.msk [vmem:[#allocation3 + $0x8] sm:$0xff] %vm3786, %v3741
        %3789 = vst.msk [vmem:[#allocation3 + $0x10] sm:$0xff] %vm3786, %v3743
        %3790 = vst.msk [vmem:[#allocation3 + $0x18] sm:$0xff] %vm3786, %v3745
        %3791 = vst.msk [vmem:[#allocation3 + $0x20] sm:$0xff] %vm3786, %v3747
        %3792 = vst.msk [vmem:[#allocation3 + $0x28] sm:$0xff] %vm3786, %v3749
        %3793 = vst.msk [vmem:[#allocation3 + $0x30] sm:$0xff] %vm3786, %v3751
        %3794 = vst.msk [vmem:[#allocation3 + $0x38] sm:$0xff] %vm3786, %v3753
        %3795 = vst.msk [vmem:[#allocation3 + $0x40] sm:$0xff] %vm3786, %v3755
        %3796 = vst.msk [vmem:[#allocation3 + $0x48] sm:$0xff] %vm3786, %v3757
        %3797 = vst.msk [vmem:[#allocation3 + $0x50] sm:$0xff] %vm3786, %v3759
        %3798 = vst.msk [vmem:[#allocation3 + $0x58] sm:$0xff] %vm3786, %v3761
        %3799 = vst.msk [vmem:[#allocation3 + $0x60] sm:$0xff] %vm3786, %v3763
        %3800 = vst.msk [vmem:[#allocation3 + $0x68] sm:$0xff] %vm3786, %v3765
        %3801 = vst.msk [vmem:[#allocation3 + $0x70] sm:$0xff] %vm3786, %v3767
        %3802 = vst.msk [vmem:[#allocation3 + $0x78] sm:$0xff] %vm3786, %v3769
        %v3803 = vld [vmem:[%s1] sm:$0xf]
        %v3804 = vld [vmem:[#allocation3] sm:$0xff]
        %v3805 = vld [vmem:[#allocation3 + $0x8] sm:$0xff]
        %v3806 = vld [vmem:[#allocation3 + $0x10] sm:$0xff]
        %v3807 = vld [vmem:[#allocation3 + $0x18] sm:$0xff]
        %v3808 = vld [vmem:[#allocation3 + $0x20] sm:$0xff]
        %v3809 = vld [vmem:[#allocation3 + $0x28] sm:$0xff]
        %v3810 = vld [vmem:[#allocation3 + $0x30] sm:$0xff]
        %v3811 = vld [vmem:[#allocation3 + $0x38] sm:$0xff]
        %v3812 = vld [vmem:[#allocation3 + $0x40] sm:$0xff]
        %v3813 = vld [vmem:[#allocation3 + $0x48] sm:$0xff]
        %v3814 = vld [vmem:[#allocation3 + $0x50] sm:$0xff]
        %v3815 = vld [vmem:[#allocation3 + $0x58] sm:$0xff]
        %v3816 = vld [vmem:[#allocation3 + $0x60] sm:$0xff]
        %v3817 = vld [vmem:[#allocation3 + $0x68] sm:$0xff]
        %v3818 = vld [vmem:[#allocation3 + $0x70] sm:$0xff]
        %v3819 = vld [vmem:[#allocation3 + $0x78] sm:$0xff]
        %v3820 = vld [vmem:[%s2] sm:$0xff]
        %3822 = vset.pattern.permute.xlu0 0
        %3823 = vperm.xlu0 %3822, %v3820
        %v3824 = vpop.permute.xlu0 %3823
        %vm3826 = vcmask 293888
        %v3828 = vsel %vm3826, %v3803, 0
        %v3831 = vsel %vm3826, %v3804, 0
        %v3834 = vsel %vm3826, %v3805, 0
        %v3837 = vsel %vm3826, %v3806, 0
        %v3840 = vsel %vm3826, %v3807, 0
        %v3843 = vsel %vm3826, %v3808, 0
        %v3846 = vsel %vm3826, %v3809, 0
        %v3849 = vsel %vm3826, %v3810, 0
        %v3852 = vsel %vm3826, %v3811, 0
        %v3855 = vsel %vm3826, %v3812, 0
        %v3858 = vsel %vm3826, %v3813, 0
        %v3861 = vsel %vm3826, %v3814, 0
        %v3864 = vsel %vm3826, %v3815, 0
        %v3867 = vsel %vm3826, %v3816, 0
        %v3870 = vsel %vm3826, %v3817, 0
        %v3873 = vsel %vm3826, %v3818, 0
        %v3876 = vsel %vm3826, %v3819, 0
        %3878 = vmatprep.subr.bf16.mxu0 0
        %3879 = vmatpush1.bf16.xpose.msra.mxu0 %v3831
        %3880 = vmatprep.subr.bf16.mxu0 0
        %3881 = vmatpush1.bf16.xpose.msra.mxu0 %v3834
        %3882 = vmatprep.subr.bf16.mxu0 0
        %3883 = vmatpush1.bf16.xpose.msra.mxu0 %v3837
        %3884 = vmatprep.subr.bf16.mxu0 0
        %3885 = vmatpush1.bf16.xpose.msra.mxu0 %v3840
        %3886 = vmatprep.subr.bf16.mxu0 0
        %3887 = vmatpush1.bf16.xpose.msra.mxu0 %v3843
        %3888 = vmatprep.subr.bf16.mxu0 0
        %3889 = vmatpush1.bf16.xpose.msra.mxu0 %v3846
        %3890 = vmatprep.subr.bf16.mxu0 0
        %3891 = vmatpush1.bf16.xpose.msra.mxu0 %v3849
        %3892 = vmatprep.subr.bf16.mxu0 0
        %3893 = vmatpush1.bf16.xpose.msra.mxu0 %v3852
        %3894 = vmatprep.subr.bf16.mxu0 0
        %3895 = vmatpush1.bf16.xpose.msra.mxu0 %v3855
        %3896 = vmatprep.subr.bf16.mxu0 0
        %3897 = vmatpush1.bf16.xpose.msra.mxu0 %v3858
        %3898 = vmatprep.subr.bf16.mxu0 0
        %3899 = vmatpush1.bf16.xpose.msra.mxu0 %v3861
        %3900 = vmatprep.subr.bf16.mxu0 0
        %3901 = vmatpush1.bf16.xpose.msra.mxu0 %v3864
        %3902 = vmatprep.subr.bf16.mxu0 0
        %3903 = vmatpush1.bf16.xpose.msra.mxu0 %v3867
        %3904 = vmatprep.subr.bf16.mxu0 0
        %3905 = vmatpush1.bf16.xpose.msra.mxu0 %v3870
        %3906 = vmatprep.subr.bf16.mxu0 0
        %3907 = vmatpush1.bf16.xpose.msra.mxu0 %v3873
        %3908 = vmatprep.subr.bf16.mxu0 0
        %3909 = vmatpush1.bf16.xpose.msra.mxu0 %v3876
        %3910 = vmatprep.mubr.bf16.mxu0 0
        %3911 = vmatmul.mubr.bf16.gmra.mrb[0].mxu0 %v3828
        %v3912 = vpop.f32.mrb[0].mxu0
        %v3913 = vadd.f32 %v3824, %v3912
        %v3914 = vpop.f32.mrb[0].mxu0
        %v3915 = vadd.f32 %v3824, %v3914
        %v3916 = vpop.f32.mrb[0].mxu0
        %v3917 = vpop.f32.mrb[0].mxu0
        %3918 = vdwg.mxu0
        %v3919 = vxor.u32 %v3913, 2147483648
        %v3920 = vxor.u32 %v3915, 2147483648
        %v3921 = vmul.f32 %v3919, 1.442695
        %v3922 = vpow.pop %v3921
        %v3923 = vmul.f32 %v3920, 1.442695
        %v3924 = vpow.pop %v3923
        %v3925 = vadd.f32 %v3922, 1.0
        %v3926 = vadd.f32 %v3924, 1.0
        %v3927 = vrcp.pop %v3925
        %v3928 = vmul.f32 1.0, %v3927
        %v3929 = vrcp.pop %v3926
        %v3930 = vmul.f32 1.0, %v3929
        %v3931 = vmul.f32 %v3913, %v3928
        %v3932 = vmul.f32 %v3915, %v3930
        %3933 = vst [vmem:[%s163] sm:$0xff] %v3931
        %3934 = vst [vmem:[%s163 + $0x8] sm:$0xff] %v3932
        %s3935 = sand.u32 %s93, 1
        %s3936 = scalar_lea.sflag [#allocation5], %s3935
        %s3937 = sand.u32 %s93, 1
        %s3938 = smul.addr %s3937, 16
        %s3939 = scalar_lea.vmem [#allocation4], %s3938
        // Predicated region
        $region33: #{tpu_custom_call.1} parent=31 // pred_check
          %p3940 = pneg %p103
        $region34: #{tpu_custom_call.1} parent=31 // pred_check_branch
          %3942 = sbr.rel (%p3940) target = $region36
        $region35: #{tpu_custom_call.1} parent=31 // pred_region
          %s3944 = ssub.s32 256, 256
          %3945 = vsyncadd %s3936, %s3944
          %s3946 = smul.addr %s17, 2
          %s3947 = smul.addr %s3946, 128
          %s3948 = scalar_lea.hbm %s3, %s3947
          %s3950 = sshll.u32 %s3939, 4
          %s3951 = int_to_ptr.vmem [resolvable:$true] %s3950
          %3953 = dma.vmem_to_hbm [thread:$0]  %s3951, 256, %s3948, %s3936
        $region36: #{tpu_custom_call.1} parent=31 // pred_fallthru
          _
      $region32: #{tpu_custom_call.1} parent=5 // pred_fallthru
        _
      %p3954 = scmp.le.s32.totalorder 2, %s12
      // Predicated region
      $region37: #{tpu_custom_call.1} parent=5 // pred_check
        %p3955 = pneg %p3954
      $region38: #{tpu_custom_call.1} parent=5 // pred_check_branch
        %3957 = sbr.rel (%p3955) target = $region40
      $region39: #{tpu_custom_call.1} parent=5 // pred_region
        %s3958 = ssub.s32 %s12, 2
        // Predicated region
        $region41: #{tpu_custom_call.1} parent=39 // pred_check
          %p3959 = pneg %p109
        $region42: #{tpu_custom_call.1} parent=39 // pred_check_branch
          %3961 = sbr.rel (%p3959) target = $region44
        $region43: #{tpu_custom_call.1} parent=39 // pred_region
          %s3962 = sand.u32 %s94, 1
          %s3963 = scalar_lea.sflag [#allocation5], %s3962
          %s3964 = sand.u32 %s94, 1
          %s3965 = smul.addr %s3964, 16
          %s3966 = scalar_lea.vmem [#allocation4], %s3965
          %3967 = dma.done %s3963, 256
        $region44: #{tpu_custom_call.1} parent=39 // pred_fallthru
          _
      $region40: #{tpu_custom_call.1} parent=5 // pred_fallthru
        _
    $region6: #{tpu_custom_call.1} parent=1 // loop_footer
      %s16 = sadd.s32 1, %s12
    $region7: #{tpu_custom_call.1} parent=1 // loop_footer_branch
      %11 = sbr.rel target = $region3
    $region8: #{tpu_custom_call.1} parent=1 // loop_exit
      _
    %3968 = vsyncpa [#allocation5], 1
    %s3969 = scalar_lea.sflag [#allocation5], 1
    %3970 = vsyncpa %s3969, 1

</llo_original>
